<compile_context>
chip_gen: v7x
topology: tpu7x:2x2x1
jax: 0.10.0
libtpu: 0.0.40
codegen_flags: <defaults>
</compile_context>

<pallas_src>
import functools

import jax
import jax.numpy as jnp
from jax.experimental import pallas as pl
from jax.experimental.pallas import tpu as pltpu


def _zero_pad_ring(ref, *, B, C, H, W, pad, Hp, Wp, BWp):
    """Zero only the per-image padding ring of a (C, Hp, B*Wp) buffer."""
    if pad == 0:
        return
    zrow = jnp.zeros((C, pad, BWp), jnp.float32)
    ref[:, :pad, :] = zrow                       # top pad rows
    ref[:, pad + H:, :] = zrow                   # bottom pad rows
    zcol = jnp.zeros((C, Hp, pad), jnp.float32)
    for b in range(B):
        ref[:, :, b * Wp:b * Wp + pad] = zcol            # left pad of image b
        ref[:, :, b * Wp + pad + W:(b + 1) * Wp] = zcol  # right pad of image b


def _pixel_attn_kernel(w1_ref, b1_ref, w2_ref, b2_ref, w3_ref, b3_ref,
                       x_ref, o_ref, xpad_ref, mpad_ref,
                       *, B, C, H, W, K, pad):
    # x_ref  : (B, C, H, W)        VMEM  -- B images of this grid step
    # o_ref  : (B, C, H, W)        VMEM
    # xpad_ref / mpad_ref : (C, Hp, B*Wp) VMEM scratch; images packed along
    #                       lanes, each with its own zero pad ring.
    Hp = H + 2 * pad
    Wp = W + 2 * pad
    BWp = B * Wp
    Wv = BWp - 2 * pad          # width of every tap / accumulator tile

    ring = functools.partial(_zero_pad_ring, B=B, C=C, H=H, W=W,
                             pad=pad, Hp=Hp, Wp=Wp, BWp=BWp)

    # ---- in-kernel padding: scatter the B images into the padded scratch ---
    ring(xpad_ref)              # interior is fully overwritten below
    for b in range(B):
        lo = b * Wp + pad
        xpad_ref[:, pad:pad + H, lo:lo + W] = x_ref[b].astype(jnp.float32)

    # ---- fused k1 (1x1) + k2 (KxK): tap-outer, output-channel-inner --------
    acc1 = [jnp.zeros((H, Wv), jnp.float32) for _ in range(C)]
    acc2 = [jnp.zeros((H, Wv), jnp.float32) for _ in range(C)]
    for ci in range(C):
        for kh in range(K):
            for kw in range(K):
                tap = xpad_ref[ci, kh:kh + H, kw:kw + Wv]   # loaded/rotated once
                center = (kh == pad) and (kw == pad)
                for co in range(C):
                    w2 = w2_ref[((co * C + ci) * K + kh) * K + kw]
                    acc2[co] = acc2[co] + tap * w2
                    if center:                 # k1 reuses the centre tap
                        acc1[co] = acc1[co] + tap * w1_ref[co * C + ci]

    # ---- m = sigmoid(k1(x)) * k2(x), stored in the padded lane layout ------
    for co in range(C):
        d = 1.0 + jnp.exp(-(acc1[co] + b1_ref[co]))     # EUP exp
        r = pl.reciprocal(d, approx=True)               # EUP reciprocal
        r = r * (2.0 - d * r)                           # 1 Newton step (f32 acc.)
        m = r * (acc2[co] + b2_ref[co])
        mpad_ref[co, pad:pad + H, pad:pad + Wv] = m
    # The wide store above also wrote junk into the inter-image pad columns;
    # re-zero the ring so the k3 taps see proper zero padding.
    ring(mpad_ref)

    # ---- out = k3(m): same tap-outer / co-inner structure -------------------
    acc3 = [jnp.zeros((H, Wv), jnp.float32) for _ in range(C)]
    for ci in range(C):
        for kh in range(K):
            for kw in range(K):
                tap = mpad_ref[ci, kh:kh + H, kw:kw + Wv]
                for co in range(C):
                    w3 = w3_ref[((co * C + ci) * K + kh) * K + kw]
                    acc3[co] = acc3[co] + tap * w3

    for co in range(C):
        y = acc3[co] + b3_ref[co]
        for b in range(B):
            o_ref[b, co, :, :] = y[:, b * Wp:b * Wp + W].astype(o_ref.dtype)


def _pick_batch_block(N, Wp, max_lanes=144):
    """Largest divisor of N whose packed lane width B*Wp stays <= max_lanes."""
    B = 1
    for cand in range(1, N + 1):
        if N % cand == 0 and cand * Wp <= max_lanes:
            B = cand
    return B


def pixel_attn_conv(x, params, kernel=3, batch_block=None):
    """Pallas implementation of PixelAttnConv.forward.  x: (N, C, H, W) f32."""
    w1, b1, w2, b2, w3, b3 = params
    N, C, H, W = x.shape
    K = kernel
    pad = (K - 1) // 2
    Hp, Wp = H + 2 * pad, W + 2 * pad

    B = _pick_batch_block(N, Wp) if batch_block is None else batch_block
    assert N % B == 0, "batch block must divide N"
    BWp = B * Wp

    kernel_fn = functools.partial(_pixel_attn_kernel,
                                  B=B, C=C, H=H, W=W, K=K, pad=pad)

    smem = pl.BlockSpec(memory_space=pltpu.MemorySpace.SMEM)

    return pl.pallas_call(
        kernel_fn,
        out_shape=jax.ShapeDtypeStruct((N, C, H, W), x.dtype),
        grid=(N // B,),
        in_specs=[
            smem, smem,                  # w1 (flat), b1
            smem, smem,                  # w2 (flat), b2
            smem, smem,                  # w3 (flat), b3
            pl.BlockSpec((B, C, H, W), lambda n: (n, 0, 0, 0)),   # x (unpadded)
        ],
        out_specs=pl.BlockSpec((B, C, H, W), lambda n: (n, 0, 0, 0)),
        scratch_shapes=[pltpu.VMEM((C, Hp, BWp), jnp.float32),    # padded x
                        pltpu.VMEM((C, Hp, BWp), jnp.float32)],   # padded m
        compiler_params=pltpu.CompilerParams(
            # N/B grid axis shards across v7x's 2 TensorCores; neutral on v5e/v6e.
            dimension_semantics=("parallel",)),
    )(w1.reshape(-1), b1, w2.reshape(-1), b2, w3.reshape(-1), b3, x)


def ref_forward(x, params, kernel=3):
    """Pure-JAX reference matching the PyTorch module semantics (NCHW)."""
    w1, b1, w2, b2, w3, b3 = params
    dn = ("NCHW", "OIHW", "NCHW")
    pad = (kernel - 1) // 2

    def conv(inp, w, b, p):
        y = jax.lax.conv_general_dilated(
            inp, w, window_strides=(1, 1), padding=[(p, p), (p, p)],
            dimension_numbers=dn)
        return y + b[None, :, None, None]

    attn = jax.nn.sigmoid(conv(x, w1, b1, 0))
    return conv(attn * conv(x, w2, b2, pad), w3, b3, pad)


if __name__ == "__main__":
    N, C, H, W, K = 2, 4, 16, 16, 3
    key = jax.random.PRNGKey(0)
    ks = jax.random.split(key, 7)

    x = jax.random.normal(ks[0], (N, C, H, W), jnp.float32)
    # Deterministic synthetic parameters (OIHW, matching nn.Conv2d shapes).
    w1 = 0.5 * jax.random.normal(ks[1], (C, C, 1, 1), jnp.float32)
    b1 = 0.1 * jax.random.normal(ks[2], (C,), jnp.float32)
    w2 = 0.2 * jax.random.normal(ks[3], (C, C, K, K), jnp.float32)
    b2 = 0.1 * jax.random.normal(ks[4], (C,), jnp.float32)
    w3 = 0.2 * jax.random.normal(ks[5], (C, C, K, K), jnp.float32)
    b3 = 0.1 * jax.random.normal(ks[6], (C,), jnp.float32)
    params = (w1, b1, w2, b2, w3, b3)

    out = pixel_attn_conv(x, params, kernel=K)
    out = jax.block_until_ready(out)

    ref = ref_forward(x, params, kernel=K)
    assert out.shape == ref.shape and out.dtype == ref.dtype
    max_err = float(jnp.max(jnp.abs(out - ref)))
    assert jnp.allclose(out, ref, atol=1e-3, rtol=1e-3), max_err

    print("KERNEL_OK")
</pallas_src>

<mosaic_0001>
module attributes {stable_mosaic.version = 11 : i64} {
  func.func @_pixel_attn_kernel(%arg0: i32, %arg1: memref<16xf32, #tpu.memory_space<smem>>, %arg2: memref<4xf32, #tpu.memory_space<smem>>, %arg3: memref<144xf32, #tpu.memory_space<smem>>, %arg4: memref<4xf32, #tpu.memory_space<smem>>, %arg5: memref<144xf32, #tpu.memory_space<smem>>, %arg6: memref<4xf32, #tpu.memory_space<smem>>, %arg7: memref<2x4x16x16xf32, #tpu.memory_space<vmem>>, %arg8: memref<2x4x16x16xf32, #tpu.memory_space<vmem>>, %arg9: memref<4x18x36xf32, #tpu.memory_space<vmem>>, %arg10: memref<4x18x36xf32, #tpu.memory_space<vmem>>) attributes {dimension_semantics = [#tpu.dimension_semantics<parallel>], iteration_bounds = array<i64: 1>, scalar_prefetch = 0 : i64, scratch_operands = 2 : i64, tpu.core_type = #tpu.core_type<tc>, window_params = [{transform_indices = @transform_0, window_bounds = array<i64: 16>}, {transform_indices = @transform_1, window_bounds = array<i64: 4>}, {transform_indices = @transform_2, window_bounds = array<i64: 144>}, {transform_indices = @transform_3, window_bounds = array<i64: 4>}, {transform_indices = @transform_4, window_bounds = array<i64: 144>}, {transform_indices = @transform_5, window_bounds = array<i64: 4>}, {transform_indices = @transform_6, window_bounds = array<i64: 2, 4, 16, 16>}, {transform_indices = @transform_7, window_bounds = array<i64: 2, 4, 16, 16>}]} {
    %cst = arith.constant 0.000000e+00 : f32
    %0 = vector.broadcast %cst : f32 to vector<4x1x36xf32>
    %c0 = arith.constant 0 : index
    %c0_0 = arith.constant 0 : index
    %c0_1 = arith.constant 0 : index
    %1 = vector.load %arg9[%c0, %c0_0, %c0_1] : memref<4x18x36xf32, #tpu.memory_space<vmem>>, vector<4x1x36xf32>
    tpu.vector_store %arg9[%c0, %c0_0, %c0_1], %0 {strides = array<i32>} : memref<4x18x36xf32, #tpu.memory_space<vmem>>, vector<4x1x36xf32>,
    %c0_2 = arith.constant 0 : index
    %c17 = arith.constant 17 : index
    %c0_3 = arith.constant 0 : index
    %2 = vector.load %arg9[%c0_2, %c17, %c0_3] : memref<4x18x36xf32, #tpu.memory_space<vmem>>, vector<4x1x36xf32>
    tpu.vector_store %arg9[%c0_2, %c17, %c0_3], %0 {strides = array<i32>} : memref<4x18x36xf32, #tpu.memory_space<vmem>>, vector<4x1x36xf32>,
    %cst_4 = arith.constant 0.000000e+00 : f32
    %3 = vector.broadcast %cst_4 : f32 to vector<4x18x1xf32>
    %c0_5 = arith.constant 0 : index
    %c0_6 = arith.constant 0 : index
    %c0_7 = arith.constant 0 : index
    %4 = vector.load %arg9[%c0_5, %c0_6, %c0_7] : memref<4x18x36xf32, #tpu.memory_space<vmem>>, vector<4x18x1xf32>
    tpu.vector_store %arg9[%c0_5, %c0_6, %c0_7], %3 {strides = array<i32>} : memref<4x18x36xf32, #tpu.memory_space<vmem>>, vector<4x18x1xf32>,
    %c0_8 = arith.constant 0 : index
    %c0_9 = arith.constant 0 : index
    %c17_10 = arith.constant 17 : index
    %5 = vector.load %arg9[%c0_8, %c0_9, %c17_10] : memref<4x18x36xf32, #tpu.memory_space<vmem>>, vector<4x18x1xf32>
    tpu.vector_store %arg9[%c0_8, %c0_9, %c17_10], %3 {strides = array<i32>} : memref<4x18x36xf32, #tpu.memory_space<vmem>>, vector<4x18x1xf32>,
    %c0_11 = arith.constant 0 : index
    %c0_12 = arith.constant 0 : index
    %c18 = arith.constant 18 : index
    %6 = vector.load %arg9[%c0_11, %c0_12, %c18] : memref<4x18x36xf32, #tpu.memory_space<vmem>>, vector<4x18x1xf32>
    tpu.vector_store %arg9[%c0_11, %c0_12, %c18], %3 {strides = array<i32>} : memref<4x18x36xf32, #tpu.memory_space<vmem>>, vector<4x18x1xf32>,
    %c0_13 = arith.constant 0 : index
    %c0_14 = arith.constant 0 : index
    %c35 = arith.constant 35 : index
    %7 = vector.load %arg9[%c0_13, %c0_14, %c35] : memref<4x18x36xf32, #tpu.memory_space<vmem>>, vector<4x18x1xf32>
    tpu.vector_store %arg9[%c0_13, %c0_14, %c35], %3 {strides = array<i32>} : memref<4x18x36xf32, #tpu.memory_space<vmem>>, vector<4x18x1xf32>,
    %c0_15 = arith.constant 0 : index
    %c0_16 = arith.constant 0 : index
    %c0_17 = arith.constant 0 : index
    %c0_18 = arith.constant 0 : index
    %8 = vector.load %arg7[%c0_15, %c0_16, %c0_17, %c0_18] : memref<2x4x16x16xf32, #tpu.memory_space<vmem>>, vector<1x4x16x16xf32>
    %9 = vector.shape_cast %8 : vector<1x4x16x16xf32> to vector<4x16x16xf32>
    %c0_19 = arith.constant 0 : index
    %c1 = arith.constant 1 : index
    %c1_20 = arith.constant 1 : index
    %10 = vector.load %arg9[%c0_19, %c1, %c1_20] : memref<4x18x36xf32, #tpu.memory_space<vmem>>, vector<4x16x16xf32>
    tpu.vector_store %arg9[%c0_19, %c1, %c1_20], %9 {strides = array<i32>} : memref<4x18x36xf32, #tpu.memory_space<vmem>>, vector<4x16x16xf32>,
    %c1_21 = arith.constant 1 : index
    %c0_22 = arith.constant 0 : index
    %c0_23 = arith.constant 0 : index
    %c0_24 = arith.constant 0 : index
    %11 = vector.load %arg7[%c1_21, %c0_22, %c0_23, %c0_24] : memref<2x4x16x16xf32, #tpu.memory_space<vmem>>, vector<1x4x16x16xf32>
    %12 = vector.shape_cast %11 : vector<1x4x16x16xf32> to vector<4x16x16xf32>
    %c0_25 = arith.constant 0 : index
    %c1_26 = arith.constant 1 : index
    %c19 = arith.constant 19 : index
    %13 = vector.load %arg9[%c0_25, %c1_26, %c19] : memref<4x18x36xf32, #tpu.memory_space<vmem>>, vector<4x16x16xf32>
    tpu.vector_store %arg9[%c0_25, %c1_26, %c19], %12 {strides = array<i32>} : memref<4x18x36xf32, #tpu.memory_space<vmem>>, vector<4x16x16xf32>,
    %cst_27 = arith.constant 0.000000e+00 : f32
    %14 = vector.broadcast %cst_27 : f32 to vector<16x34xf32>
    %cst_28 = arith.constant 0.000000e+00 : f32
    %15 = vector.broadcast %cst_28 : f32 to vector<16x34xf32>
    %cst_29 = arith.constant 0.000000e+00 : f32
    %16 = vector.broadcast %cst_29 : f32 to vector<16x34xf32>
    %cst_30 = arith.constant 0.000000e+00 : f32
    %17 = vector.broadcast %cst_30 : f32 to vector<16x34xf32>
    %cst_31 = arith.constant 0.000000e+00 : f32
    %18 = vector.broadcast %cst_31 : f32 to vector<16x34xf32>
    %cst_32 = arith.constant 0.000000e+00 : f32
    %19 = vector.broadcast %cst_32 : f32 to vector<16x34xf32>
    %cst_33 = arith.constant 0.000000e+00 : f32
    %20 = vector.broadcast %cst_33 : f32 to vector<16x34xf32>
    %cst_34 = arith.constant 0.000000e+00 : f32
    %21 = vector.broadcast %cst_34 : f32 to vector<16x34xf32>
    %c0_35 = arith.constant 0 : index
    %c0_36 = arith.constant 0 : index
    %c0_37 = arith.constant 0 : index
    %22 = vector.load %arg9[%c0_35, %c0_36, %c0_37] : memref<4x18x36xf32, #tpu.memory_space<vmem>>, vector<1x16x34xf32>
    %23 = vector.shape_cast %22 : vector<1x16x34xf32> to vector<16x34xf32>
    %c0_38 = arith.constant 0 : index
    %24 = memref.load %arg3[%c0_38] : memref<144xf32, #tpu.memory_space<smem>>
    %25 = vector.broadcast %24 : f32 to vector<16x34xf32>
    %26 = arith.mulf %23, %25 : vector<16x34xf32>
    %27 = arith.addf %18, %26 : vector<16x34xf32>
    %c36 = arith.constant 36 : index
    %28 = memref.load %arg3[%c36] : memref<144xf32, #tpu.memory_space<smem>>
    %29 = vector.broadcast %28 : f32 to vector<16x34xf32>
    %30 = arith.mulf %23, %29 : vector<16x34xf32>
    %31 = arith.addf %19, %30 : vector<16x34xf32>
    %c72 = arith.constant 72 : index
    %32 = memref.load %arg3[%c72] : memref<144xf32, #tpu.memory_space<smem>>
    %33 = vector.broadcast %32 : f32 to vector<16x34xf32>
    %34 = arith.mulf %23, %33 : vector<16x34xf32>
    %35 = arith.addf %20, %34 : vector<16x34xf32>
    %c108 = arith.constant 108 : index
    %36 = memref.load %arg3[%c108] : memref<144xf32, #tpu.memory_space<smem>>
    %37 = vector.broadcast %36 : f32 to vector<16x34xf32>
    %38 = arith.mulf %23, %37 : vector<16x34xf32>
    %39 = arith.addf %21, %38 : vector<16x34xf32>
    %c0_39 = arith.constant 0 : index
    %c0_40 = arith.constant 0 : index
    %c1_41 = arith.constant 1 : index
    %40 = vector.load %arg9[%c0_39, %c0_40, %c1_41] : memref<4x18x36xf32, #tpu.memory_space<vmem>>, vector<1x16x34xf32>
    %41 = vector.shape_cast %40 : vector<1x16x34xf32> to vector<16x34xf32>
    %c1_42 = arith.constant 1 : index
    %42 = memref.load %arg3[%c1_42] : memref<144xf32, #tpu.memory_space<smem>>
    %43 = vector.broadcast %42 : f32 to vector<16x34xf32>
    %44 = arith.mulf %41, %43 : vector<16x34xf32>
    %45 = arith.addf %27, %44 : vector<16x34xf32>
    %c37 = arith.constant 37 : index
    %46 = memref.load %arg3[%c37] : memref<144xf32, #tpu.memory_space<smem>>
    %47 = vector.broadcast %46 : f32 to vector<16x34xf32>
    %48 = arith.mulf %41, %47 : vector<16x34xf32>
    %49 = arith.addf %31, %48 : vector<16x34xf32>
    %c73 = arith.constant 73 : index
    %50 = memref.load %arg3[%c73] : memref<144xf32, #tpu.memory_space<smem>>
    %51 = vector.broadcast %50 : f32 to vector<16x34xf32>
    %52 = arith.mulf %41, %51 : vector<16x34xf32>
    %53 = arith.addf %35, %52 : vector<16x34xf32>
    %c109 = arith.constant 109 : index
    %54 = memref.load %arg3[%c109] : memref<144xf32, #tpu.memory_space<smem>>
    %55 = vector.broadcast %54 : f32 to vector<16x34xf32>
    %56 = arith.mulf %41, %55 : vector<16x34xf32>
    %57 = arith.addf %39, %56 : vector<16x34xf32>
    %c0_43 = arith.constant 0 : index
    %c0_44 = arith.constant 0 : index
    %c2 = arith.constant 2 : index
    %58 = vector.load %arg9[%c0_43, %c0_44, %c2] : memref<4x18x36xf32, #tpu.memory_space<vmem>>, vector<1x16x34xf32>
    %59 = vector.shape_cast %58 : vector<1x16x34xf32> to vector<16x34xf32>
    %c2_45 = arith.constant 2 : index
    %60 = memref.load %arg3[%c2_45] : memref<144xf32, #tpu.memory_space<smem>>
    %61 = vector.broadcast %60 : f32 to vector<16x34xf32>
    %62 = arith.mulf %59, %61 : vector<16x34xf32>
    %63 = arith.addf %45, %62 : vector<16x34xf32>
    %c38 = arith.constant 38 : index
    %64 = memref.load %arg3[%c38] : memref<144xf32, #tpu.memory_space<smem>>
    %65 = vector.broadcast %64 : f32 to vector<16x34xf32>
    %66 = arith.mulf %59, %65 : vector<16x34xf32>
    %67 = arith.addf %49, %66 : vector<16x34xf32>
    %c74 = arith.constant 74 : index
    %68 = memref.load %arg3[%c74] : memref<144xf32, #tpu.memory_space<smem>>
    %69 = vector.broadcast %68 : f32 to vector<16x34xf32>
    %70 = arith.mulf %59, %69 : vector<16x34xf32>
    %71 = arith.addf %53, %70 : vector<16x34xf32>
    %c110 = arith.constant 110 : index
    %72 = memref.load %arg3[%c110] : memref<144xf32, #tpu.memory_space<smem>>
    %73 = vector.broadcast %72 : f32 to vector<16x34xf32>
    %74 = arith.mulf %59, %73 : vector<16x34xf32>
    %75 = arith.addf %57, %74 : vector<16x34xf32>
    %c0_46 = arith.constant 0 : index
    %c1_47 = arith.constant 1 : index
    %c0_48 = arith.constant 0 : index
    %76 = vector.load %arg9[%c0_46, %c1_47, %c0_48] : memref<4x18x36xf32, #tpu.memory_space<vmem>>, vector<1x16x34xf32>
    %77 = vector.shape_cast %76 : vector<1x16x34xf32> to vector<16x34xf32>
    %c3 = arith.constant 3 : index
    %78 = memref.load %arg3[%c3] : memref<144xf32, #tpu.memory_space<smem>>
    %79 = vector.broadcast %78 : f32 to vector<16x34xf32>
    %80 = arith.mulf %77, %79 : vector<16x34xf32>
    %81 = arith.addf %63, %80 : vector<16x34xf32>
    %c39 = arith.constant 39 : index
    %82 = memref.load %arg3[%c39] : memref<144xf32, #tpu.memory_space<smem>>
    %83 = vector.broadcast %82 : f32 to vector<16x34xf32>
    %84 = arith.mulf %77, %83 : vector<16x34xf32>
    %85 = arith.addf %67, %84 : vector<16x34xf32>
    %c75 = arith.constant 75 : index
    %86 = memref.load %arg3[%c75] : memref<144xf32, #tpu.memory_space<smem>>
    %87 = vector.broadcast %86 : f32 to vector<16x34xf32>
    %88 = arith.mulf %77, %87 : vector<16x34xf32>
    %89 = arith.addf %71, %88 : vector<16x34xf32>
    %c111 = arith.constant 111 : index
    %90 = memref.load %arg3[%c111] : memref<144xf32, #tpu.memory_space<smem>>
    %91 = vector.broadcast %90 : f32 to vector<16x34xf32>
    %92 = arith.mulf %77, %91 : vector<16x34xf32>
    %93 = arith.addf %75, %92 : vector<16x34xf32>
    %c0_49 = arith.constant 0 : index
    %c1_50 = arith.constant 1 : index
    %c1_51 = arith.constant 1 : index
    %94 = vector.load %arg9[%c0_49, %c1_50, %c1_51] : memref<4x18x36xf32, #tpu.memory_space<vmem>>, vector<1x16x34xf32>
    %95 = vector.shape_cast %94 : vector<1x16x34xf32> to vector<16x34xf32>
    %c4 = arith.constant 4 : index
    %96 = memref.load %arg3[%c4] : memref<144xf32, #tpu.memory_space<smem>>
    %97 = vector.broadcast %96 : f32 to vector<16x34xf32>
    %98 = arith.mulf %95, %97 : vector<16x34xf32>
    %99 = arith.addf %81, %98 : vector<16x34xf32>
    %c0_52 = arith.constant 0 : index
    %100 = memref.load %arg1[%c0_52] : memref<16xf32, #tpu.memory_space<smem>>
    %101 = vector.broadcast %100 : f32 to vector<16x34xf32>
    %102 = arith.mulf %95, %101 : vector<16x34xf32>
    %103 = arith.addf %14, %102 : vector<16x34xf32>
    %c40 = arith.constant 40 : index
    %104 = memref.load %arg3[%c40] : memref<144xf32, #tpu.memory_space<smem>>
    %105 = vector.broadcast %104 : f32 to vector<16x34xf32>
    %106 = arith.mulf %95, %105 : vector<16x34xf32>
    %107 = arith.addf %85, %106 : vector<16x34xf32>
    %c4_53 = arith.constant 4 : index
    %108 = memref.load %arg1[%c4_53] : memref<16xf32, #tpu.memory_space<smem>>
    %109 = vector.broadcast %108 : f32 to vector<16x34xf32>
    %110 = arith.mulf %95, %109 : vector<16x34xf32>
    %111 = arith.addf %15, %110 : vector<16x34xf32>
    %c76 = arith.constant 76 : index
    %112 = memref.load %arg3[%c76] : memref<144xf32, #tpu.memory_space<smem>>
    %113 = vector.broadcast %112 : f32 to vector<16x34xf32>
    %114 = arith.mulf %95, %113 : vector<16x34xf32>
    %115 = arith.addf %89, %114 : vector<16x34xf32>
    %c8 = arith.constant 8 : index
    %116 = memref.load %arg1[%c8] : memref<16xf32, #tpu.memory_space<smem>>
    %117 = vector.broadcast %116 : f32 to vector<16x34xf32>
    %118 = arith.mulf %95, %117 : vector<16x34xf32>
    %119 = arith.addf %16, %118 : vector<16x34xf32>
    %c112 = arith.constant 112 : index
    %120 = memref.load %arg3[%c112] : memref<144xf32, #tpu.memory_space<smem>>
    %121 = vector.broadcast %120 : f32 to vector<16x34xf32>
    %122 = arith.mulf %95, %121 : vector<16x34xf32>
    %123 = arith.addf %93, %122 : vector<16x34xf32>
    %c12 = arith.constant 12 : index
    %124 = memref.load %arg1[%c12] : memref<16xf32, #tpu.memory_space<smem>>
    %125 = vector.broadcast %124 : f32 to vector<16x34xf32>
    %126 = arith.mulf %95, %125 : vector<16x34xf32>
    %127 = arith.addf %17, %126 : vector<16x34xf32>
    %c0_54 = arith.constant 0 : index
    %c1_55 = arith.constant 1 : index
    %c2_56 = arith.constant 2 : index
    %128 = vector.load %arg9[%c0_54, %c1_55, %c2_56] : memref<4x18x36xf32, #tpu.memory_space<vmem>>, vector<1x16x34xf32>
    %129 = vector.shape_cast %128 : vector<1x16x34xf32> to vector<16x34xf32>
    %c5 = arith.constant 5 : index
    %130 = memref.load %arg3[%c5] : memref<144xf32, #tpu.memory_space<smem>>
    %131 = vector.broadcast %130 : f32 to vector<16x34xf32>
    %132 = arith.mulf %129, %131 : vector<16x34xf32>
    %133 = arith.addf %99, %132 : vector<16x34xf32>
    %c41 = arith.constant 41 : index
    %134 = memref.load %arg3[%c41] : memref<144xf32, #tpu.memory_space<smem>>
    %135 = vector.broadcast %134 : f32 to vector<16x34xf32>
    %136 = arith.mulf %129, %135 : vector<16x34xf32>
    %137 = arith.addf %107, %136 : vector<16x34xf32>
    %c77 = arith.constant 77 : index
    %138 = memref.load %arg3[%c77] : memref<144xf32, #tpu.memory_space<smem>>
    %139 = vector.broadcast %138 : f32 to vector<16x34xf32>
    %140 = arith.mulf %129, %139 : vector<16x34xf32>
    %141 = arith.addf %115, %140 : vector<16x34xf32>
    %c113 = arith.constant 113 : index
    %142 = memref.load %arg3[%c113] : memref<144xf32, #tpu.memory_space<smem>>
    %143 = vector.broadcast %142 : f32 to vector<16x34xf32>
    %144 = arith.mulf %129, %143 : vector<16x34xf32>
    %145 = arith.addf %123, %144 : vector<16x34xf32>
    %c0_57 = arith.constant 0 : index
    %c2_58 = arith.constant 2 : index
    %c0_59 = arith.constant 0 : index
    %146 = vector.load %arg9[%c0_57, %c2_58, %c0_59] : memref<4x18x36xf32, #tpu.memory_space<vmem>>, vector<1x16x34xf32>
    %147 = vector.shape_cast %146 : vector<1x16x34xf32> to vector<16x34xf32>
    %c6 = arith.constant 6 : index
    %148 = memref.load %arg3[%c6] : memref<144xf32, #tpu.memory_space<smem>>
    %149 = vector.broadcast %148 : f32 to vector<16x34xf32>
    %150 = arith.mulf %147, %149 : vector<16x34xf32>
    %151 = arith.addf %133, %150 : vector<16x34xf32>
    %c42 = arith.constant 42 : index
    %152 = memref.load %arg3[%c42] : memref<144xf32, #tpu.memory_space<smem>>
    %153 = vector.broadcast %152 : f32 to vector<16x34xf32>
    %154 = arith.mulf %147, %153 : vector<16x34xf32>
    %155 = arith.addf %137, %154 : vector<16x34xf32>
    %c78 = arith.constant 78 : index
    %156 = memref.load %arg3[%c78] : memref<144xf32, #tpu.memory_space<smem>>
    %157 = vector.broadcast %156 : f32 to vector<16x34xf32>
    %158 = arith.mulf %147, %157 : vector<16x34xf32>
    %159 = arith.addf %141, %158 : vector<16x34xf32>
    %c114 = arith.constant 114 : index
    %160 = memref.load %arg3[%c114] : memref<144xf32, #tpu.memory_space<smem>>
    %161 = vector.broadcast %160 : f32 to vector<16x34xf32>
    %162 = arith.mulf %147, %161 : vector<16x34xf32>
    %163 = arith.addf %145, %162 : vector<16x34xf32>
    %c0_60 = arith.constant 0 : index
    %c2_61 = arith.constant 2 : index
    %c1_62 = arith.constant 1 : index
    %164 = vector.load %arg9[%c0_60, %c2_61, %c1_62] : memref<4x18x36xf32, #tpu.memory_space<vmem>>, vector<1x16x34xf32>
    %165 = vector.shape_cast %164 : vector<1x16x34xf32> to vector<16x34xf32>
    %c7 = arith.constant 7 : index
    %166 = memref.load %arg3[%c7] : memref<144xf32, #tpu.memory_space<smem>>
    %167 = vector.broadcast %166 : f32 to vector<16x34xf32>
    %168 = arith.mulf %165, %167 : vector<16x34xf32>
    %169 = arith.addf %151, %168 : vector<16x34xf32>
    %c43 = arith.constant 43 : index
    %170 = memref.load %arg3[%c43] : memref<144xf32, #tpu.memory_space<smem>>
    %171 = vector.broadcast %170 : f32 to vector<16x34xf32>
    %172 = arith.mulf %165, %171 : vector<16x34xf32>
    %173 = arith.addf %155, %172 : vector<16x34xf32>
    %c79 = arith.constant 79 : index
    %174 = memref.load %arg3[%c79] : memref<144xf32, #tpu.memory_space<smem>>
    %175 = vector.broadcast %174 : f32 to vector<16x34xf32>
    %176 = arith.mulf %165, %175 : vector<16x34xf32>
    %177 = arith.addf %159, %176 : vector<16x34xf32>
    %c115 = arith.constant 115 : index
    %178 = memref.load %arg3[%c115] : memref<144xf32, #tpu.memory_space<smem>>
    %179 = vector.broadcast %178 : f32 to vector<16x34xf32>
    %180 = arith.mulf %165, %179 : vector<16x34xf32>
    %181 = arith.addf %163, %180 : vector<16x34xf32>
    %c0_63 = arith.constant 0 : index
    %c2_64 = arith.constant 2 : index
    %c2_65 = arith.constant 2 : index
    %182 = vector.load %arg9[%c0_63, %c2_64, %c2_65] : memref<4x18x36xf32, #tpu.memory_space<vmem>>, vector<1x16x34xf32>
    %183 = vector.shape_cast %182 : vector<1x16x34xf32> to vector<16x34xf32>
    %c8_66 = arith.constant 8 : index
    %184 = memref.load %arg3[%c8_66] : memref<144xf32, #tpu.memory_space<smem>>
    %185 = vector.broadcast %184 : f32 to vector<16x34xf32>
    %186 = arith.mulf %183, %185 : vector<16x34xf32>
    %187 = arith.addf %169, %186 : vector<16x34xf32>
    %c44 = arith.constant 44 : index
    %188 = memref.load %arg3[%c44] : memref<144xf32, #tpu.memory_space<smem>>
    %189 = vector.broadcast %188 : f32 to vector<16x34xf32>
    %190 = arith.mulf %183, %189 : vector<16x34xf32>
    %191 = arith.addf %173, %190 : vector<16x34xf32>
    %c80 = arith.constant 80 : index
    %192 = memref.load %arg3[%c80] : memref<144xf32, #tpu.memory_space<smem>>
    %193 = vector.broadcast %192 : f32 to vector<16x34xf32>
    %194 = arith.mulf %183, %193 : vector<16x34xf32>
    %195 = arith.addf %177, %194 : vector<16x34xf32>
    %c116 = arith.constant 116 : index
    %196 = memref.load %arg3[%c116] : memref<144xf32, #tpu.memory_space<smem>>
    %197 = vector.broadcast %196 : f32 to vector<16x34xf32>
    %198 = arith.mulf %183, %197 : vector<16x34xf32>
    %199 = arith.addf %181, %198 : vector<16x34xf32>
    %c1_67 = arith.constant 1 : index
    %c0_68 = arith.constant 0 : index
    %c0_69 = arith.constant 0 : index
    %200 = vector.load %arg9[%c1_67, %c0_68, %c0_69] : memref<4x18x36xf32, #tpu.memory_space<vmem>>, vector<1x16x34xf32>
    %201 = vector.shape_cast %200 : vector<1x16x34xf32> to vector<16x34xf32>
    %c9 = arith.constant 9 : index
    %202 = memref.load %arg3[%c9] : memref<144xf32, #tpu.memory_space<smem>>
    %203 = vector.broadcast %202 : f32 to vector<16x34xf32>
    %204 = arith.mulf %201, %203 : vector<16x34xf32>
    %205 = arith.addf %187, %204 : vector<16x34xf32>
    %c45 = arith.constant 45 : index
    %206 = memref.load %arg3[%c45] : memref<144xf32, #tpu.memory_space<smem>>
    %207 = vector.broadcast %206 : f32 to vector<16x34xf32>
    %208 = arith.mulf %201, %207 : vector<16x34xf32>
    %209 = arith.addf %191, %208 : vector<16x34xf32>
    %c81 = arith.constant 81 : index
    %210 = memref.load %arg3[%c81] : memref<144xf32, #tpu.memory_space<smem>>
    %211 = vector.broadcast %210 : f32 to vector<16x34xf32>
    %212 = arith.mulf %201, %211 : vector<16x34xf32>
    %213 = arith.addf %195, %212 : vector<16x34xf32>
    %c117 = arith.constant 117 : index
    %214 = memref.load %arg3[%c117] : memref<144xf32, #tpu.memory_space<smem>>
    %215 = vector.broadcast %214 : f32 to vector<16x34xf32>
    %216 = arith.mulf %201, %215 : vector<16x34xf32>
    %217 = arith.addf %199, %216 : vector<16x34xf32>
    %c1_70 = arith.constant 1 : index
    %c0_71 = arith.constant 0 : index
    %c1_72 = arith.constant 1 : index
    %218 = vector.load %arg9[%c1_70, %c0_71, %c1_72] : memref<4x18x36xf32, #tpu.memory_space<vmem>>, vector<1x16x34xf32>
    %219 = vector.shape_cast %218 : vector<1x16x34xf32> to vector<16x34xf32>
    %c10 = arith.constant 10 : index
    %220 = memref.load %arg3[%c10] : memref<144xf32, #tpu.memory_space<smem>>
    %221 = vector.broadcast %220 : f32 to vector<16x34xf32>
    %222 = arith.mulf %219, %221 : vector<16x34xf32>
    %223 = arith.addf %205, %222 : vector<16x34xf32>
    %c46 = arith.constant 46 : index
    %224 = memref.load %arg3[%c46] : memref<144xf32, #tpu.memory_space<smem>>
    %225 = vector.broadcast %224 : f32 to vector<16x34xf32>
    %226 = arith.mulf %219, %225 : vector<16x34xf32>
    %227 = arith.addf %209, %226 : vector<16x34xf32>
    %c82 = arith.constant 82 : index
    %228 = memref.load %arg3[%c82] : memref<144xf32, #tpu.memory_space<smem>>
    %229 = vector.broadcast %228 : f32 to vector<16x34xf32>
    %230 = arith.mulf %219, %229 : vector<16x34xf32>
    %231 = arith.addf %213, %230 : vector<16x34xf32>
    %c118 = arith.constant 118 : index
    %232 = memref.load %arg3[%c118] : memref<144xf32, #tpu.memory_space<smem>>
    %233 = vector.broadcast %232 : f32 to vector<16x34xf32>
    %234 = arith.mulf %219, %233 : vector<16x34xf32>
    %235 = arith.addf %217, %234 : vector<16x34xf32>
    %c1_73 = arith.constant 1 : index
    %c0_74 = arith.constant 0 : index
    %c2_75 = arith.constant 2 : index
    %236 = vector.load %arg9[%c1_73, %c0_74, %c2_75] : memref<4x18x36xf32, #tpu.memory_space<vmem>>, vector<1x16x34xf32>
    %237 = vector.shape_cast %236 : vector<1x16x34xf32> to vector<16x34xf32>
    %c11 = arith.constant 11 : index
    %238 = memref.load %arg3[%c11] : memref<144xf32, #tpu.memory_space<smem>>
    %239 = vector.broadcast %238 : f32 to vector<16x34xf32>
    %240 = arith.mulf %237, %239 : vector<16x34xf32>
    %241 = arith.addf %223, %240 : vector<16x34xf32>
    %c47 = arith.constant 47 : index
    %242 = memref.load %arg3[%c47] : memref<144xf32, #tpu.memory_space<smem>>
    %243 = vector.broadcast %242 : f32 to vector<16x34xf32>
    %244 = arith.mulf %237, %243 : vector<16x34xf32>
    %245 = arith.addf %227, %244 : vector<16x34xf32>
    %c83 = arith.constant 83 : index
    %246 = memref.load %arg3[%c83] : memref<144xf32, #tpu.memory_space<smem>>
    %247 = vector.broadcast %246 : f32 to vector<16x34xf32>
    %248 = arith.mulf %237, %247 : vector<16x34xf32>
    %249 = arith.addf %231, %248 : vector<16x34xf32>
    %c119 = arith.constant 119 : index
    %250 = memref.load %arg3[%c119] : memref<144xf32, #tpu.memory_space<smem>>
    %251 = vector.broadcast %250 : f32 to vector<16x34xf32>
    %252 = arith.mulf %237, %251 : vector<16x34xf32>
    %253 = arith.addf %235, %252 : vector<16x34xf32>
    %c1_76 = arith.constant 1 : index
    %c1_77 = arith.constant 1 : index
    %c0_78 = arith.constant 0 : index
    %254 = vector.load %arg9[%c1_76, %c1_77, %c0_78] : memref<4x18x36xf32, #tpu.memory_space<vmem>>, vector<1x16x34xf32>
    %255 = vector.shape_cast %254 : vector<1x16x34xf32> to vector<16x34xf32>
    %c12_79 = arith.constant 12 : index
    %256 = memref.load %arg3[%c12_79] : memref<144xf32, #tpu.memory_space<smem>>
    %257 = vector.broadcast %256 : f32 to vector<16x34xf32>
    %258 = arith.mulf %255, %257 : vector<16x34xf32>
    %259 = arith.addf %241, %258 : vector<16x34xf32>
    %c48 = arith.constant 48 : index
    %260 = memref.load %arg3[%c48] : memref<144xf32, #tpu.memory_space<smem>>
    %261 = vector.broadcast %260 : f32 to vector<16x34xf32>
    %262 = arith.mulf %255, %261 : vector<16x34xf32>
    %263 = arith.addf %245, %262 : vector<16x34xf32>
    %c84 = arith.constant 84 : index
    %264 = memref.load %arg3[%c84] : memref<144xf32, #tpu.memory_space<smem>>
    %265 = vector.broadcast %264 : f32 to vector<16x34xf32>
    %266 = arith.mulf %255, %265 : vector<16x34xf32>
    %267 = arith.addf %249, %266 : vector<16x34xf32>
    %c120 = arith.constant 120 : index
    %268 = memref.load %arg3[%c120] : memref<144xf32, #tpu.memory_space<smem>>
    %269 = vector.broadcast %268 : f32 to vector<16x34xf32>
    %270 = arith.mulf %255, %269 : vector<16x34xf32>
    %271 = arith.addf %253, %270 : vector<16x34xf32>
    %c1_80 = arith.constant 1 : index
    %c1_81 = arith.constant 1 : index
    %c1_82 = arith.constant 1 : index
    %272 = vector.load %arg9[%c1_80, %c1_81, %c1_82] : memref<4x18x36xf32, #tpu.memory_space<vmem>>, vector<1x16x34xf32>
    %273 = vector.shape_cast %272 : vector<1x16x34xf32> to vector<16x34xf32>
    %c13 = arith.constant 13 : index
    %274 = memref.load %arg3[%c13] : memref<144xf32, #tpu.memory_space<smem>>
    %275 = vector.broadcast %274 : f32 to vector<16x34xf32>
    %276 = arith.mulf %273, %275 : vector<16x34xf32>
    %277 = arith.addf %259, %276 : vector<16x34xf32>
    %c1_83 = arith.constant 1 : index
    %278 = memref.load %arg1[%c1_83] : memref<16xf32, #tpu.memory_space<smem>>
    %279 = vector.broadcast %278 : f32 to vector<16x34xf32>
    %280 = arith.mulf %273, %279 : vector<16x34xf32>
    %281 = arith.addf %103, %280 : vector<16x34xf32>
    %c49 = arith.constant 49 : index
    %282 = memref.load %arg3[%c49] : memref<144xf32, #tpu.memory_space<smem>>
    %283 = vector.broadcast %282 : f32 to vector<16x34xf32>
    %284 = arith.mulf %273, %283 : vector<16x34xf32>
    %285 = arith.addf %263, %284 : vector<16x34xf32>
    %c5_84 = arith.constant 5 : index
    %286 = memref.load %arg1[%c5_84] : memref<16xf32, #tpu.memory_space<smem>>
    %287 = vector.broadcast %286 : f32 to vector<16x34xf32>
    %288 = arith.mulf %273, %287 : vector<16x34xf32>
    %289 = arith.addf %111, %288 : vector<16x34xf32>
    %c85 = arith.constant 85 : index
    %290 = memref.load %arg3[%c85] : memref<144xf32, #tpu.memory_space<smem>>
    %291 = vector.broadcast %290 : f32 to vector<16x34xf32>
    %292 = arith.mulf %273, %291 : vector<16x34xf32>
    %293 = arith.addf %267, %292 : vector<16x34xf32>
    %c9_85 = arith.constant 9 : index
    %294 = memref.load %arg1[%c9_85] : memref<16xf32, #tpu.memory_space<smem>>
    %295 = vector.broadcast %294 : f32 to vector<16x34xf32>
    %296 = arith.mulf %273, %295 : vector<16x34xf32>
    %297 = arith.addf %119, %296 : vector<16x34xf32>
    %c121 = arith.constant 121 : index
    %298 = memref.load %arg3[%c121] : memref<144xf32, #tpu.memory_space<smem>>
    %299 = vector.broadcast %298 : f32 to vector<16x34xf32>
    %300 = arith.mulf %273, %299 : vector<16x34xf32>
    %301 = arith.addf %271, %300 : vector<16x34xf32>
    %c13_86 = arith.constant 13 : index
    %302 = memref.load %arg1[%c13_86] : memref<16xf32, #tpu.memory_space<smem>>
    %303 = vector.broadcast %302 : f32 to vector<16x34xf32>
    %304 = arith.mulf %273, %303 : vector<16x34xf32>
    %305 = arith.addf %127, %304 : vector<16x34xf32>
    %c1_87 = arith.constant 1 : index
    %c1_88 = arith.constant 1 : index
    %c2_89 = arith.constant 2 : index
    %306 = vector.load %arg9[%c1_87, %c1_88, %c2_89] : memref<4x18x36xf32, #tpu.memory_space<vmem>>, vector<1x16x34xf32>
    %307 = vector.shape_cast %306 : vector<1x16x34xf32> to vector<16x34xf32>
    %c14 = arith.constant 14 : index
    %308 = memref.load %arg3[%c14] : memref<144xf32, #tpu.memory_space<smem>>
    %309 = vector.broadcast %308 : f32 to vector<16x34xf32>
    %310 = arith.mulf %307, %309 : vector<16x34xf32>
    %311 = arith.addf %277, %310 : vector<16x34xf32>
    %c50 = arith.constant 50 : index
    %312 = memref.load %arg3[%c50] : memref<144xf32, #tpu.memory_space<smem>>
    %313 = vector.broadcast %312 : f32 to vector<16x34xf32>
    %314 = arith.mulf %307, %313 : vector<16x34xf32>
    %315 = arith.addf %285, %314 : vector<16x34xf32>
    %c86 = arith.constant 86 : index
    %316 = memref.load %arg3[%c86] : memref<144xf32, #tpu.memory_space<smem>>
    %317 = vector.broadcast %316 : f32 to vector<16x34xf32>
    %318 = arith.mulf %307, %317 : vector<16x34xf32>
    %319 = arith.addf %293, %318 : vector<16x34xf32>
    %c122 = arith.constant 122 : index
    %320 = memref.load %arg3[%c122] : memref<144xf32, #tpu.memory_space<smem>>
    %321 = vector.broadcast %320 : f32 to vector<16x34xf32>
    %322 = arith.mulf %307, %321 : vector<16x34xf32>
    %323 = arith.addf %301, %322 : vector<16x34xf32>
    %c1_90 = arith.constant 1 : index
    %c2_91 = arith.constant 2 : index
    %c0_92 = arith.constant 0 : index
    %324 = vector.load %arg9[%c1_90, %c2_91, %c0_92] : memref<4x18x36xf32, #tpu.memory_space<vmem>>, vector<1x16x34xf32>
    %325 = vector.shape_cast %324 : vector<1x16x34xf32> to vector<16x34xf32>
    %c15 = arith.constant 15 : index
    %326 = memref.load %arg3[%c15] : memref<144xf32, #tpu.memory_space<smem>>
    %327 = vector.broadcast %326 : f32 to vector<16x34xf32>
    %328 = arith.mulf %325, %327 : vector<16x34xf32>
    %329 = arith.addf %311, %328 : vector<16x34xf32>
    %c51 = arith.constant 51 : index
    %330 = memref.load %arg3[%c51] : memref<144xf32, #tpu.memory_space<smem>>
    %331 = vector.broadcast %330 : f32 to vector<16x34xf32>
    %332 = arith.mulf %325, %331 : vector<16x34xf32>
    %333 = arith.addf %315, %332 : vector<16x34xf32>
    %c87 = arith.constant 87 : index
    %334 = memref.load %arg3[%c87] : memref<144xf32, #tpu.memory_space<smem>>
    %335 = vector.broadcast %334 : f32 to vector<16x34xf32>
    %336 = arith.mulf %325, %335 : vector<16x34xf32>
    %337 = arith.addf %319, %336 : vector<16x34xf32>
    %c123 = arith.constant 123 : index
    %338 = memref.load %arg3[%c123] : memref<144xf32, #tpu.memory_space<smem>>
    %339 = vector.broadcast %338 : f32 to vector<16x34xf32>
    %340 = arith.mulf %325, %339 : vector<16x34xf32>
    %341 = arith.addf %323, %340 : vector<16x34xf32>
    %c1_93 = arith.constant 1 : index
    %c2_94 = arith.constant 2 : index
    %c1_95 = arith.constant 1 : index
    %342 = vector.load %arg9[%c1_93, %c2_94, %c1_95] : memref<4x18x36xf32, #tpu.memory_space<vmem>>, vector<1x16x34xf32>
    %343 = vector.shape_cast %342 : vector<1x16x34xf32> to vector<16x34xf32>
    %c16 = arith.constant 16 : index
    %344 = memref.load %arg3[%c16] : memref<144xf32, #tpu.memory_space<smem>>
    %345 = vector.broadcast %344 : f32 to vector<16x34xf32>
    %346 = arith.mulf %343, %345 : vector<16x34xf32>
    %347 = arith.addf %329, %346 : vector<16x34xf32>
    %c52 = arith.constant 52 : index
    %348 = memref.load %arg3[%c52] : memref<144xf32, #tpu.memory_space<smem>>
    %349 = vector.broadcast %348 : f32 to vector<16x34xf32>
    %350 = arith.mulf %343, %349 : vector<16x34xf32>
    %351 = arith.addf %333, %350 : vector<16x34xf32>
    %c88 = arith.constant 88 : index
    %352 = memref.load %arg3[%c88] : memref<144xf32, #tpu.memory_space<smem>>
    %353 = vector.broadcast %352 : f32 to vector<16x34xf32>
    %354 = arith.mulf %343, %353 : vector<16x34xf32>
    %355 = arith.addf %337, %354 : vector<16x34xf32>
    %c124 = arith.constant 124 : index
    %356 = memref.load %arg3[%c124] : memref<144xf32, #tpu.memory_space<smem>>
    %357 = vector.broadcast %356 : f32 to vector<16x34xf32>
    %358 = arith.mulf %343, %357 : vector<16x34xf32>
    %359 = arith.addf %341, %358 : vector<16x34xf32>
    %c1_96 = arith.constant 1 : index
    %c2_97 = arith.constant 2 : index
    %c2_98 = arith.constant 2 : index
    %360 = vector.load %arg9[%c1_96, %c2_97, %c2_98] : memref<4x18x36xf32, #tpu.memory_space<vmem>>, vector<1x16x34xf32>
    %361 = vector.shape_cast %360 : vector<1x16x34xf32> to vector<16x34xf32>
    %c17_99 = arith.constant 17 : index
    %362 = memref.load %arg3[%c17_99] : memref<144xf32, #tpu.memory_space<smem>>
    %363 = vector.broadcast %362 : f32 to vector<16x34xf32>
    %364 = arith.mulf %361, %363 : vector<16x34xf32>
    %365 = arith.addf %347, %364 : vector<16x34xf32>
    %c53 = arith.constant 53 : index
    %366 = memref.load %arg3[%c53] : memref<144xf32, #tpu.memory_space<smem>>
    %367 = vector.broadcast %366 : f32 to vector<16x34xf32>
    %368 = arith.mulf %361, %367 : vector<16x34xf32>
    %369 = arith.addf %351, %368 : vector<16x34xf32>
    %c89 = arith.constant 89 : index
    %370 = memref.load %arg3[%c89] : memref<144xf32, #tpu.memory_space<smem>>
    %371 = vector.broadcast %370 : f32 to vector<16x34xf32>
    %372 = arith.mulf %361, %371 : vector<16x34xf32>
    %373 = arith.addf %355, %372 : vector<16x34xf32>
    %c125 = arith.constant 125 : index
    %374 = memref.load %arg3[%c125] : memref<144xf32, #tpu.memory_space<smem>>
    %375 = vector.broadcast %374 : f32 to vector<16x34xf32>
    %376 = arith.mulf %361, %375 : vector<16x34xf32>
    %377 = arith.addf %359, %376 : vector<16x34xf32>
    %c2_100 = arith.constant 2 : index
    %c0_101 = arith.constant 0 : index
    %c0_102 = arith.constant 0 : index
    %378 = vector.load %arg9[%c2_100, %c0_101, %c0_102] : memref<4x18x36xf32, #tpu.memory_space<vmem>>, vector<1x16x34xf32>
    %379 = vector.shape_cast %378 : vector<1x16x34xf32> to vector<16x34xf32>
    %c18_103 = arith.constant 18 : index
    %380 = memref.load %arg3[%c18_103] : memref<144xf32, #tpu.memory_space<smem>>
    %381 = vector.broadcast %380 : f32 to vector<16x34xf32>
    %382 = arith.mulf %379, %381 : vector<16x34xf32>
    %383 = arith.addf %365, %382 : vector<16x34xf32>
    %c54 = arith.constant 54 : index
    %384 = memref.load %arg3[%c54] : memref<144xf32, #tpu.memory_space<smem>>
    %385 = vector.broadcast %384 : f32 to vector<16x34xf32>
    %386 = arith.mulf %379, %385 : vector<16x34xf32>
    %387 = arith.addf %369, %386 : vector<16x34xf32>
    %c90 = arith.constant 90 : index
    %388 = memref.load %arg3[%c90] : memref<144xf32, #tpu.memory_space<smem>>
    %389 = vector.broadcast %388 : f32 to vector<16x34xf32>
    %390 = arith.mulf %379, %389 : vector<16x34xf32>
    %391 = arith.addf %373, %390 : vector<16x34xf32>
    %c126 = arith.constant 126 : index
    %392 = memref.load %arg3[%c126] : memref<144xf32, #tpu.memory_space<smem>>
    %393 = vector.broadcast %392 : f32 to vector<16x34xf32>
    %394 = arith.mulf %379, %393 : vector<16x34xf32>
    %395 = arith.addf %377, %394 : vector<16x34xf32>
    %c2_104 = arith.constant 2 : index
    %c0_105 = arith.constant 0 : index
    %c1_106 = arith.constant 1 : index
    %396 = vector.load %arg9[%c2_104, %c0_105, %c1_106] : memref<4x18x36xf32, #tpu.memory_space<vmem>>, vector<1x16x34xf32>
    %397 = vector.shape_cast %396 : vector<1x16x34xf32> to vector<16x34xf32>
    %c19_107 = arith.constant 19 : index
    %398 = memref.load %arg3[%c19_107] : memref<144xf32, #tpu.memory_space<smem>>
    %399 = vector.broadcast %398 : f32 to vector<16x34xf32>
    %400 = arith.mulf %397, %399 : vector<16x34xf32>
    %401 = arith.addf %383, %400 : vector<16x34xf32>
    %c55 = arith.constant 55 : index
    %402 = memref.load %arg3[%c55] : memref<144xf32, #tpu.memory_space<smem>>
    %403 = vector.broadcast %402 : f32 to vector<16x34xf32>
    %404 = arith.mulf %397, %403 : vector<16x34xf32>
    %405 = arith.addf %387, %404 : vector<16x34xf32>
    %c91 = arith.constant 91 : index
    %406 = memref.load %arg3[%c91] : memref<144xf32, #tpu.memory_space<smem>>
    %407 = vector.broadcast %406 : f32 to vector<16x34xf32>
    %408 = arith.mulf %397, %407 : vector<16x34xf32>
    %409 = arith.addf %391, %408 : vector<16x34xf32>
    %c127 = arith.constant 127 : index
    %410 = memref.load %arg3[%c127] : memref<144xf32, #tpu.memory_space<smem>>
    %411 = vector.broadcast %410 : f32 to vector<16x34xf32>
    %412 = arith.mulf %397, %411 : vector<16x34xf32>
    %413 = arith.addf %395, %412 : vector<16x34xf32>
    %c2_108 = arith.constant 2 : index
    %c0_109 = arith.constant 0 : index
    %c2_110 = arith.constant 2 : index
    %414 = vector.load %arg9[%c2_108, %c0_109, %c2_110] : memref<4x18x36xf32, #tpu.memory_space<vmem>>, vector<1x16x34xf32>
    %415 = vector.shape_cast %414 : vector<1x16x34xf32> to vector<16x34xf32>
    %c20 = arith.constant 20 : index
    %416 = memref.load %arg3[%c20] : memref<144xf32, #tpu.memory_space<smem>>
    %417 = vector.broadcast %416 : f32 to vector<16x34xf32>
    %418 = arith.mulf %415, %417 : vector<16x34xf32>
    %419 = arith.addf %401, %418 : vector<16x34xf32>
    %c56 = arith.constant 56 : index
    %420 = memref.load %arg3[%c56] : memref<144xf32, #tpu.memory_space<smem>>
    %421 = vector.broadcast %420 : f32 to vector<16x34xf32>
    %422 = arith.mulf %415, %421 : vector<16x34xf32>
    %423 = arith.addf %405, %422 : vector<16x34xf32>
    %c92 = arith.constant 92 : index
    %424 = memref.load %arg3[%c92] : memref<144xf32, #tpu.memory_space<smem>>
    %425 = vector.broadcast %424 : f32 to vector<16x34xf32>
    %426 = arith.mulf %415, %425 : vector<16x34xf32>
    %427 = arith.addf %409, %426 : vector<16x34xf32>
    %c128 = arith.constant 128 : index
    %428 = memref.load %arg3[%c128] : memref<144xf32, #tpu.memory_space<smem>>
    %429 = vector.broadcast %428 : f32 to vector<16x34xf32>
    %430 = arith.mulf %415, %429 : vector<16x34xf32>
    %431 = arith.addf %413, %430 : vector<16x34xf32>
    %c2_111 = arith.constant 2 : index
    %c1_112 = arith.constant 1 : index
    %c0_113 = arith.constant 0 : index
    %432 = vector.load %arg9[%c2_111, %c1_112, %c0_113] : memref<4x18x36xf32, #tpu.memory_space<vmem>>, vector<1x16x34xf32>
    %433 = vector.shape_cast %432 : vector<1x16x34xf32> to vector<16x34xf32>
    %c21 = arith.constant 21 : index
    %434 = memref.load %arg3[%c21] : memref<144xf32, #tpu.memory_space<smem>>
    %435 = vector.broadcast %434 : f32 to vector<16x34xf32>
    %436 = arith.mulf %433, %435 : vector<16x34xf32>
    %437 = arith.addf %419, %436 : vector<16x34xf32>
    %c57 = arith.constant 57 : index
    %438 = memref.load %arg3[%c57] : memref<144xf32, #tpu.memory_space<smem>>
    %439 = vector.broadcast %438 : f32 to vector<16x34xf32>
    %440 = arith.mulf %433, %439 : vector<16x34xf32>
    %441 = arith.addf %423, %440 : vector<16x34xf32>
    %c93 = arith.constant 93 : index
    %442 = memref.load %arg3[%c93] : memref<144xf32, #tpu.memory_space<smem>>
    %443 = vector.broadcast %442 : f32 to vector<16x34xf32>
    %444 = arith.mulf %433, %443 : vector<16x34xf32>
    %445 = arith.addf %427, %444 : vector<16x34xf32>
    %c129 = arith.constant 129 : index
    %446 = memref.load %arg3[%c129] : memref<144xf32, #tpu.memory_space<smem>>
    %447 = vector.broadcast %446 : f32 to vector<16x34xf32>
    %448 = arith.mulf %433, %447 : vector<16x34xf32>
    %449 = arith.addf %431, %448 : vector<16x34xf32>
    %c2_114 = arith.constant 2 : index
    %c1_115 = arith.constant 1 : index
    %c1_116 = arith.constant 1 : index
    %450 = vector.load %arg9[%c2_114, %c1_115, %c1_116] : memref<4x18x36xf32, #tpu.memory_space<vmem>>, vector<1x16x34xf32>
    %451 = vector.shape_cast %450 : vector<1x16x34xf32> to vector<16x34xf32>
    %c22 = arith.constant 22 : index
    %452 = memref.load %arg3[%c22] : memref<144xf32, #tpu.memory_space<smem>>
    %453 = vector.broadcast %452 : f32 to vector<16x34xf32>
    %454 = arith.mulf %451, %453 : vector<16x34xf32>
    %455 = arith.addf %437, %454 : vector<16x34xf32>
    %c2_117 = arith.constant 2 : index
    %456 = memref.load %arg1[%c2_117] : memref<16xf32, #tpu.memory_space<smem>>
    %457 = vector.broadcast %456 : f32 to vector<16x34xf32>
    %458 = arith.mulf %451, %457 : vector<16x34xf32>
    %459 = arith.addf %281, %458 : vector<16x34xf32>
    %c58 = arith.constant 58 : index
    %460 = memref.load %arg3[%c58] : memref<144xf32, #tpu.memory_space<smem>>
    %461 = vector.broadcast %460 : f32 to vector<16x34xf32>
    %462 = arith.mulf %451, %461 : vector<16x34xf32>
    %463 = arith.addf %441, %462 : vector<16x34xf32>
    %c6_118 = arith.constant 6 : index
    %464 = memref.load %arg1[%c6_118] : memref<16xf32, #tpu.memory_space<smem>>
    %465 = vector.broadcast %464 : f32 to vector<16x34xf32>
    %466 = arith.mulf %451, %465 : vector<16x34xf32>
    %467 = arith.addf %289, %466 : vector<16x34xf32>
    %c94 = arith.constant 94 : index
    %468 = memref.load %arg3[%c94] : memref<144xf32, #tpu.memory_space<smem>>
    %469 = vector.broadcast %468 : f32 to vector<16x34xf32>
    %470 = arith.mulf %451, %469 : vector<16x34xf32>
    %471 = arith.addf %445, %470 : vector<16x34xf32>
    %c10_119 = arith.constant 10 : index
    %472 = memref.load %arg1[%c10_119] : memref<16xf32, #tpu.memory_space<smem>>
    %473 = vector.broadcast %472 : f32 to vector<16x34xf32>
    %474 = arith.mulf %451, %473 : vector<16x34xf32>
    %475 = arith.addf %297, %474 : vector<16x34xf32>
    %c130 = arith.constant 130 : index
    %476 = memref.load %arg3[%c130] : memref<144xf32, #tpu.memory_space<smem>>
    %477 = vector.broadcast %476 : f32 to vector<16x34xf32>
    %478 = arith.mulf %451, %477 : vector<16x34xf32>
    %479 = arith.addf %449, %478 : vector<16x34xf32>
    %c14_120 = arith.constant 14 : index
    %480 = memref.load %arg1[%c14_120] : memref<16xf32, #tpu.memory_space<smem>>
    %481 = vector.broadcast %480 : f32 to vector<16x34xf32>
    %482 = arith.mulf %451, %481 : vector<16x34xf32>
    %483 = arith.addf %305, %482 : vector<16x34xf32>
    %c2_121 = arith.constant 2 : index
    %c1_122 = arith.constant 1 : index
    %c2_123 = arith.constant 2 : index
    %484 = vector.load %arg9[%c2_121, %c1_122, %c2_123] : memref<4x18x36xf32, #tpu.memory_space<vmem>>, vector<1x16x34xf32>
    %485 = vector.shape_cast %484 : vector<1x16x34xf32> to vector<16x34xf32>
    %c23 = arith.constant 23 : index
    %486 = memref.load %arg3[%c23] : memref<144xf32, #tpu.memory_space<smem>>
    %487 = vector.broadcast %486 : f32 to vector<16x34xf32>
    %488 = arith.mulf %485, %487 : vector<16x34xf32>
    %489 = arith.addf %455, %488 : vector<16x34xf32>
    %c59 = arith.constant 59 : index
    %490 = memref.load %arg3[%c59] : memref<144xf32, #tpu.memory_space<smem>>
    %491 = vector.broadcast %490 : f32 to vector<16x34xf32>
    %492 = arith.mulf %485, %491 : vector<16x34xf32>
    %493 = arith.addf %463, %492 : vector<16x34xf32>
    %c95 = arith.constant 95 : index
    %494 = memref.load %arg3[%c95] : memref<144xf32, #tpu.memory_space<smem>>
    %495 = vector.broadcast %494 : f32 to vector<16x34xf32>
    %496 = arith.mulf %485, %495 : vector<16x34xf32>
    %497 = arith.addf %471, %496 : vector<16x34xf32>
    %c131 = arith.constant 131 : index
    %498 = memref.load %arg3[%c131] : memref<144xf32, #tpu.memory_space<smem>>
    %499 = vector.broadcast %498 : f32 to vector<16x34xf32>
    %500 = arith.mulf %485, %499 : vector<16x34xf32>
    %501 = arith.addf %479, %500 : vector<16x34xf32>
    %c2_124 = arith.constant 2 : index
    %c2_125 = arith.constant 2 : index
    %c0_126 = arith.constant 0 : index
    %502 = vector.load %arg9[%c2_124, %c2_125, %c0_126] : memref<4x18x36xf32, #tpu.memory_space<vmem>>, vector<1x16x34xf32>
    %503 = vector.shape_cast %502 : vector<1x16x34xf32> to vector<16x34xf32>
    %c24 = arith.constant 24 : index
    %504 = memref.load %arg3[%c24] : memref<144xf32, #tpu.memory_space<smem>>
    %505 = vector.broadcast %504 : f32 to vector<16x34xf32>
    %506 = arith.mulf %503, %505 : vector<16x34xf32>
    %507 = arith.addf %489, %506 : vector<16x34xf32>
    %c60 = arith.constant 60 : index
    %508 = memref.load %arg3[%c60] : memref<144xf32, #tpu.memory_space<smem>>
    %509 = vector.broadcast %508 : f32 to vector<16x34xf32>
    %510 = arith.mulf %503, %509 : vector<16x34xf32>
    %511 = arith.addf %493, %510 : vector<16x34xf32>
    %c96 = arith.constant 96 : index
    %512 = memref.load %arg3[%c96] : memref<144xf32, #tpu.memory_space<smem>>
    %513 = vector.broadcast %512 : f32 to vector<16x34xf32>
    %514 = arith.mulf %503, %513 : vector<16x34xf32>
    %515 = arith.addf %497, %514 : vector<16x34xf32>
    %c132 = arith.constant 132 : index
    %516 = memref.load %arg3[%c132] : memref<144xf32, #tpu.memory_space<smem>>
    %517 = vector.broadcast %516 : f32 to vector<16x34xf32>
    %518 = arith.mulf %503, %517 : vector<16x34xf32>
    %519 = arith.addf %501, %518 : vector<16x34xf32>
    %c2_127 = arith.constant 2 : index
    %c2_128 = arith.constant 2 : index
    %c1_129 = arith.constant 1 : index
    %520 = vector.load %arg9[%c2_127, %c2_128, %c1_129] : memref<4x18x36xf32, #tpu.memory_space<vmem>>, vector<1x16x34xf32>
    %521 = vector.shape_cast %520 : vector<1x16x34xf32> to vector<16x34xf32>
    %c25 = arith.constant 25 : index
    %522 = memref.load %arg3[%c25] : memref<144xf32, #tpu.memory_space<smem>>
    %523 = vector.broadcast %522 : f32 to vector<16x34xf32>
    %524 = arith.mulf %521, %523 : vector<16x34xf32>
    %525 = arith.addf %507, %524 : vector<16x34xf32>
    %c61 = arith.constant 61 : index
    %526 = memref.load %arg3[%c61] : memref<144xf32, #tpu.memory_space<smem>>
    %527 = vector.broadcast %526 : f32 to vector<16x34xf32>
    %528 = arith.mulf %521, %527 : vector<16x34xf32>
    %529 = arith.addf %511, %528 : vector<16x34xf32>
    %c97 = arith.constant 97 : index
    %530 = memref.load %arg3[%c97] : memref<144xf32, #tpu.memory_space<smem>>
    %531 = vector.broadcast %530 : f32 to vector<16x34xf32>
    %532 = arith.mulf %521, %531 : vector<16x34xf32>
    %533 = arith.addf %515, %532 : vector<16x34xf32>
    %c133 = arith.constant 133 : index
    %534 = memref.load %arg3[%c133] : memref<144xf32, #tpu.memory_space<smem>>
    %535 = vector.broadcast %534 : f32 to vector<16x34xf32>
    %536 = arith.mulf %521, %535 : vector<16x34xf32>
    %537 = arith.addf %519, %536 : vector<16x34xf32>
    %c2_130 = arith.constant 2 : index
    %c2_131 = arith.constant 2 : index
    %c2_132 = arith.constant 2 : index
    %538 = vector.load %arg9[%c2_130, %c2_131, %c2_132] : memref<4x18x36xf32, #tpu.memory_space<vmem>>, vector<1x16x34xf32>
    %539 = vector.shape_cast %538 : vector<1x16x34xf32> to vector<16x34xf32>
    %c26 = arith.constant 26 : index
    %540 = memref.load %arg3[%c26] : memref<144xf32, #tpu.memory_space<smem>>
    %541 = vector.broadcast %540 : f32 to vector<16x34xf32>
    %542 = arith.mulf %539, %541 : vector<16x34xf32>
    %543 = arith.addf %525, %542 : vector<16x34xf32>
    %c62 = arith.constant 62 : index
    %544 = memref.load %arg3[%c62] : memref<144xf32, #tpu.memory_space<smem>>
    %545 = vector.broadcast %544 : f32 to vector<16x34xf32>
    %546 = arith.mulf %539, %545 : vector<16x34xf32>
    %547 = arith.addf %529, %546 : vector<16x34xf32>
    %c98 = arith.constant 98 : index
    %548 = memref.load %arg3[%c98] : memref<144xf32, #tpu.memory_space<smem>>
    %549 = vector.broadcast %548 : f32 to vector<16x34xf32>
    %550 = arith.mulf %539, %549 : vector<16x34xf32>
    %551 = arith.addf %533, %550 : vector<16x34xf32>
    %c134 = arith.constant 134 : index
    %552 = memref.load %arg3[%c134] : memref<144xf32, #tpu.memory_space<smem>>
    %553 = vector.broadcast %552 : f32 to vector<16x34xf32>
    %554 = arith.mulf %539, %553 : vector<16x34xf32>
    %555 = arith.addf %537, %554 : vector<16x34xf32>
    %c3_133 = arith.constant 3 : index
    %c0_134 = arith.constant 0 : index
    %c0_135 = arith.constant 0 : index
    %556 = vector.load %arg9[%c3_133, %c0_134, %c0_135] : memref<4x18x36xf32, #tpu.memory_space<vmem>>, vector<1x16x34xf32>
    %557 = vector.shape_cast %556 : vector<1x16x34xf32> to vector<16x34xf32>
    %c27 = arith.constant 27 : index
    %558 = memref.load %arg3[%c27] : memref<144xf32, #tpu.memory_space<smem>>
    %559 = vector.broadcast %558 : f32 to vector<16x34xf32>
    %560 = arith.mulf %557, %559 : vector<16x34xf32>
    %561 = arith.addf %543, %560 : vector<16x34xf32>
    %c63 = arith.constant 63 : index
    %562 = memref.load %arg3[%c63] : memref<144xf32, #tpu.memory_space<smem>>
    %563 = vector.broadcast %562 : f32 to vector<16x34xf32>
    %564 = arith.mulf %557, %563 : vector<16x34xf32>
    %565 = arith.addf %547, %564 : vector<16x34xf32>
    %c99 = arith.constant 99 : index
    %566 = memref.load %arg3[%c99] : memref<144xf32, #tpu.memory_space<smem>>
    %567 = vector.broadcast %566 : f32 to vector<16x34xf32>
    %568 = arith.mulf %557, %567 : vector<16x34xf32>
    %569 = arith.addf %551, %568 : vector<16x34xf32>
    %c135 = arith.constant 135 : index
    %570 = memref.load %arg3[%c135] : memref<144xf32, #tpu.memory_space<smem>>
    %571 = vector.broadcast %570 : f32 to vector<16x34xf32>
    %572 = arith.mulf %557, %571 : vector<16x34xf32>
    %573 = arith.addf %555, %572 : vector<16x34xf32>
    %c3_136 = arith.constant 3 : index
    %c0_137 = arith.constant 0 : index
    %c1_138 = arith.constant 1 : index
    %574 = vector.load %arg9[%c3_136, %c0_137, %c1_138] : memref<4x18x36xf32, #tpu.memory_space<vmem>>, vector<1x16x34xf32>
    %575 = vector.shape_cast %574 : vector<1x16x34xf32> to vector<16x34xf32>
    %c28 = arith.constant 28 : index
    %576 = memref.load %arg3[%c28] : memref<144xf32, #tpu.memory_space<smem>>
    %577 = vector.broadcast %576 : f32 to vector<16x34xf32>
    %578 = arith.mulf %575, %577 : vector<16x34xf32>
    %579 = arith.addf %561, %578 : vector<16x34xf32>
    %c64 = arith.constant 64 : index
    %580 = memref.load %arg3[%c64] : memref<144xf32, #tpu.memory_space<smem>>
    %581 = vector.broadcast %580 : f32 to vector<16x34xf32>
    %582 = arith.mulf %575, %581 : vector<16x34xf32>
    %583 = arith.addf %565, %582 : vector<16x34xf32>
    %c100 = arith.constant 100 : index
    %584 = memref.load %arg3[%c100] : memref<144xf32, #tpu.memory_space<smem>>
    %585 = vector.broadcast %584 : f32 to vector<16x34xf32>
    %586 = arith.mulf %575, %585 : vector<16x34xf32>
    %587 = arith.addf %569, %586 : vector<16x34xf32>
    %c136 = arith.constant 136 : index
    %588 = memref.load %arg3[%c136] : memref<144xf32, #tpu.memory_space<smem>>
    %589 = vector.broadcast %588 : f32 to vector<16x34xf32>
    %590 = arith.mulf %575, %589 : vector<16x34xf32>
    %591 = arith.addf %573, %590 : vector<16x34xf32>
    %c3_139 = arith.constant 3 : index
    %c0_140 = arith.constant 0 : index
    %c2_141 = arith.constant 2 : index
    %592 = vector.load %arg9[%c3_139, %c0_140, %c2_141] : memref<4x18x36xf32, #tpu.memory_space<vmem>>, vector<1x16x34xf32>
    %593 = vector.shape_cast %592 : vector<1x16x34xf32> to vector<16x34xf32>
    %c29 = arith.constant 29 : index
    %594 = memref.load %arg3[%c29] : memref<144xf32, #tpu.memory_space<smem>>
    %595 = vector.broadcast %594 : f32 to vector<16x34xf32>
    %596 = arith.mulf %593, %595 : vector<16x34xf32>
    %597 = arith.addf %579, %596 : vector<16x34xf32>
    %c65 = arith.constant 65 : index
    %598 = memref.load %arg3[%c65] : memref<144xf32, #tpu.memory_space<smem>>
    %599 = vector.broadcast %598 : f32 to vector<16x34xf32>
    %600 = arith.mulf %593, %599 : vector<16x34xf32>
    %601 = arith.addf %583, %600 : vector<16x34xf32>
    %c101 = arith.constant 101 : index
    %602 = memref.load %arg3[%c101] : memref<144xf32, #tpu.memory_space<smem>>
    %603 = vector.broadcast %602 : f32 to vector<16x34xf32>
    %604 = arith.mulf %593, %603 : vector<16x34xf32>
    %605 = arith.addf %587, %604 : vector<16x34xf32>
    %c137 = arith.constant 137 : index
    %606 = memref.load %arg3[%c137] : memref<144xf32, #tpu.memory_space<smem>>
    %607 = vector.broadcast %606 : f32 to vector<16x34xf32>
    %608 = arith.mulf %593, %607 : vector<16x34xf32>
    %609 = arith.addf %591, %608 : vector<16x34xf32>
    %c3_142 = arith.constant 3 : index
    %c1_143 = arith.constant 1 : index
    %c0_144 = arith.constant 0 : index
    %610 = vector.load %arg9[%c3_142, %c1_143, %c0_144] : memref<4x18x36xf32, #tpu.memory_space<vmem>>, vector<1x16x34xf32>
    %611 = vector.shape_cast %610 : vector<1x16x34xf32> to vector<16x34xf32>
    %c30 = arith.constant 30 : index
    %612 = memref.load %arg3[%c30] : memref<144xf32, #tpu.memory_space<smem>>
    %613 = vector.broadcast %612 : f32 to vector<16x34xf32>
    %614 = arith.mulf %611, %613 : vector<16x34xf32>
    %615 = arith.addf %597, %614 : vector<16x34xf32>
    %c66 = arith.constant 66 : index
    %616 = memref.load %arg3[%c66] : memref<144xf32, #tpu.memory_space<smem>>
    %617 = vector.broadcast %616 : f32 to vector<16x34xf32>
    %618 = arith.mulf %611, %617 : vector<16x34xf32>
    %619 = arith.addf %601, %618 : vector<16x34xf32>
    %c102 = arith.constant 102 : index
    %620 = memref.load %arg3[%c102] : memref<144xf32, #tpu.memory_space<smem>>
    %621 = vector.broadcast %620 : f32 to vector<16x34xf32>
    %622 = arith.mulf %611, %621 : vector<16x34xf32>
    %623 = arith.addf %605, %622 : vector<16x34xf32>
    %c138 = arith.constant 138 : index
    %624 = memref.load %arg3[%c138] : memref<144xf32, #tpu.memory_space<smem>>
    %625 = vector.broadcast %624 : f32 to vector<16x34xf32>
    %626 = arith.mulf %611, %625 : vector<16x34xf32>
    %627 = arith.addf %609, %626 : vector<16x34xf32>
    %c3_145 = arith.constant 3 : index
    %c1_146 = arith.constant 1 : index
    %c1_147 = arith.constant 1 : index
    %628 = vector.load %arg9[%c3_145, %c1_146, %c1_147] : memref<4x18x36xf32, #tpu.memory_space<vmem>>, vector<1x16x34xf32>
    %629 = vector.shape_cast %628 : vector<1x16x34xf32> to vector<16x34xf32>
    %c31 = arith.constant 31 : index
    %630 = memref.load %arg3[%c31] : memref<144xf32, #tpu.memory_space<smem>>
    %631 = vector.broadcast %630 : f32 to vector<16x34xf32>
    %632 = arith.mulf %629, %631 : vector<16x34xf32>
    %633 = arith.addf %615, %632 : vector<16x34xf32>
    %c3_148 = arith.constant 3 : index
    %634 = memref.load %arg1[%c3_148] : memref<16xf32, #tpu.memory_space<smem>>
    %635 = vector.broadcast %634 : f32 to vector<16x34xf32>
    %636 = arith.mulf %629, %635 : vector<16x34xf32>
    %637 = arith.addf %459, %636 : vector<16x34xf32>
    %c67 = arith.constant 67 : index
    %638 = memref.load %arg3[%c67] : memref<144xf32, #tpu.memory_space<smem>>
    %639 = vector.broadcast %638 : f32 to vector<16x34xf32>
    %640 = arith.mulf %629, %639 : vector<16x34xf32>
    %641 = arith.addf %619, %640 : vector<16x34xf32>
    %c7_149 = arith.constant 7 : index
    %642 = memref.load %arg1[%c7_149] : memref<16xf32, #tpu.memory_space<smem>>
    %643 = vector.broadcast %642 : f32 to vector<16x34xf32>
    %644 = arith.mulf %629, %643 : vector<16x34xf32>
    %645 = arith.addf %467, %644 : vector<16x34xf32>
    %c103 = arith.constant 103 : index
    %646 = memref.load %arg3[%c103] : memref<144xf32, #tpu.memory_space<smem>>
    %647 = vector.broadcast %646 : f32 to vector<16x34xf32>
    %648 = arith.mulf %629, %647 : vector<16x34xf32>
    %649 = arith.addf %623, %648 : vector<16x34xf32>
    %c11_150 = arith.constant 11 : index
    %650 = memref.load %arg1[%c11_150] : memref<16xf32, #tpu.memory_space<smem>>
    %651 = vector.broadcast %650 : f32 to vector<16x34xf32>
    %652 = arith.mulf %629, %651 : vector<16x34xf32>
    %653 = arith.addf %475, %652 : vector<16x34xf32>
    %c139 = arith.constant 139 : index
    %654 = memref.load %arg3[%c139] : memref<144xf32, #tpu.memory_space<smem>>
    %655 = vector.broadcast %654 : f32 to vector<16x34xf32>
    %656 = arith.mulf %629, %655 : vector<16x34xf32>
    %657 = arith.addf %627, %656 : vector<16x34xf32>
    %c15_151 = arith.constant 15 : index
    %658 = memref.load %arg1[%c15_151] : memref<16xf32, #tpu.memory_space<smem>>
    %659 = vector.broadcast %658 : f32 to vector<16x34xf32>
    %660 = arith.mulf %629, %659 : vector<16x34xf32>
    %661 = arith.addf %483, %660 : vector<16x34xf32>
    %c3_152 = arith.constant 3 : index
    %c1_153 = arith.constant 1 : index
    %c2_154 = arith.constant 2 : index
    %662 = vector.load %arg9[%c3_152, %c1_153, %c2_154] : memref<4x18x36xf32, #tpu.memory_space<vmem>>, vector<1x16x34xf32>
    %663 = vector.shape_cast %662 : vector<1x16x34xf32> to vector<16x34xf32>
    %c32 = arith.constant 32 : index
    %664 = memref.load %arg3[%c32] : memref<144xf32, #tpu.memory_space<smem>>
    %665 = vector.broadcast %664 : f32 to vector<16x34xf32>
    %666 = arith.mulf %663, %665 : vector<16x34xf32>
    %667 = arith.addf %633, %666 : vector<16x34xf32>
    %c68 = arith.constant 68 : index
    %668 = memref.load %arg3[%c68] : memref<144xf32, #tpu.memory_space<smem>>
    %669 = vector.broadcast %668 : f32 to vector<16x34xf32>
    %670 = arith.mulf %663, %669 : vector<16x34xf32>
    %671 = arith.addf %641, %670 : vector<16x34xf32>
    %c104 = arith.constant 104 : index
    %672 = memref.load %arg3[%c104] : memref<144xf32, #tpu.memory_space<smem>>
    %673 = vector.broadcast %672 : f32 to vector<16x34xf32>
    %674 = arith.mulf %663, %673 : vector<16x34xf32>
    %675 = arith.addf %649, %674 : vector<16x34xf32>
    %c140 = arith.constant 140 : index
    %676 = memref.load %arg3[%c140] : memref<144xf32, #tpu.memory_space<smem>>
    %677 = vector.broadcast %676 : f32 to vector<16x34xf32>
    %678 = arith.mulf %663, %677 : vector<16x34xf32>
    %679 = arith.addf %657, %678 : vector<16x34xf32>
    %c3_155 = arith.constant 3 : index
    %c2_156 = arith.constant 2 : index
    %c0_157 = arith.constant 0 : index
    %680 = vector.load %arg9[%c3_155, %c2_156, %c0_157] : memref<4x18x36xf32, #tpu.memory_space<vmem>>, vector<1x16x34xf32>
    %681 = vector.shape_cast %680 : vector<1x16x34xf32> to vector<16x34xf32>
    %c33 = arith.constant 33 : index
    %682 = memref.load %arg3[%c33] : memref<144xf32, #tpu.memory_space<smem>>
    %683 = vector.broadcast %682 : f32 to vector<16x34xf32>
    %684 = arith.mulf %681, %683 : vector<16x34xf32>
    %685 = arith.addf %667, %684 : vector<16x34xf32>
    %c69 = arith.constant 69 : index
    %686 = memref.load %arg3[%c69] : memref<144xf32, #tpu.memory_space<smem>>
    %687 = vector.broadcast %686 : f32 to vector<16x34xf32>
    %688 = arith.mulf %681, %687 : vector<16x34xf32>
    %689 = arith.addf %671, %688 : vector<16x34xf32>
    %c105 = arith.constant 105 : index
    %690 = memref.load %arg3[%c105] : memref<144xf32, #tpu.memory_space<smem>>
    %691 = vector.broadcast %690 : f32 to vector<16x34xf32>
    %692 = arith.mulf %681, %691 : vector<16x34xf32>
    %693 = arith.addf %675, %692 : vector<16x34xf32>
    %c141 = arith.constant 141 : index
    %694 = memref.load %arg3[%c141] : memref<144xf32, #tpu.memory_space<smem>>
    %695 = vector.broadcast %694 : f32 to vector<16x34xf32>
    %696 = arith.mulf %681, %695 : vector<16x34xf32>
    %697 = arith.addf %679, %696 : vector<16x34xf32>
    %c3_158 = arith.constant 3 : index
    %c2_159 = arith.constant 2 : index
    %c1_160 = arith.constant 1 : index
    %698 = vector.load %arg9[%c3_158, %c2_159, %c1_160] : memref<4x18x36xf32, #tpu.memory_space<vmem>>, vector<1x16x34xf32>
    %699 = vector.shape_cast %698 : vector<1x16x34xf32> to vector<16x34xf32>
    %c34 = arith.constant 34 : index
    %700 = memref.load %arg3[%c34] : memref<144xf32, #tpu.memory_space<smem>>
    %701 = vector.broadcast %700 : f32 to vector<16x34xf32>
    %702 = arith.mulf %699, %701 : vector<16x34xf32>
    %703 = arith.addf %685, %702 : vector<16x34xf32>
    %c70 = arith.constant 70 : index
    %704 = memref.load %arg3[%c70] : memref<144xf32, #tpu.memory_space<smem>>
    %705 = vector.broadcast %704 : f32 to vector<16x34xf32>
    %706 = arith.mulf %699, %705 : vector<16x34xf32>
    %707 = arith.addf %689, %706 : vector<16x34xf32>
    %c106 = arith.constant 106 : index
    %708 = memref.load %arg3[%c106] : memref<144xf32, #tpu.memory_space<smem>>
    %709 = vector.broadcast %708 : f32 to vector<16x34xf32>
    %710 = arith.mulf %699, %709 : vector<16x34xf32>
    %711 = arith.addf %693, %710 : vector<16x34xf32>
    %c142 = arith.constant 142 : index
    %712 = memref.load %arg3[%c142] : memref<144xf32, #tpu.memory_space<smem>>
    %713 = vector.broadcast %712 : f32 to vector<16x34xf32>
    %714 = arith.mulf %699, %713 : vector<16x34xf32>
    %715 = arith.addf %697, %714 : vector<16x34xf32>
    %c3_161 = arith.constant 3 : index
    %c2_162 = arith.constant 2 : index
    %c2_163 = arith.constant 2 : index
    %716 = vector.load %arg9[%c3_161, %c2_162, %c2_163] : memref<4x18x36xf32, #tpu.memory_space<vmem>>, vector<1x16x34xf32>
    %717 = vector.shape_cast %716 : vector<1x16x34xf32> to vector<16x34xf32>
    %c35_164 = arith.constant 35 : index
    %718 = memref.load %arg3[%c35_164] : memref<144xf32, #tpu.memory_space<smem>>
    %719 = vector.broadcast %718 : f32 to vector<16x34xf32>
    %720 = arith.mulf %717, %719 : vector<16x34xf32>
    %721 = arith.addf %703, %720 : vector<16x34xf32>
    %c71 = arith.constant 71 : index
    %722 = memref.load %arg3[%c71] : memref<144xf32, #tpu.memory_space<smem>>
    %723 = vector.broadcast %722 : f32 to vector<16x34xf32>
    %724 = arith.mulf %717, %723 : vector<16x34xf32>
    %725 = arith.addf %707, %724 : vector<16x34xf32>
    %c107 = arith.constant 107 : index
    %726 = memref.load %arg3[%c107] : memref<144xf32, #tpu.memory_space<smem>>
    %727 = vector.broadcast %726 : f32 to vector<16x34xf32>
    %728 = arith.mulf %717, %727 : vector<16x34xf32>
    %729 = arith.addf %711, %728 : vector<16x34xf32>
    %c143 = arith.constant 143 : index
    %730 = memref.load %arg3[%c143] : memref<144xf32, #tpu.memory_space<smem>>
    %731 = vector.broadcast %730 : f32 to vector<16x34xf32>
    %732 = arith.mulf %717, %731 : vector<16x34xf32>
    %733 = arith.addf %715, %732 : vector<16x34xf32>
    %c0_165 = arith.constant 0 : index
    %734 = memref.load %arg2[%c0_165] : memref<4xf32, #tpu.memory_space<smem>>
    %735 = vector.broadcast %734 : f32 to vector<16x34xf32>
    %736 = arith.addf %637, %735 : vector<16x34xf32>
    %cst_166 = arith.constant 0.000000e+00 : f32
    %737 = vector.broadcast %cst_166 : f32 to vector<16x34xf32>
    %738 = arith.subf %737, %736 : vector<16x34xf32>
    %739 = math.exp %738 : vector<16x34xf32>
    %cst_167 = arith.constant 1.000000e+00 : f32
    %740 = vector.broadcast %cst_167 : f32 to vector<16x34xf32>
    %741 = arith.addf %740, %739 : vector<16x34xf32>
    %742 = tpu.reciprocal %741 {approx = true} : vector<16x34xf32> -> vector<16x34xf32>
    %743 = arith.mulf %741, %742 : vector<16x34xf32>
    %cst_168 = arith.constant 2.000000e+00 : f32
    %744 = vector.broadcast %cst_168 : f32 to vector<16x34xf32>
    %745 = arith.subf %744, %743 : vector<16x34xf32>
    %746 = arith.mulf %742, %745 : vector<16x34xf32>
    %c0_169 = arith.constant 0 : index
    %747 = memref.load %arg4[%c0_169] : memref<4xf32, #tpu.memory_space<smem>>
    %748 = vector.broadcast %747 : f32 to vector<16x34xf32>
    %749 = arith.addf %721, %748 : vector<16x34xf32>
    %750 = arith.mulf %746, %749 : vector<16x34xf32>
    %c0_170 = arith.constant 0 : index
    %c1_171 = arith.constant 1 : index
    %c1_172 = arith.constant 1 : index
    %751 = vector.load %arg10[%c0_170, %c1_171, %c1_172] : memref<4x18x36xf32, #tpu.memory_space<vmem>>, vector<1x16x34xf32>
    %752 = vector.shape_cast %751 : vector<1x16x34xf32> to vector<16x34xf32>
    %753 = vector.shape_cast %750 : vector<16x34xf32> to vector<1x16x34xf32>
    tpu.vector_store %arg10[%c0_170, %c1_171, %c1_172], %753 {strides = array<i32>} : memref<4x18x36xf32, #tpu.memory_space<vmem>>, vector<1x16x34xf32>,
    %c1_173 = arith.constant 1 : index
    %754 = memref.load %arg2[%c1_173] : memref<4xf32, #tpu.memory_space<smem>>
    %755 = vector.broadcast %754 : f32 to vector<16x34xf32>
    %756 = arith.addf %645, %755 : vector<16x34xf32>
    %cst_174 = arith.constant 0.000000e+00 : f32
    %757 = vector.broadcast %cst_174 : f32 to vector<16x34xf32>
    %758 = arith.subf %757, %756 : vector<16x34xf32>
    %759 = math.exp %758 : vector<16x34xf32>
    %cst_175 = arith.constant 1.000000e+00 : f32
    %760 = vector.broadcast %cst_175 : f32 to vector<16x34xf32>
    %761 = arith.addf %760, %759 : vector<16x34xf32>
    %762 = tpu.reciprocal %761 {approx = true} : vector<16x34xf32> -> vector<16x34xf32>
    %763 = arith.mulf %761, %762 : vector<16x34xf32>
    %cst_176 = arith.constant 2.000000e+00 : f32
    %764 = vector.broadcast %cst_176 : f32 to vector<16x34xf32>
    %765 = arith.subf %764, %763 : vector<16x34xf32>
    %766 = arith.mulf %762, %765 : vector<16x34xf32>
    %c1_177 = arith.constant 1 : index
    %767 = memref.load %arg4[%c1_177] : memref<4xf32, #tpu.memory_space<smem>>
    %768 = vector.broadcast %767 : f32 to vector<16x34xf32>
    %769 = arith.addf %725, %768 : vector<16x34xf32>
    %770 = arith.mulf %766, %769 : vector<16x34xf32>
    %c1_178 = arith.constant 1 : index
    %c1_179 = arith.constant 1 : index
    %c1_180 = arith.constant 1 : index
    %771 = vector.load %arg10[%c1_178, %c1_179, %c1_180] : memref<4x18x36xf32, #tpu.memory_space<vmem>>, vector<1x16x34xf32>
    %772 = vector.shape_cast %771 : vector<1x16x34xf32> to vector<16x34xf32>
    %773 = vector.shape_cast %770 : vector<16x34xf32> to vector<1x16x34xf32>
    tpu.vector_store %arg10[%c1_178, %c1_179, %c1_180], %773 {strides = array<i32>} : memref<4x18x36xf32, #tpu.memory_space<vmem>>, vector<1x16x34xf32>,
    %c2_181 = arith.constant 2 : index
    %774 = memref.load %arg2[%c2_181] : memref<4xf32, #tpu.memory_space<smem>>
    %775 = vector.broadcast %774 : f32 to vector<16x34xf32>
    %776 = arith.addf %653, %775 : vector<16x34xf32>
    %cst_182 = arith.constant 0.000000e+00 : f32
    %777 = vector.broadcast %cst_182 : f32 to vector<16x34xf32>
    %778 = arith.subf %777, %776 : vector<16x34xf32>
    %779 = math.exp %778 : vector<16x34xf32>
    %cst_183 = arith.constant 1.000000e+00 : f32
    %780 = vector.broadcast %cst_183 : f32 to vector<16x34xf32>
    %781 = arith.addf %780, %779 : vector<16x34xf32>
    %782 = tpu.reciprocal %781 {approx = true} : vector<16x34xf32> -> vector<16x34xf32>
    %783 = arith.mulf %781, %782 : vector<16x34xf32>
    %cst_184 = arith.constant 2.000000e+00 : f32
    %784 = vector.broadcast %cst_184 : f32 to vector<16x34xf32>
    %785 = arith.subf %784, %783 : vector<16x34xf32>
    %786 = arith.mulf %782, %785 : vector<16x34xf32>
    %c2_185 = arith.constant 2 : index
    %787 = memref.load %arg4[%c2_185] : memref<4xf32, #tpu.memory_space<smem>>
    %788 = vector.broadcast %787 : f32 to vector<16x34xf32>
    %789 = arith.addf %729, %788 : vector<16x34xf32>
    %790 = arith.mulf %786, %789 : vector<16x34xf32>
    %c2_186 = arith.constant 2 : index
    %c1_187 = arith.constant 1 : index
    %c1_188 = arith.constant 1 : index
    %791 = vector.load %arg10[%c2_186, %c1_187, %c1_188] : memref<4x18x36xf32, #tpu.memory_space<vmem>>, vector<1x16x34xf32>
    %792 = vector.shape_cast %791 : vector<1x16x34xf32> to vector<16x34xf32>
    %793 = vector.shape_cast %790 : vector<16x34xf32> to vector<1x16x34xf32>
    tpu.vector_store %arg10[%c2_186, %c1_187, %c1_188], %793 {strides = array<i32>} : memref<4x18x36xf32, #tpu.memory_space<vmem>>, vector<1x16x34xf32>,
    %c3_189 = arith.constant 3 : index
    %794 = memref.load %arg2[%c3_189] : memref<4xf32, #tpu.memory_space<smem>>
    %795 = vector.broadcast %794 : f32 to vector<16x34xf32>
    %796 = arith.addf %661, %795 : vector<16x34xf32>
    %cst_190 = arith.constant 0.000000e+00 : f32
    %797 = vector.broadcast %cst_190 : f32 to vector<16x34xf32>
    %798 = arith.subf %797, %796 : vector<16x34xf32>
    %799 = math.exp %798 : vector<16x34xf32>
    %cst_191 = arith.constant 1.000000e+00 : f32
    %800 = vector.broadcast %cst_191 : f32 to vector<16x34xf32>
    %801 = arith.addf %800, %799 : vector<16x34xf32>
    %802 = tpu.reciprocal %801 {approx = true} : vector<16x34xf32> -> vector<16x34xf32>
    %803 = arith.mulf %801, %802 : vector<16x34xf32>
    %cst_192 = arith.constant 2.000000e+00 : f32
    %804 = vector.broadcast %cst_192 : f32 to vector<16x34xf32>
    %805 = arith.subf %804, %803 : vector<16x34xf32>
    %806 = arith.mulf %802, %805 : vector<16x34xf32>
    %c3_193 = arith.constant 3 : index
    %807 = memref.load %arg4[%c3_193] : memref<4xf32, #tpu.memory_space<smem>>
    %808 = vector.broadcast %807 : f32 to vector<16x34xf32>
    %809 = arith.addf %733, %808 : vector<16x34xf32>
    %810 = arith.mulf %806, %809 : vector<16x34xf32>
    %c3_194 = arith.constant 3 : index
    %c1_195 = arith.constant 1 : index
    %c1_196 = arith.constant 1 : index
    %811 = vector.load %arg10[%c3_194, %c1_195, %c1_196] : memref<4x18x36xf32, #tpu.memory_space<vmem>>, vector<1x16x34xf32>
    %812 = vector.shape_cast %811 : vector<1x16x34xf32> to vector<16x34xf32>
    %813 = vector.shape_cast %810 : vector<16x34xf32> to vector<1x16x34xf32>
    tpu.vector_store %arg10[%c3_194, %c1_195, %c1_196], %813 {strides = array<i32>} : memref<4x18x36xf32, #tpu.memory_space<vmem>>, vector<1x16x34xf32>,
    %cst_197 = arith.constant 0.000000e+00 : f32
    %814 = vector.broadcast %cst_197 : f32 to vector<4x1x36xf32>
    %c0_198 = arith.constant 0 : index
    %c0_199 = arith.constant 0 : index
    %c0_200 = arith.constant 0 : index
    %815 = vector.load %arg10[%c0_198, %c0_199, %c0_200] : memref<4x18x36xf32, #tpu.memory_space<vmem>>, vector<4x1x36xf32>
    tpu.vector_store %arg10[%c0_198, %c0_199, %c0_200], %814 {strides = array<i32>} : memref<4x18x36xf32, #tpu.memory_space<vmem>>, vector<4x1x36xf32>,
    %c0_201 = arith.constant 0 : index
    %c17_202 = arith.constant 17 : index
    %c0_203 = arith.constant 0 : index
    %816 = vector.load %arg10[%c0_201, %c17_202, %c0_203] : memref<4x18x36xf32, #tpu.memory_space<vmem>>, vector<4x1x36xf32>
    tpu.vector_store %arg10[%c0_201, %c17_202, %c0_203], %814 {strides = array<i32>} : memref<4x18x36xf32, #tpu.memory_space<vmem>>, vector<4x1x36xf32>,
    %cst_204 = arith.constant 0.000000e+00 : f32
    %817 = vector.broadcast %cst_204 : f32 to vector<4x18x1xf32>
    %c0_205 = arith.constant 0 : index
    %c0_206 = arith.constant 0 : index
    %c0_207 = arith.constant 0 : index
    %818 = vector.load %arg10[%c0_205, %c0_206, %c0_207] : memref<4x18x36xf32, #tpu.memory_space<vmem>>, vector<4x18x1xf32>
    tpu.vector_store %arg10[%c0_205, %c0_206, %c0_207], %817 {strides = array<i32>} : memref<4x18x36xf32, #tpu.memory_space<vmem>>, vector<4x18x1xf32>,
    %c0_208 = arith.constant 0 : index
    %c0_209 = arith.constant 0 : index
    %c17_210 = arith.constant 17 : index
    %819 = vector.load %arg10[%c0_208, %c0_209, %c17_210] : memref<4x18x36xf32, #tpu.memory_space<vmem>>, vector<4x18x1xf32>
    tpu.vector_store %arg10[%c0_208, %c0_209, %c17_210], %817 {strides = array<i32>} : memref<4x18x36xf32, #tpu.memory_space<vmem>>, vector<4x18x1xf32>,
    %c0_211 = arith.constant 0 : index
    %c0_212 = arith.constant 0 : index
    %c18_213 = arith.constant 18 : index
    %820 = vector.load %arg10[%c0_211, %c0_212, %c18_213] : memref<4x18x36xf32, #tpu.memory_space<vmem>>, vector<4x18x1xf32>
    tpu.vector_store %arg10[%c0_211, %c0_212, %c18_213], %817 {strides = array<i32>} : memref<4x18x36xf32, #tpu.memory_space<vmem>>, vector<4x18x1xf32>,
    %c0_214 = arith.constant 0 : index
    %c0_215 = arith.constant 0 : index
    %c35_216 = arith.constant 35 : index
    %821 = vector.load %arg10[%c0_214, %c0_215, %c35_216] : memref<4x18x36xf32, #tpu.memory_space<vmem>>, vector<4x18x1xf32>
    tpu.vector_store %arg10[%c0_214, %c0_215, %c35_216], %817 {strides = array<i32>} : memref<4x18x36xf32, #tpu.memory_space<vmem>>, vector<4x18x1xf32>,
    %cst_217 = arith.constant 0.000000e+00 : f32
    %822 = vector.broadcast %cst_217 : f32 to vector<16x34xf32>
    %cst_218 = arith.constant 0.000000e+00 : f32
    %823 = vector.broadcast %cst_218 : f32 to vector<16x34xf32>
    %cst_219 = arith.constant 0.000000e+00 : f32
    %824 = vector.broadcast %cst_219 : f32 to vector<16x34xf32>
    %cst_220 = arith.constant 0.000000e+00 : f32
    %825 = vector.broadcast %cst_220 : f32 to vector<16x34xf32>
    %c0_221 = arith.constant 0 : index
    %c0_222 = arith.constant 0 : index
    %c0_223 = arith.constant 0 : index
    %826 = vector.load %arg10[%c0_221, %c0_222, %c0_223] : memref<4x18x36xf32, #tpu.memory_space<vmem>>, vector<1x16x34xf32>
    %827 = vector.shape_cast %826 : vector<1x16x34xf32> to vector<16x34xf32>
    %c0_224 = arith.constant 0 : index
    %828 = memref.load %arg5[%c0_224] : memref<144xf32, #tpu.memory_space<smem>>
    %829 = vector.broadcast %828 : f32 to vector<16x34xf32>
    %830 = arith.mulf %827, %829 : vector<16x34xf32>
    %831 = arith.addf %822, %830 : vector<16x34xf32>
    %c36_225 = arith.constant 36 : index
    %832 = memref.load %arg5[%c36_225] : memref<144xf32, #tpu.memory_space<smem>>
    %833 = vector.broadcast %832 : f32 to vector<16x34xf32>
    %834 = arith.mulf %827, %833 : vector<16x34xf32>
    %835 = arith.addf %823, %834 : vector<16x34xf32>
    %c72_226 = arith.constant 72 : index
    %836 = memref.load %arg5[%c72_226] : memref<144xf32, #tpu.memory_space<smem>>
    %837 = vector.broadcast %836 : f32 to vector<16x34xf32>
    %838 = arith.mulf %827, %837 : vector<16x34xf32>
    %839 = arith.addf %824, %838 : vector<16x34xf32>
    %c108_227 = arith.constant 108 : index
    %840 = memref.load %arg5[%c108_227] : memref<144xf32, #tpu.memory_space<smem>>
    %841 = vector.broadcast %840 : f32 to vector<16x34xf32>
    %842 = arith.mulf %827, %841 : vector<16x34xf32>
    %843 = arith.addf %825, %842 : vector<16x34xf32>
    %c0_228 = arith.constant 0 : index
    %c0_229 = arith.constant 0 : index
    %c1_230 = arith.constant 1 : index
    %844 = vector.load %arg10[%c0_228, %c0_229, %c1_230] : memref<4x18x36xf32, #tpu.memory_space<vmem>>, vector<1x16x34xf32>
    %845 = vector.shape_cast %844 : vector<1x16x34xf32> to vector<16x34xf32>
    %c1_231 = arith.constant 1 : index
    %846 = memref.load %arg5[%c1_231] : memref<144xf32, #tpu.memory_space<smem>>
    %847 = vector.broadcast %846 : f32 to vector<16x34xf32>
    %848 = arith.mulf %845, %847 : vector<16x34xf32>
    %849 = arith.addf %831, %848 : vector<16x34xf32>
    %c37_232 = arith.constant 37 : index
    %850 = memref.load %arg5[%c37_232] : memref<144xf32, #tpu.memory_space<smem>>
    %851 = vector.broadcast %850 : f32 to vector<16x34xf32>
    %852 = arith.mulf %845, %851 : vector<16x34xf32>
    %853 = arith.addf %835, %852 : vector<16x34xf32>
    %c73_233 = arith.constant 73 : index
    %854 = memref.load %arg5[%c73_233] : memref<144xf32, #tpu.memory_space<smem>>
    %855 = vector.broadcast %854 : f32 to vector<16x34xf32>
    %856 = arith.mulf %845, %855 : vector<16x34xf32>
    %857 = arith.addf %839, %856 : vector<16x34xf32>
    %c109_234 = arith.constant 109 : index
    %858 = memref.load %arg5[%c109_234] : memref<144xf32, #tpu.memory_space<smem>>
    %859 = vector.broadcast %858 : f32 to vector<16x34xf32>
    %860 = arith.mulf %845, %859 : vector<16x34xf32>
    %861 = arith.addf %843, %860 : vector<16x34xf32>
    %c0_235 = arith.constant 0 : index
    %c0_236 = arith.constant 0 : index
    %c2_237 = arith.constant 2 : index
    %862 = vector.load %arg10[%c0_235, %c0_236, %c2_237] : memref<4x18x36xf32, #tpu.memory_space<vmem>>, vector<1x16x34xf32>
    %863 = vector.shape_cast %862 : vector<1x16x34xf32> to vector<16x34xf32>
    %c2_238 = arith.constant 2 : index
    %864 = memref.load %arg5[%c2_238] : memref<144xf32, #tpu.memory_space<smem>>
    %865 = vector.broadcast %864 : f32 to vector<16x34xf32>
    %866 = arith.mulf %863, %865 : vector<16x34xf32>
    %867 = arith.addf %849, %866 : vector<16x34xf32>
    %c38_239 = arith.constant 38 : index
    %868 = memref.load %arg5[%c38_239] : memref<144xf32, #tpu.memory_space<smem>>
    %869 = vector.broadcast %868 : f32 to vector<16x34xf32>
    %870 = arith.mulf %863, %869 : vector<16x34xf32>
    %871 = arith.addf %853, %870 : vector<16x34xf32>
    %c74_240 = arith.constant 74 : index
    %872 = memref.load %arg5[%c74_240] : memref<144xf32, #tpu.memory_space<smem>>
    %873 = vector.broadcast %872 : f32 to vector<16x34xf32>
    %874 = arith.mulf %863, %873 : vector<16x34xf32>
    %875 = arith.addf %857, %874 : vector<16x34xf32>
    %c110_241 = arith.constant 110 : index
    %876 = memref.load %arg5[%c110_241] : memref<144xf32, #tpu.memory_space<smem>>
    %877 = vector.broadcast %876 : f32 to vector<16x34xf32>
    %878 = arith.mulf %863, %877 : vector<16x34xf32>
    %879 = arith.addf %861, %878 : vector<16x34xf32>
    %c0_242 = arith.constant 0 : index
    %c1_243 = arith.constant 1 : index
    %c0_244 = arith.constant 0 : index
    %880 = vector.load %arg10[%c0_242, %c1_243, %c0_244] : memref<4x18x36xf32, #tpu.memory_space<vmem>>, vector<1x16x34xf32>
    %881 = vector.shape_cast %880 : vector<1x16x34xf32> to vector<16x34xf32>
    %c3_245 = arith.constant 3 : index
    %882 = memref.load %arg5[%c3_245] : memref<144xf32, #tpu.memory_space<smem>>
    %883 = vector.broadcast %882 : f32 to vector<16x34xf32>
    %884 = arith.mulf %881, %883 : vector<16x34xf32>
    %885 = arith.addf %867, %884 : vector<16x34xf32>
    %c39_246 = arith.constant 39 : index
    %886 = memref.load %arg5[%c39_246] : memref<144xf32, #tpu.memory_space<smem>>
    %887 = vector.broadcast %886 : f32 to vector<16x34xf32>
    %888 = arith.mulf %881, %887 : vector<16x34xf32>
    %889 = arith.addf %871, %888 : vector<16x34xf32>
    %c75_247 = arith.constant 75 : index
    %890 = memref.load %arg5[%c75_247] : memref<144xf32, #tpu.memory_space<smem>>
    %891 = vector.broadcast %890 : f32 to vector<16x34xf32>
    %892 = arith.mulf %881, %891 : vector<16x34xf32>
    %893 = arith.addf %875, %892 : vector<16x34xf32>
    %c111_248 = arith.constant 111 : index
    %894 = memref.load %arg5[%c111_248] : memref<144xf32, #tpu.memory_space<smem>>
    %895 = vector.broadcast %894 : f32 to vector<16x34xf32>
    %896 = arith.mulf %881, %895 : vector<16x34xf32>
    %897 = arith.addf %879, %896 : vector<16x34xf32>
    %c0_249 = arith.constant 0 : index
    %c1_250 = arith.constant 1 : index
    %c1_251 = arith.constant 1 : index
    %898 = vector.load %arg10[%c0_249, %c1_250, %c1_251] : memref<4x18x36xf32, #tpu.memory_space<vmem>>, vector<1x16x34xf32>
    %899 = vector.shape_cast %898 : vector<1x16x34xf32> to vector<16x34xf32>
    %c4_252 = arith.constant 4 : index
    %900 = memref.load %arg5[%c4_252] : memref<144xf32, #tpu.memory_space<smem>>
    %901 = vector.broadcast %900 : f32 to vector<16x34xf32>
    %902 = arith.mulf %899, %901 : vector<16x34xf32>
    %903 = arith.addf %885, %902 : vector<16x34xf32>
    %c40_253 = arith.constant 40 : index
    %904 = memref.load %arg5[%c40_253] : memref<144xf32, #tpu.memory_space<smem>>
    %905 = vector.broadcast %904 : f32 to vector<16x34xf32>
    %906 = arith.mulf %899, %905 : vector<16x34xf32>
    %907 = arith.addf %889, %906 : vector<16x34xf32>
    %c76_254 = arith.constant 76 : index
    %908 = memref.load %arg5[%c76_254] : memref<144xf32, #tpu.memory_space<smem>>
    %909 = vector.broadcast %908 : f32 to vector<16x34xf32>
    %910 = arith.mulf %899, %909 : vector<16x34xf32>
    %911 = arith.addf %893, %910 : vector<16x34xf32>
    %c112_255 = arith.constant 112 : index
    %912 = memref.load %arg5[%c112_255] : memref<144xf32, #tpu.memory_space<smem>>
    %913 = vector.broadcast %912 : f32 to vector<16x34xf32>
    %914 = arith.mulf %899, %913 : vector<16x34xf32>
    %915 = arith.addf %897, %914 : vector<16x34xf32>
    %c0_256 = arith.constant 0 : index
    %c1_257 = arith.constant 1 : index
    %c2_258 = arith.constant 2 : index
    %916 = vector.load %arg10[%c0_256, %c1_257, %c2_258] : memref<4x18x36xf32, #tpu.memory_space<vmem>>, vector<1x16x34xf32>
    %917 = vector.shape_cast %916 : vector<1x16x34xf32> to vector<16x34xf32>
    %c5_259 = arith.constant 5 : index
    %918 = memref.load %arg5[%c5_259] : memref<144xf32, #tpu.memory_space<smem>>
    %919 = vector.broadcast %918 : f32 to vector<16x34xf32>
    %920 = arith.mulf %917, %919 : vector<16x34xf32>
    %921 = arith.addf %903, %920 : vector<16x34xf32>
    %c41_260 = arith.constant 41 : index
    %922 = memref.load %arg5[%c41_260] : memref<144xf32, #tpu.memory_space<smem>>
    %923 = vector.broadcast %922 : f32 to vector<16x34xf32>
    %924 = arith.mulf %917, %923 : vector<16x34xf32>
    %925 = arith.addf %907, %924 : vector<16x34xf32>
    %c77_261 = arith.constant 77 : index
    %926 = memref.load %arg5[%c77_261] : memref<144xf32, #tpu.memory_space<smem>>
    %927 = vector.broadcast %926 : f32 to vector<16x34xf32>
    %928 = arith.mulf %917, %927 : vector<16x34xf32>
    %929 = arith.addf %911, %928 : vector<16x34xf32>
    %c113_262 = arith.constant 113 : index
    %930 = memref.load %arg5[%c113_262] : memref<144xf32, #tpu.memory_space<smem>>
    %931 = vector.broadcast %930 : f32 to vector<16x34xf32>
    %932 = arith.mulf %917, %931 : vector<16x34xf32>
    %933 = arith.addf %915, %932 : vector<16x34xf32>
    %c0_263 = arith.constant 0 : index
    %c2_264 = arith.constant 2 : index
    %c0_265 = arith.constant 0 : index
    %934 = vector.load %arg10[%c0_263, %c2_264, %c0_265] : memref<4x18x36xf32, #tpu.memory_space<vmem>>, vector<1x16x34xf32>
    %935 = vector.shape_cast %934 : vector<1x16x34xf32> to vector<16x34xf32>
    %c6_266 = arith.constant 6 : index
    %936 = memref.load %arg5[%c6_266] : memref<144xf32, #tpu.memory_space<smem>>
    %937 = vector.broadcast %936 : f32 to vector<16x34xf32>
    %938 = arith.mulf %935, %937 : vector<16x34xf32>
    %939 = arith.addf %921, %938 : vector<16x34xf32>
    %c42_267 = arith.constant 42 : index
    %940 = memref.load %arg5[%c42_267] : memref<144xf32, #tpu.memory_space<smem>>
    %941 = vector.broadcast %940 : f32 to vector<16x34xf32>
    %942 = arith.mulf %935, %941 : vector<16x34xf32>
    %943 = arith.addf %925, %942 : vector<16x34xf32>
    %c78_268 = arith.constant 78 : index
    %944 = memref.load %arg5[%c78_268] : memref<144xf32, #tpu.memory_space<smem>>
    %945 = vector.broadcast %944 : f32 to vector<16x34xf32>
    %946 = arith.mulf %935, %945 : vector<16x34xf32>
    %947 = arith.addf %929, %946 : vector<16x34xf32>
    %c114_269 = arith.constant 114 : index
    %948 = memref.load %arg5[%c114_269] : memref<144xf32, #tpu.memory_space<smem>>
    %949 = vector.broadcast %948 : f32 to vector<16x34xf32>
    %950 = arith.mulf %935, %949 : vector<16x34xf32>
    %951 = arith.addf %933, %950 : vector<16x34xf32>
    %c0_270 = arith.constant 0 : index
    %c2_271 = arith.constant 2 : index
    %c1_272 = arith.constant 1 : index
    %952 = vector.load %arg10[%c0_270, %c2_271, %c1_272] : memref<4x18x36xf32, #tpu.memory_space<vmem>>, vector<1x16x34xf32>
    %953 = vector.shape_cast %952 : vector<1x16x34xf32> to vector<16x34xf32>
    %c7_273 = arith.constant 7 : index
    %954 = memref.load %arg5[%c7_273] : memref<144xf32, #tpu.memory_space<smem>>
    %955 = vector.broadcast %954 : f32 to vector<16x34xf32>
    %956 = arith.mulf %953, %955 : vector<16x34xf32>
    %957 = arith.addf %939, %956 : vector<16x34xf32>
    %c43_274 = arith.constant 43 : index
    %958 = memref.load %arg5[%c43_274] : memref<144xf32, #tpu.memory_space<smem>>
    %959 = vector.broadcast %958 : f32 to vector<16x34xf32>
    %960 = arith.mulf %953, %959 : vector<16x34xf32>
    %961 = arith.addf %943, %960 : vector<16x34xf32>
    %c79_275 = arith.constant 79 : index
    %962 = memref.load %arg5[%c79_275] : memref<144xf32, #tpu.memory_space<smem>>
    %963 = vector.broadcast %962 : f32 to vector<16x34xf32>
    %964 = arith.mulf %953, %963 : vector<16x34xf32>
    %965 = arith.addf %947, %964 : vector<16x34xf32>
    %c115_276 = arith.constant 115 : index
    %966 = memref.load %arg5[%c115_276] : memref<144xf32, #tpu.memory_space<smem>>
    %967 = vector.broadcast %966 : f32 to vector<16x34xf32>
    %968 = arith.mulf %953, %967 : vector<16x34xf32>
    %969 = arith.addf %951, %968 : vector<16x34xf32>
    %c0_277 = arith.constant 0 : index
    %c2_278 = arith.constant 2 : index
    %c2_279 = arith.constant 2 : index
    %970 = vector.load %arg10[%c0_277, %c2_278, %c2_279] : memref<4x18x36xf32, #tpu.memory_space<vmem>>, vector<1x16x34xf32>
    %971 = vector.shape_cast %970 : vector<1x16x34xf32> to vector<16x34xf32>
    %c8_280 = arith.constant 8 : index
    %972 = memref.load %arg5[%c8_280] : memref<144xf32, #tpu.memory_space<smem>>
    %973 = vector.broadcast %972 : f32 to vector<16x34xf32>
    %974 = arith.mulf %971, %973 : vector<16x34xf32>
    %975 = arith.addf %957, %974 : vector<16x34xf32>
    %c44_281 = arith.constant 44 : index
    %976 = memref.load %arg5[%c44_281] : memref<144xf32, #tpu.memory_space<smem>>
    %977 = vector.broadcast %976 : f32 to vector<16x34xf32>
    %978 = arith.mulf %971, %977 : vector<16x34xf32>
    %979 = arith.addf %961, %978 : vector<16x34xf32>
    %c80_282 = arith.constant 80 : index
    %980 = memref.load %arg5[%c80_282] : memref<144xf32, #tpu.memory_space<smem>>
    %981 = vector.broadcast %980 : f32 to vector<16x34xf32>
    %982 = arith.mulf %971, %981 : vector<16x34xf32>
    %983 = arith.addf %965, %982 : vector<16x34xf32>
    %c116_283 = arith.constant 116 : index
    %984 = memref.load %arg5[%c116_283] : memref<144xf32, #tpu.memory_space<smem>>
    %985 = vector.broadcast %984 : f32 to vector<16x34xf32>
    %986 = arith.mulf %971, %985 : vector<16x34xf32>
    %987 = arith.addf %969, %986 : vector<16x34xf32>
    %c1_284 = arith.constant 1 : index
    %c0_285 = arith.constant 0 : index
    %c0_286 = arith.constant 0 : index
    %988 = vector.load %arg10[%c1_284, %c0_285, %c0_286] : memref<4x18x36xf32, #tpu.memory_space<vmem>>, vector<1x16x34xf32>
    %989 = vector.shape_cast %988 : vector<1x16x34xf32> to vector<16x34xf32>
    %c9_287 = arith.constant 9 : index
    %990 = memref.load %arg5[%c9_287] : memref<144xf32, #tpu.memory_space<smem>>
    %991 = vector.broadcast %990 : f32 to vector<16x34xf32>
    %992 = arith.mulf %989, %991 : vector<16x34xf32>
    %993 = arith.addf %975, %992 : vector<16x34xf32>
    %c45_288 = arith.constant 45 : index
    %994 = memref.load %arg5[%c45_288] : memref<144xf32, #tpu.memory_space<smem>>
    %995 = vector.broadcast %994 : f32 to vector<16x34xf32>
    %996 = arith.mulf %989, %995 : vector<16x34xf32>
    %997 = arith.addf %979, %996 : vector<16x34xf32>
    %c81_289 = arith.constant 81 : index
    %998 = memref.load %arg5[%c81_289] : memref<144xf32, #tpu.memory_space<smem>>
    %999 = vector.broadcast %998 : f32 to vector<16x34xf32>
    %1000 = arith.mulf %989, %999 : vector<16x34xf32>
    %1001 = arith.addf %983, %1000 : vector<16x34xf32>
    %c117_290 = arith.constant 117 : index
    %1002 = memref.load %arg5[%c117_290] : memref<144xf32, #tpu.memory_space<smem>>
    %1003 = vector.broadcast %1002 : f32 to vector<16x34xf32>
    %1004 = arith.mulf %989, %1003 : vector<16x34xf32>
    %1005 = arith.addf %987, %1004 : vector<16x34xf32>
    %c1_291 = arith.constant 1 : index
    %c0_292 = arith.constant 0 : index
    %c1_293 = arith.constant 1 : index
    %1006 = vector.load %arg10[%c1_291, %c0_292, %c1_293] : memref<4x18x36xf32, #tpu.memory_space<vmem>>, vector<1x16x34xf32>
    %1007 = vector.shape_cast %1006 : vector<1x16x34xf32> to vector<16x34xf32>
    %c10_294 = arith.constant 10 : index
    %1008 = memref.load %arg5[%c10_294] : memref<144xf32, #tpu.memory_space<smem>>
    %1009 = vector.broadcast %1008 : f32 to vector<16x34xf32>
    %1010 = arith.mulf %1007, %1009 : vector<16x34xf32>
    %1011 = arith.addf %993, %1010 : vector<16x34xf32>
    %c46_295 = arith.constant 46 : index
    %1012 = memref.load %arg5[%c46_295] : memref<144xf32, #tpu.memory_space<smem>>
    %1013 = vector.broadcast %1012 : f32 to vector<16x34xf32>
    %1014 = arith.mulf %1007, %1013 : vector<16x34xf32>
    %1015 = arith.addf %997, %1014 : vector<16x34xf32>
    %c82_296 = arith.constant 82 : index
    %1016 = memref.load %arg5[%c82_296] : memref<144xf32, #tpu.memory_space<smem>>
    %1017 = vector.broadcast %1016 : f32 to vector<16x34xf32>
    %1018 = arith.mulf %1007, %1017 : vector<16x34xf32>
    %1019 = arith.addf %1001, %1018 : vector<16x34xf32>
    %c118_297 = arith.constant 118 : index
    %1020 = memref.load %arg5[%c118_297] : memref<144xf32, #tpu.memory_space<smem>>
    %1021 = vector.broadcast %1020 : f32 to vector<16x34xf32>
    %1022 = arith.mulf %1007, %1021 : vector<16x34xf32>
    %1023 = arith.addf %1005, %1022 : vector<16x34xf32>
    %c1_298 = arith.constant 1 : index
    %c0_299 = arith.constant 0 : index
    %c2_300 = arith.constant 2 : index
    %1024 = vector.load %arg10[%c1_298, %c0_299, %c2_300] : memref<4x18x36xf32, #tpu.memory_space<vmem>>, vector<1x16x34xf32>
    %1025 = vector.shape_cast %1024 : vector<1x16x34xf32> to vector<16x34xf32>
    %c11_301 = arith.constant 11 : index
    %1026 = memref.load %arg5[%c11_301] : memref<144xf32, #tpu.memory_space<smem>>
    %1027 = vector.broadcast %1026 : f32 to vector<16x34xf32>
    %1028 = arith.mulf %1025, %1027 : vector<16x34xf32>
    %1029 = arith.addf %1011, %1028 : vector<16x34xf32>
    %c47_302 = arith.constant 47 : index
    %1030 = memref.load %arg5[%c47_302] : memref<144xf32, #tpu.memory_space<smem>>
    %1031 = vector.broadcast %1030 : f32 to vector<16x34xf32>
    %1032 = arith.mulf %1025, %1031 : vector<16x34xf32>
    %1033 = arith.addf %1015, %1032 : vector<16x34xf32>
    %c83_303 = arith.constant 83 : index
    %1034 = memref.load %arg5[%c83_303] : memref<144xf32, #tpu.memory_space<smem>>
    %1035 = vector.broadcast %1034 : f32 to vector<16x34xf32>
    %1036 = arith.mulf %1025, %1035 : vector<16x34xf32>
    %1037 = arith.addf %1019, %1036 : vector<16x34xf32>
    %c119_304 = arith.constant 119 : index
    %1038 = memref.load %arg5[%c119_304] : memref<144xf32, #tpu.memory_space<smem>>
    %1039 = vector.broadcast %1038 : f32 to vector<16x34xf32>
    %1040 = arith.mulf %1025, %1039 : vector<16x34xf32>
    %1041 = arith.addf %1023, %1040 : vector<16x34xf32>
    %c1_305 = arith.constant 1 : index
    %c1_306 = arith.constant 1 : index
    %c0_307 = arith.constant 0 : index
    %1042 = vector.load %arg10[%c1_305, %c1_306, %c0_307] : memref<4x18x36xf32, #tpu.memory_space<vmem>>, vector<1x16x34xf32>
    %1043 = vector.shape_cast %1042 : vector<1x16x34xf32> to vector<16x34xf32>
    %c12_308 = arith.constant 12 : index
    %1044 = memref.load %arg5[%c12_308] : memref<144xf32, #tpu.memory_space<smem>>
    %1045 = vector.broadcast %1044 : f32 to vector<16x34xf32>
    %1046 = arith.mulf %1043, %1045 : vector<16x34xf32>
    %1047 = arith.addf %1029, %1046 : vector<16x34xf32>
    %c48_309 = arith.constant 48 : index
    %1048 = memref.load %arg5[%c48_309] : memref<144xf32, #tpu.memory_space<smem>>
    %1049 = vector.broadcast %1048 : f32 to vector<16x34xf32>
    %1050 = arith.mulf %1043, %1049 : vector<16x34xf32>
    %1051 = arith.addf %1033, %1050 : vector<16x34xf32>
    %c84_310 = arith.constant 84 : index
    %1052 = memref.load %arg5[%c84_310] : memref<144xf32, #tpu.memory_space<smem>>
    %1053 = vector.broadcast %1052 : f32 to vector<16x34xf32>
    %1054 = arith.mulf %1043, %1053 : vector<16x34xf32>
    %1055 = arith.addf %1037, %1054 : vector<16x34xf32>
    %c120_311 = arith.constant 120 : index
    %1056 = memref.load %arg5[%c120_311] : memref<144xf32, #tpu.memory_space<smem>>
    %1057 = vector.broadcast %1056 : f32 to vector<16x34xf32>
    %1058 = arith.mulf %1043, %1057 : vector<16x34xf32>
    %1059 = arith.addf %1041, %1058 : vector<16x34xf32>
    %c1_312 = arith.constant 1 : index
    %c1_313 = arith.constant 1 : index
    %c1_314 = arith.constant 1 : index
    %1060 = vector.load %arg10[%c1_312, %c1_313, %c1_314] : memref<4x18x36xf32, #tpu.memory_space<vmem>>, vector<1x16x34xf32>
    %1061 = vector.shape_cast %1060 : vector<1x16x34xf32> to vector<16x34xf32>
    %c13_315 = arith.constant 13 : index
    %1062 = memref.load %arg5[%c13_315] : memref<144xf32, #tpu.memory_space<smem>>
    %1063 = vector.broadcast %1062 : f32 to vector<16x34xf32>
    %1064 = arith.mulf %1061, %1063 : vector<16x34xf32>
    %1065 = arith.addf %1047, %1064 : vector<16x34xf32>
    %c49_316 = arith.constant 49 : index
    %1066 = memref.load %arg5[%c49_316] : memref<144xf32, #tpu.memory_space<smem>>
    %1067 = vector.broadcast %1066 : f32 to vector<16x34xf32>
    %1068 = arith.mulf %1061, %1067 : vector<16x34xf32>
    %1069 = arith.addf %1051, %1068 : vector<16x34xf32>
    %c85_317 = arith.constant 85 : index
    %1070 = memref.load %arg5[%c85_317] : memref<144xf32, #tpu.memory_space<smem>>
    %1071 = vector.broadcast %1070 : f32 to vector<16x34xf32>
    %1072 = arith.mulf %1061, %1071 : vector<16x34xf32>
    %1073 = arith.addf %1055, %1072 : vector<16x34xf32>
    %c121_318 = arith.constant 121 : index
    %1074 = memref.load %arg5[%c121_318] : memref<144xf32, #tpu.memory_space<smem>>
    %1075 = vector.broadcast %1074 : f32 to vector<16x34xf32>
    %1076 = arith.mulf %1061, %1075 : vector<16x34xf32>
    %1077 = arith.addf %1059, %1076 : vector<16x34xf32>
    %c1_319 = arith.constant 1 : index
    %c1_320 = arith.constant 1 : index
    %c2_321 = arith.constant 2 : index
    %1078 = vector.load %arg10[%c1_319, %c1_320, %c2_321] : memref<4x18x36xf32, #tpu.memory_space<vmem>>, vector<1x16x34xf32>
    %1079 = vector.shape_cast %1078 : vector<1x16x34xf32> to vector<16x34xf32>
    %c14_322 = arith.constant 14 : index
    %1080 = memref.load %arg5[%c14_322] : memref<144xf32, #tpu.memory_space<smem>>
    %1081 = vector.broadcast %1080 : f32 to vector<16x34xf32>
    %1082 = arith.mulf %1079, %1081 : vector<16x34xf32>
    %1083 = arith.addf %1065, %1082 : vector<16x34xf32>
    %c50_323 = arith.constant 50 : index
    %1084 = memref.load %arg5[%c50_323] : memref<144xf32, #tpu.memory_space<smem>>
    %1085 = vector.broadcast %1084 : f32 to vector<16x34xf32>
    %1086 = arith.mulf %1079, %1085 : vector<16x34xf32>
    %1087 = arith.addf %1069, %1086 : vector<16x34xf32>
    %c86_324 = arith.constant 86 : index
    %1088 = memref.load %arg5[%c86_324] : memref<144xf32, #tpu.memory_space<smem>>
    %1089 = vector.broadcast %1088 : f32 to vector<16x34xf32>
    %1090 = arith.mulf %1079, %1089 : vector<16x34xf32>
    %1091 = arith.addf %1073, %1090 : vector<16x34xf32>
    %c122_325 = arith.constant 122 : index
    %1092 = memref.load %arg5[%c122_325] : memref<144xf32, #tpu.memory_space<smem>>
    %1093 = vector.broadcast %1092 : f32 to vector<16x34xf32>
    %1094 = arith.mulf %1079, %1093 : vector<16x34xf32>
    %1095 = arith.addf %1077, %1094 : vector<16x34xf32>
    %c1_326 = arith.constant 1 : index
    %c2_327 = arith.constant 2 : index
    %c0_328 = arith.constant 0 : index
    %1096 = vector.load %arg10[%c1_326, %c2_327, %c0_328] : memref<4x18x36xf32, #tpu.memory_space<vmem>>, vector<1x16x34xf32>
    %1097 = vector.shape_cast %1096 : vector<1x16x34xf32> to vector<16x34xf32>
    %c15_329 = arith.constant 15 : index
    %1098 = memref.load %arg5[%c15_329] : memref<144xf32, #tpu.memory_space<smem>>
    %1099 = vector.broadcast %1098 : f32 to vector<16x34xf32>
    %1100 = arith.mulf %1097, %1099 : vector<16x34xf32>
    %1101 = arith.addf %1083, %1100 : vector<16x34xf32>
    %c51_330 = arith.constant 51 : index
    %1102 = memref.load %arg5[%c51_330] : memref<144xf32, #tpu.memory_space<smem>>
    %1103 = vector.broadcast %1102 : f32 to vector<16x34xf32>
    %1104 = arith.mulf %1097, %1103 : vector<16x34xf32>
    %1105 = arith.addf %1087, %1104 : vector<16x34xf32>
    %c87_331 = arith.constant 87 : index
    %1106 = memref.load %arg5[%c87_331] : memref<144xf32, #tpu.memory_space<smem>>
    %1107 = vector.broadcast %1106 : f32 to vector<16x34xf32>
    %1108 = arith.mulf %1097, %1107 : vector<16x34xf32>
    %1109 = arith.addf %1091, %1108 : vector<16x34xf32>
    %c123_332 = arith.constant 123 : index
    %1110 = memref.load %arg5[%c123_332] : memref<144xf32, #tpu.memory_space<smem>>
    %1111 = vector.broadcast %1110 : f32 to vector<16x34xf32>
    %1112 = arith.mulf %1097, %1111 : vector<16x34xf32>
    %1113 = arith.addf %1095, %1112 : vector<16x34xf32>
    %c1_333 = arith.constant 1 : index
    %c2_334 = arith.constant 2 : index
    %c1_335 = arith.constant 1 : index
    %1114 = vector.load %arg10[%c1_333, %c2_334, %c1_335] : memref<4x18x36xf32, #tpu.memory_space<vmem>>, vector<1x16x34xf32>
    %1115 = vector.shape_cast %1114 : vector<1x16x34xf32> to vector<16x34xf32>
    %c16_336 = arith.constant 16 : index
    %1116 = memref.load %arg5[%c16_336] : memref<144xf32, #tpu.memory_space<smem>>
    %1117 = vector.broadcast %1116 : f32 to vector<16x34xf32>
    %1118 = arith.mulf %1115, %1117 : vector<16x34xf32>
    %1119 = arith.addf %1101, %1118 : vector<16x34xf32>
    %c52_337 = arith.constant 52 : index
    %1120 = memref.load %arg5[%c52_337] : memref<144xf32, #tpu.memory_space<smem>>
    %1121 = vector.broadcast %1120 : f32 to vector<16x34xf32>
    %1122 = arith.mulf %1115, %1121 : vector<16x34xf32>
    %1123 = arith.addf %1105, %1122 : vector<16x34xf32>
    %c88_338 = arith.constant 88 : index
    %1124 = memref.load %arg5[%c88_338] : memref<144xf32, #tpu.memory_space<smem>>
    %1125 = vector.broadcast %1124 : f32 to vector<16x34xf32>
    %1126 = arith.mulf %1115, %1125 : vector<16x34xf32>
    %1127 = arith.addf %1109, %1126 : vector<16x34xf32>
    %c124_339 = arith.constant 124 : index
    %1128 = memref.load %arg5[%c124_339] : memref<144xf32, #tpu.memory_space<smem>>
    %1129 = vector.broadcast %1128 : f32 to vector<16x34xf32>
    %1130 = arith.mulf %1115, %1129 : vector<16x34xf32>
    %1131 = arith.addf %1113, %1130 : vector<16x34xf32>
    %c1_340 = arith.constant 1 : index
    %c2_341 = arith.constant 2 : index
    %c2_342 = arith.constant 2 : index
    %1132 = vector.load %arg10[%c1_340, %c2_341, %c2_342] : memref<4x18x36xf32, #tpu.memory_space<vmem>>, vector<1x16x34xf32>
    %1133 = vector.shape_cast %1132 : vector<1x16x34xf32> to vector<16x34xf32>
    %c17_343 = arith.constant 17 : index
    %1134 = memref.load %arg5[%c17_343] : memref<144xf32, #tpu.memory_space<smem>>
    %1135 = vector.broadcast %1134 : f32 to vector<16x34xf32>
    %1136 = arith.mulf %1133, %1135 : vector<16x34xf32>
    %1137 = arith.addf %1119, %1136 : vector<16x34xf32>
    %c53_344 = arith.constant 53 : index
    %1138 = memref.load %arg5[%c53_344] : memref<144xf32, #tpu.memory_space<smem>>
    %1139 = vector.broadcast %1138 : f32 to vector<16x34xf32>
    %1140 = arith.mulf %1133, %1139 : vector<16x34xf32>
    %1141 = arith.addf %1123, %1140 : vector<16x34xf32>
    %c89_345 = arith.constant 89 : index
    %1142 = memref.load %arg5[%c89_345] : memref<144xf32, #tpu.memory_space<smem>>
    %1143 = vector.broadcast %1142 : f32 to vector<16x34xf32>
    %1144 = arith.mulf %1133, %1143 : vector<16x34xf32>
    %1145 = arith.addf %1127, %1144 : vector<16x34xf32>
    %c125_346 = arith.constant 125 : index
    %1146 = memref.load %arg5[%c125_346] : memref<144xf32, #tpu.memory_space<smem>>
    %1147 = vector.broadcast %1146 : f32 to vector<16x34xf32>
    %1148 = arith.mulf %1133, %1147 : vector<16x34xf32>
    %1149 = arith.addf %1131, %1148 : vector<16x34xf32>
    %c2_347 = arith.constant 2 : index
    %c0_348 = arith.constant 0 : index
    %c0_349 = arith.constant 0 : index
    %1150 = vector.load %arg10[%c2_347, %c0_348, %c0_349] : memref<4x18x36xf32, #tpu.memory_space<vmem>>, vector<1x16x34xf32>
    %1151 = vector.shape_cast %1150 : vector<1x16x34xf32> to vector<16x34xf32>
    %c18_350 = arith.constant 18 : index
    %1152 = memref.load %arg5[%c18_350] : memref<144xf32, #tpu.memory_space<smem>>
    %1153 = vector.broadcast %1152 : f32 to vector<16x34xf32>
    %1154 = arith.mulf %1151, %1153 : vector<16x34xf32>
    %1155 = arith.addf %1137, %1154 : vector<16x34xf32>
    %c54_351 = arith.constant 54 : index
    %1156 = memref.load %arg5[%c54_351] : memref<144xf32, #tpu.memory_space<smem>>
    %1157 = vector.broadcast %1156 : f32 to vector<16x34xf32>
    %1158 = arith.mulf %1151, %1157 : vector<16x34xf32>
    %1159 = arith.addf %1141, %1158 : vector<16x34xf32>
    %c90_352 = arith.constant 90 : index
    %1160 = memref.load %arg5[%c90_352] : memref<144xf32, #tpu.memory_space<smem>>
    %1161 = vector.broadcast %1160 : f32 to vector<16x34xf32>
    %1162 = arith.mulf %1151, %1161 : vector<16x34xf32>
    %1163 = arith.addf %1145, %1162 : vector<16x34xf32>
    %c126_353 = arith.constant 126 : index
    %1164 = memref.load %arg5[%c126_353] : memref<144xf32, #tpu.memory_space<smem>>
    %1165 = vector.broadcast %1164 : f32 to vector<16x34xf32>
    %1166 = arith.mulf %1151, %1165 : vector<16x34xf32>
    %1167 = arith.addf %1149, %1166 : vector<16x34xf32>
    %c2_354 = arith.constant 2 : index
    %c0_355 = arith.constant 0 : index
    %c1_356 = arith.constant 1 : index
    %1168 = vector.load %arg10[%c2_354, %c0_355, %c1_356] : memref<4x18x36xf32, #tpu.memory_space<vmem>>, vector<1x16x34xf32>
    %1169 = vector.shape_cast %1168 : vector<1x16x34xf32> to vector<16x34xf32>
    %c19_357 = arith.constant 19 : index
    %1170 = memref.load %arg5[%c19_357] : memref<144xf32, #tpu.memory_space<smem>>
    %1171 = vector.broadcast %1170 : f32 to vector<16x34xf32>
    %1172 = arith.mulf %1169, %1171 : vector<16x34xf32>
    %1173 = arith.addf %1155, %1172 : vector<16x34xf32>
    %c55_358 = arith.constant 55 : index
    %1174 = memref.load %arg5[%c55_358] : memref<144xf32, #tpu.memory_space<smem>>
    %1175 = vector.broadcast %1174 : f32 to vector<16x34xf32>
    %1176 = arith.mulf %1169, %1175 : vector<16x34xf32>
    %1177 = arith.addf %1159, %1176 : vector<16x34xf32>
    %c91_359 = arith.constant 91 : index
    %1178 = memref.load %arg5[%c91_359] : memref<144xf32, #tpu.memory_space<smem>>
    %1179 = vector.broadcast %1178 : f32 to vector<16x34xf32>
    %1180 = arith.mulf %1169, %1179 : vector<16x34xf32>
    %1181 = arith.addf %1163, %1180 : vector<16x34xf32>
    %c127_360 = arith.constant 127 : index
    %1182 = memref.load %arg5[%c127_360] : memref<144xf32, #tpu.memory_space<smem>>
    %1183 = vector.broadcast %1182 : f32 to vector<16x34xf32>
    %1184 = arith.mulf %1169, %1183 : vector<16x34xf32>
    %1185 = arith.addf %1167, %1184 : vector<16x34xf32>
    %c2_361 = arith.constant 2 : index
    %c0_362 = arith.constant 0 : index
    %c2_363 = arith.constant 2 : index
    %1186 = vector.load %arg10[%c2_361, %c0_362, %c2_363] : memref<4x18x36xf32, #tpu.memory_space<vmem>>, vector<1x16x34xf32>
    %1187 = vector.shape_cast %1186 : vector<1x16x34xf32> to vector<16x34xf32>
    %c20_364 = arith.constant 20 : index
    %1188 = memref.load %arg5[%c20_364] : memref<144xf32, #tpu.memory_space<smem>>
    %1189 = vector.broadcast %1188 : f32 to vector<16x34xf32>
    %1190 = arith.mulf %1187, %1189 : vector<16x34xf32>
    %1191 = arith.addf %1173, %1190 : vector<16x34xf32>
    %c56_365 = arith.constant 56 : index
    %1192 = memref.load %arg5[%c56_365] : memref<144xf32, #tpu.memory_space<smem>>
    %1193 = vector.broadcast %1192 : f32 to vector<16x34xf32>
    %1194 = arith.mulf %1187, %1193 : vector<16x34xf32>
    %1195 = arith.addf %1177, %1194 : vector<16x34xf32>
    %c92_366 = arith.constant 92 : index
    %1196 = memref.load %arg5[%c92_366] : memref<144xf32, #tpu.memory_space<smem>>
    %1197 = vector.broadcast %1196 : f32 to vector<16x34xf32>
    %1198 = arith.mulf %1187, %1197 : vector<16x34xf32>
    %1199 = arith.addf %1181, %1198 : vector<16x34xf32>
    %c128_367 = arith.constant 128 : index
    %1200 = memref.load %arg5[%c128_367] : memref<144xf32, #tpu.memory_space<smem>>
    %1201 = vector.broadcast %1200 : f32 to vector<16x34xf32>
    %1202 = arith.mulf %1187, %1201 : vector<16x34xf32>
    %1203 = arith.addf %1185, %1202 : vector<16x34xf32>
    %c2_368 = arith.constant 2 : index
    %c1_369 = arith.constant 1 : index
    %c0_370 = arith.constant 0 : index
    %1204 = vector.load %arg10[%c2_368, %c1_369, %c0_370] : memref<4x18x36xf32, #tpu.memory_space<vmem>>, vector<1x16x34xf32>
    %1205 = vector.shape_cast %1204 : vector<1x16x34xf32> to vector<16x34xf32>
    %c21_371 = arith.constant 21 : index
    %1206 = memref.load %arg5[%c21_371] : memref<144xf32, #tpu.memory_space<smem>>
    %1207 = vector.broadcast %1206 : f32 to vector<16x34xf32>
    %1208 = arith.mulf %1205, %1207 : vector<16x34xf32>
    %1209 = arith.addf %1191, %1208 : vector<16x34xf32>
    %c57_372 = arith.constant 57 : index
    %1210 = memref.load %arg5[%c57_372] : memref<144xf32, #tpu.memory_space<smem>>
    %1211 = vector.broadcast %1210 : f32 to vector<16x34xf32>
    %1212 = arith.mulf %1205, %1211 : vector<16x34xf32>
    %1213 = arith.addf %1195, %1212 : vector<16x34xf32>
    %c93_373 = arith.constant 93 : index
    %1214 = memref.load %arg5[%c93_373] : memref<144xf32, #tpu.memory_space<smem>>
    %1215 = vector.broadcast %1214 : f32 to vector<16x34xf32>
    %1216 = arith.mulf %1205, %1215 : vector<16x34xf32>
    %1217 = arith.addf %1199, %1216 : vector<16x34xf32>
    %c129_374 = arith.constant 129 : index
    %1218 = memref.load %arg5[%c129_374] : memref<144xf32, #tpu.memory_space<smem>>
    %1219 = vector.broadcast %1218 : f32 to vector<16x34xf32>
    %1220 = arith.mulf %1205, %1219 : vector<16x34xf32>
    %1221 = arith.addf %1203, %1220 : vector<16x34xf32>
    %c2_375 = arith.constant 2 : index
    %c1_376 = arith.constant 1 : index
    %c1_377 = arith.constant 1 : index
    %1222 = vector.load %arg10[%c2_375, %c1_376, %c1_377] : memref<4x18x36xf32, #tpu.memory_space<vmem>>, vector<1x16x34xf32>
    %1223 = vector.shape_cast %1222 : vector<1x16x34xf32> to vector<16x34xf32>
    %c22_378 = arith.constant 22 : index
    %1224 = memref.load %arg5[%c22_378] : memref<144xf32, #tpu.memory_space<smem>>
    %1225 = vector.broadcast %1224 : f32 to vector<16x34xf32>
    %1226 = arith.mulf %1223, %1225 : vector<16x34xf32>
    %1227 = arith.addf %1209, %1226 : vector<16x34xf32>
    %c58_379 = arith.constant 58 : index
    %1228 = memref.load %arg5[%c58_379] : memref<144xf32, #tpu.memory_space<smem>>
    %1229 = vector.broadcast %1228 : f32 to vector<16x34xf32>
    %1230 = arith.mulf %1223, %1229 : vector<16x34xf32>
    %1231 = arith.addf %1213, %1230 : vector<16x34xf32>
    %c94_380 = arith.constant 94 : index
    %1232 = memref.load %arg5[%c94_380] : memref<144xf32, #tpu.memory_space<smem>>
    %1233 = vector.broadcast %1232 : f32 to vector<16x34xf32>
    %1234 = arith.mulf %1223, %1233 : vector<16x34xf32>
    %1235 = arith.addf %1217, %1234 : vector<16x34xf32>
    %c130_381 = arith.constant 130 : index
    %1236 = memref.load %arg5[%c130_381] : memref<144xf32, #tpu.memory_space<smem>>
    %1237 = vector.broadcast %1236 : f32 to vector<16x34xf32>
    %1238 = arith.mulf %1223, %1237 : vector<16x34xf32>
    %1239 = arith.addf %1221, %1238 : vector<16x34xf32>
    %c2_382 = arith.constant 2 : index
    %c1_383 = arith.constant 1 : index
    %c2_384 = arith.constant 2 : index
    %1240 = vector.load %arg10[%c2_382, %c1_383, %c2_384] : memref<4x18x36xf32, #tpu.memory_space<vmem>>, vector<1x16x34xf32>
    %1241 = vector.shape_cast %1240 : vector<1x16x34xf32> to vector<16x34xf32>
    %c23_385 = arith.constant 23 : index
    %1242 = memref.load %arg5[%c23_385] : memref<144xf32, #tpu.memory_space<smem>>
    %1243 = vector.broadcast %1242 : f32 to vector<16x34xf32>
    %1244 = arith.mulf %1241, %1243 : vector<16x34xf32>
    %1245 = arith.addf %1227, %1244 : vector<16x34xf32>
    %c59_386 = arith.constant 59 : index
    %1246 = memref.load %arg5[%c59_386] : memref<144xf32, #tpu.memory_space<smem>>
    %1247 = vector.broadcast %1246 : f32 to vector<16x34xf32>
    %1248 = arith.mulf %1241, %1247 : vector<16x34xf32>
    %1249 = arith.addf %1231, %1248 : vector<16x34xf32>
    %c95_387 = arith.constant 95 : index
    %1250 = memref.load %arg5[%c95_387] : memref<144xf32, #tpu.memory_space<smem>>
    %1251 = vector.broadcast %1250 : f32 to vector<16x34xf32>
    %1252 = arith.mulf %1241, %1251 : vector<16x34xf32>
    %1253 = arith.addf %1235, %1252 : vector<16x34xf32>
    %c131_388 = arith.constant 131 : index
    %1254 = memref.load %arg5[%c131_388] : memref<144xf32, #tpu.memory_space<smem>>
    %1255 = vector.broadcast %1254 : f32 to vector<16x34xf32>
    %1256 = arith.mulf %1241, %1255 : vector<16x34xf32>
    %1257 = arith.addf %1239, %1256 : vector<16x34xf32>
    %c2_389 = arith.constant 2 : index
    %c2_390 = arith.constant 2 : index
    %c0_391 = arith.constant 0 : index
    %1258 = vector.load %arg10[%c2_389, %c2_390, %c0_391] : memref<4x18x36xf32, #tpu.memory_space<vmem>>, vector<1x16x34xf32>
    %1259 = vector.shape_cast %1258 : vector<1x16x34xf32> to vector<16x34xf32>
    %c24_392 = arith.constant 24 : index
    %1260 = memref.load %arg5[%c24_392] : memref<144xf32, #tpu.memory_space<smem>>
    %1261 = vector.broadcast %1260 : f32 to vector<16x34xf32>
    %1262 = arith.mulf %1259, %1261 : vector<16x34xf32>
    %1263 = arith.addf %1245, %1262 : vector<16x34xf32>
    %c60_393 = arith.constant 60 : index
    %1264 = memref.load %arg5[%c60_393] : memref<144xf32, #tpu.memory_space<smem>>
    %1265 = vector.broadcast %1264 : f32 to vector<16x34xf32>
    %1266 = arith.mulf %1259, %1265 : vector<16x34xf32>
    %1267 = arith.addf %1249, %1266 : vector<16x34xf32>
    %c96_394 = arith.constant 96 : index
    %1268 = memref.load %arg5[%c96_394] : memref<144xf32, #tpu.memory_space<smem>>
    %1269 = vector.broadcast %1268 : f32 to vector<16x34xf32>
    %1270 = arith.mulf %1259, %1269 : vector<16x34xf32>
    %1271 = arith.addf %1253, %1270 : vector<16x34xf32>
    %c132_395 = arith.constant 132 : index
    %1272 = memref.load %arg5[%c132_395] : memref<144xf32, #tpu.memory_space<smem>>
    %1273 = vector.broadcast %1272 : f32 to vector<16x34xf32>
    %1274 = arith.mulf %1259, %1273 : vector<16x34xf32>
    %1275 = arith.addf %1257, %1274 : vector<16x34xf32>
    %c2_396 = arith.constant 2 : index
    %c2_397 = arith.constant 2 : index
    %c1_398 = arith.constant 1 : index
    %1276 = vector.load %arg10[%c2_396, %c2_397, %c1_398] : memref<4x18x36xf32, #tpu.memory_space<vmem>>, vector<1x16x34xf32>
    %1277 = vector.shape_cast %1276 : vector<1x16x34xf32> to vector<16x34xf32>
    %c25_399 = arith.constant 25 : index
    %1278 = memref.load %arg5[%c25_399] : memref<144xf32, #tpu.memory_space<smem>>
    %1279 = vector.broadcast %1278 : f32 to vector<16x34xf32>
    %1280 = arith.mulf %1277, %1279 : vector<16x34xf32>
    %1281 = arith.addf %1263, %1280 : vector<16x34xf32>
    %c61_400 = arith.constant 61 : index
    %1282 = memref.load %arg5[%c61_400] : memref<144xf32, #tpu.memory_space<smem>>
    %1283 = vector.broadcast %1282 : f32 to vector<16x34xf32>
    %1284 = arith.mulf %1277, %1283 : vector<16x34xf32>
    %1285 = arith.addf %1267, %1284 : vector<16x34xf32>
    %c97_401 = arith.constant 97 : index
    %1286 = memref.load %arg5[%c97_401] : memref<144xf32, #tpu.memory_space<smem>>
    %1287 = vector.broadcast %1286 : f32 to vector<16x34xf32>
    %1288 = arith.mulf %1277, %1287 : vector<16x34xf32>
    %1289 = arith.addf %1271, %1288 : vector<16x34xf32>
    %c133_402 = arith.constant 133 : index
    %1290 = memref.load %arg5[%c133_402] : memref<144xf32, #tpu.memory_space<smem>>
    %1291 = vector.broadcast %1290 : f32 to vector<16x34xf32>
    %1292 = arith.mulf %1277, %1291 : vector<16x34xf32>
    %1293 = arith.addf %1275, %1292 : vector<16x34xf32>
    %c2_403 = arith.constant 2 : index
    %c2_404 = arith.constant 2 : index
    %c2_405 = arith.constant 2 : index
    %1294 = vector.load %arg10[%c2_403, %c2_404, %c2_405] : memref<4x18x36xf32, #tpu.memory_space<vmem>>, vector<1x16x34xf32>
    %1295 = vector.shape_cast %1294 : vector<1x16x34xf32> to vector<16x34xf32>
    %c26_406 = arith.constant 26 : index
    %1296 = memref.load %arg5[%c26_406] : memref<144xf32, #tpu.memory_space<smem>>
    %1297 = vector.broadcast %1296 : f32 to vector<16x34xf32>
    %1298 = arith.mulf %1295, %1297 : vector<16x34xf32>
    %1299 = arith.addf %1281, %1298 : vector<16x34xf32>
    %c62_407 = arith.constant 62 : index
    %1300 = memref.load %arg5[%c62_407] : memref<144xf32, #tpu.memory_space<smem>>
    %1301 = vector.broadcast %1300 : f32 to vector<16x34xf32>
    %1302 = arith.mulf %1295, %1301 : vector<16x34xf32>
    %1303 = arith.addf %1285, %1302 : vector<16x34xf32>
    %c98_408 = arith.constant 98 : index
    %1304 = memref.load %arg5[%c98_408] : memref<144xf32, #tpu.memory_space<smem>>
    %1305 = vector.broadcast %1304 : f32 to vector<16x34xf32>
    %1306 = arith.mulf %1295, %1305 : vector<16x34xf32>
    %1307 = arith.addf %1289, %1306 : vector<16x34xf32>
    %c134_409 = arith.constant 134 : index
    %1308 = memref.load %arg5[%c134_409] : memref<144xf32, #tpu.memory_space<smem>>
    %1309 = vector.broadcast %1308 : f32 to vector<16x34xf32>
    %1310 = arith.mulf %1295, %1309 : vector<16x34xf32>
    %1311 = arith.addf %1293, %1310 : vector<16x34xf32>
    %c3_410 = arith.constant 3 : index
    %c0_411 = arith.constant 0 : index
    %c0_412 = arith.constant 0 : index
    %1312 = vector.load %arg10[%c3_410, %c0_411, %c0_412] : memref<4x18x36xf32, #tpu.memory_space<vmem>>, vector<1x16x34xf32>
    %1313 = vector.shape_cast %1312 : vector<1x16x34xf32> to vector<16x34xf32>
    %c27_413 = arith.constant 27 : index
    %1314 = memref.load %arg5[%c27_413] : memref<144xf32, #tpu.memory_space<smem>>
    %1315 = vector.broadcast %1314 : f32 to vector<16x34xf32>
    %1316 = arith.mulf %1313, %1315 : vector<16x34xf32>
    %1317 = arith.addf %1299, %1316 : vector<16x34xf32>
    %c63_414 = arith.constant 63 : index
    %1318 = memref.load %arg5[%c63_414] : memref<144xf32, #tpu.memory_space<smem>>
    %1319 = vector.broadcast %1318 : f32 to vector<16x34xf32>
    %1320 = arith.mulf %1313, %1319 : vector<16x34xf32>
    %1321 = arith.addf %1303, %1320 : vector<16x34xf32>
    %c99_415 = arith.constant 99 : index
    %1322 = memref.load %arg5[%c99_415] : memref<144xf32, #tpu.memory_space<smem>>
    %1323 = vector.broadcast %1322 : f32 to vector<16x34xf32>
    %1324 = arith.mulf %1313, %1323 : vector<16x34xf32>
    %1325 = arith.addf %1307, %1324 : vector<16x34xf32>
    %c135_416 = arith.constant 135 : index
    %1326 = memref.load %arg5[%c135_416] : memref<144xf32, #tpu.memory_space<smem>>
    %1327 = vector.broadcast %1326 : f32 to vector<16x34xf32>
    %1328 = arith.mulf %1313, %1327 : vector<16x34xf32>
    %1329 = arith.addf %1311, %1328 : vector<16x34xf32>
    %c3_417 = arith.constant 3 : index
    %c0_418 = arith.constant 0 : index
    %c1_419 = arith.constant 1 : index
    %1330 = vector.load %arg10[%c3_417, %c0_418, %c1_419] : memref<4x18x36xf32, #tpu.memory_space<vmem>>, vector<1x16x34xf32>
    %1331 = vector.shape_cast %1330 : vector<1x16x34xf32> to vector<16x34xf32>
    %c28_420 = arith.constant 28 : index
    %1332 = memref.load %arg5[%c28_420] : memref<144xf32, #tpu.memory_space<smem>>
    %1333 = vector.broadcast %1332 : f32 to vector<16x34xf32>
    %1334 = arith.mulf %1331, %1333 : vector<16x34xf32>
    %1335 = arith.addf %1317, %1334 : vector<16x34xf32>
    %c64_421 = arith.constant 64 : index
    %1336 = memref.load %arg5[%c64_421] : memref<144xf32, #tpu.memory_space<smem>>
    %1337 = vector.broadcast %1336 : f32 to vector<16x34xf32>
    %1338 = arith.mulf %1331, %1337 : vector<16x34xf32>
    %1339 = arith.addf %1321, %1338 : vector<16x34xf32>
    %c100_422 = arith.constant 100 : index
    %1340 = memref.load %arg5[%c100_422] : memref<144xf32, #tpu.memory_space<smem>>
    %1341 = vector.broadcast %1340 : f32 to vector<16x34xf32>
    %1342 = arith.mulf %1331, %1341 : vector<16x34xf32>
    %1343 = arith.addf %1325, %1342 : vector<16x34xf32>
    %c136_423 = arith.constant 136 : index
    %1344 = memref.load %arg5[%c136_423] : memref<144xf32, #tpu.memory_space<smem>>
    %1345 = vector.broadcast %1344 : f32 to vector<16x34xf32>
    %1346 = arith.mulf %1331, %1345 : vector<16x34xf32>
    %1347 = arith.addf %1329, %1346 : vector<16x34xf32>
    %c3_424 = arith.constant 3 : index
    %c0_425 = arith.constant 0 : index
    %c2_426 = arith.constant 2 : index
    %1348 = vector.load %arg10[%c3_424, %c0_425, %c2_426] : memref<4x18x36xf32, #tpu.memory_space<vmem>>, vector<1x16x34xf32>
    %1349 = vector.shape_cast %1348 : vector<1x16x34xf32> to vector<16x34xf32>
    %c29_427 = arith.constant 29 : index
    %1350 = memref.load %arg5[%c29_427] : memref<144xf32, #tpu.memory_space<smem>>
    %1351 = vector.broadcast %1350 : f32 to vector<16x34xf32>
    %1352 = arith.mulf %1349, %1351 : vector<16x34xf32>
    %1353 = arith.addf %1335, %1352 : vector<16x34xf32>
    %c65_428 = arith.constant 65 : index
    %1354 = memref.load %arg5[%c65_428] : memref<144xf32, #tpu.memory_space<smem>>
    %1355 = vector.broadcast %1354 : f32 to vector<16x34xf32>
    %1356 = arith.mulf %1349, %1355 : vector<16x34xf32>
    %1357 = arith.addf %1339, %1356 : vector<16x34xf32>
    %c101_429 = arith.constant 101 : index
    %1358 = memref.load %arg5[%c101_429] : memref<144xf32, #tpu.memory_space<smem>>
    %1359 = vector.broadcast %1358 : f32 to vector<16x34xf32>
    %1360 = arith.mulf %1349, %1359 : vector<16x34xf32>
    %1361 = arith.addf %1343, %1360 : vector<16x34xf32>
    %c137_430 = arith.constant 137 : index
    %1362 = memref.load %arg5[%c137_430] : memref<144xf32, #tpu.memory_space<smem>>
    %1363 = vector.broadcast %1362 : f32 to vector<16x34xf32>
    %1364 = arith.mulf %1349, %1363 : vector<16x34xf32>
    %1365 = arith.addf %1347, %1364 : vector<16x34xf32>
    %c3_431 = arith.constant 3 : index
    %c1_432 = arith.constant 1 : index
    %c0_433 = arith.constant 0 : index
    %1366 = vector.load %arg10[%c3_431, %c1_432, %c0_433] : memref<4x18x36xf32, #tpu.memory_space<vmem>>, vector<1x16x34xf32>
    %1367 = vector.shape_cast %1366 : vector<1x16x34xf32> to vector<16x34xf32>
    %c30_434 = arith.constant 30 : index
    %1368 = memref.load %arg5[%c30_434] : memref<144xf32, #tpu.memory_space<smem>>
    %1369 = vector.broadcast %1368 : f32 to vector<16x34xf32>
    %1370 = arith.mulf %1367, %1369 : vector<16x34xf32>
    %1371 = arith.addf %1353, %1370 : vector<16x34xf32>
    %c66_435 = arith.constant 66 : index
    %1372 = memref.load %arg5[%c66_435] : memref<144xf32, #tpu.memory_space<smem>>
    %1373 = vector.broadcast %1372 : f32 to vector<16x34xf32>
    %1374 = arith.mulf %1367, %1373 : vector<16x34xf32>
    %1375 = arith.addf %1357, %1374 : vector<16x34xf32>
    %c102_436 = arith.constant 102 : index
    %1376 = memref.load %arg5[%c102_436] : memref<144xf32, #tpu.memory_space<smem>>
    %1377 = vector.broadcast %1376 : f32 to vector<16x34xf32>
    %1378 = arith.mulf %1367, %1377 : vector<16x34xf32>
    %1379 = arith.addf %1361, %1378 : vector<16x34xf32>
    %c138_437 = arith.constant 138 : index
    %1380 = memref.load %arg5[%c138_437] : memref<144xf32, #tpu.memory_space<smem>>
    %1381 = vector.broadcast %1380 : f32 to vector<16x34xf32>
    %1382 = arith.mulf %1367, %1381 : vector<16x34xf32>
    %1383 = arith.addf %1365, %1382 : vector<16x34xf32>
    %c3_438 = arith.constant 3 : index
    %c1_439 = arith.constant 1 : index
    %c1_440 = arith.constant 1 : index
    %1384 = vector.load %arg10[%c3_438, %c1_439, %c1_440] : memref<4x18x36xf32, #tpu.memory_space<vmem>>, vector<1x16x34xf32>
    %1385 = vector.shape_cast %1384 : vector<1x16x34xf32> to vector<16x34xf32>
    %c31_441 = arith.constant 31 : index
    %1386 = memref.load %arg5[%c31_441] : memref<144xf32, #tpu.memory_space<smem>>
    %1387 = vector.broadcast %1386 : f32 to vector<16x34xf32>
    %1388 = arith.mulf %1385, %1387 : vector<16x34xf32>
    %1389 = arith.addf %1371, %1388 : vector<16x34xf32>
    %c67_442 = arith.constant 67 : index
    %1390 = memref.load %arg5[%c67_442] : memref<144xf32, #tpu.memory_space<smem>>
    %1391 = vector.broadcast %1390 : f32 to vector<16x34xf32>
    %1392 = arith.mulf %1385, %1391 : vector<16x34xf32>
    %1393 = arith.addf %1375, %1392 : vector<16x34xf32>
    %c103_443 = arith.constant 103 : index
    %1394 = memref.load %arg5[%c103_443] : memref<144xf32, #tpu.memory_space<smem>>
    %1395 = vector.broadcast %1394 : f32 to vector<16x34xf32>
    %1396 = arith.mulf %1385, %1395 : vector<16x34xf32>
    %1397 = arith.addf %1379, %1396 : vector<16x34xf32>
    %c139_444 = arith.constant 139 : index
    %1398 = memref.load %arg5[%c139_444] : memref<144xf32, #tpu.memory_space<smem>>
    %1399 = vector.broadcast %1398 : f32 to vector<16x34xf32>
    %1400 = arith.mulf %1385, %1399 : vector<16x34xf32>
    %1401 = arith.addf %1383, %1400 : vector<16x34xf32>
    %c3_445 = arith.constant 3 : index
    %c1_446 = arith.constant 1 : index
    %c2_447 = arith.constant 2 : index
    %1402 = vector.load %arg10[%c3_445, %c1_446, %c2_447] : memref<4x18x36xf32, #tpu.memory_space<vmem>>, vector<1x16x34xf32>
    %1403 = vector.shape_cast %1402 : vector<1x16x34xf32> to vector<16x34xf32>
    %c32_448 = arith.constant 32 : index
    %1404 = memref.load %arg5[%c32_448] : memref<144xf32, #tpu.memory_space<smem>>
    %1405 = vector.broadcast %1404 : f32 to vector<16x34xf32>
    %1406 = arith.mulf %1403, %1405 : vector<16x34xf32>
    %1407 = arith.addf %1389, %1406 : vector<16x34xf32>
    %c68_449 = arith.constant 68 : index
    %1408 = memref.load %arg5[%c68_449] : memref<144xf32, #tpu.memory_space<smem>>
    %1409 = vector.broadcast %1408 : f32 to vector<16x34xf32>
    %1410 = arith.mulf %1403, %1409 : vector<16x34xf32>
    %1411 = arith.addf %1393, %1410 : vector<16x34xf32>
    %c104_450 = arith.constant 104 : index
    %1412 = memref.load %arg5[%c104_450] : memref<144xf32, #tpu.memory_space<smem>>
    %1413 = vector.broadcast %1412 : f32 to vector<16x34xf32>
    %1414 = arith.mulf %1403, %1413 : vector<16x34xf32>
    %1415 = arith.addf %1397, %1414 : vector<16x34xf32>
    %c140_451 = arith.constant 140 : index
    %1416 = memref.load %arg5[%c140_451] : memref<144xf32, #tpu.memory_space<smem>>
    %1417 = vector.broadcast %1416 : f32 to vector<16x34xf32>
    %1418 = arith.mulf %1403, %1417 : vector<16x34xf32>
    %1419 = arith.addf %1401, %1418 : vector<16x34xf32>
    %c3_452 = arith.constant 3 : index
    %c2_453 = arith.constant 2 : index
    %c0_454 = arith.constant 0 : index
    %1420 = vector.load %arg10[%c3_452, %c2_453, %c0_454] : memref<4x18x36xf32, #tpu.memory_space<vmem>>, vector<1x16x34xf32>
    %1421 = vector.shape_cast %1420 : vector<1x16x34xf32> to vector<16x34xf32>
    %c33_455 = arith.constant 33 : index
    %1422 = memref.load %arg5[%c33_455] : memref<144xf32, #tpu.memory_space<smem>>
    %1423 = vector.broadcast %1422 : f32 to vector<16x34xf32>
    %1424 = arith.mulf %1421, %1423 : vector<16x34xf32>
    %1425 = arith.addf %1407, %1424 : vector<16x34xf32>
    %c69_456 = arith.constant 69 : index
    %1426 = memref.load %arg5[%c69_456] : memref<144xf32, #tpu.memory_space<smem>>
    %1427 = vector.broadcast %1426 : f32 to vector<16x34xf32>
    %1428 = arith.mulf %1421, %1427 : vector<16x34xf32>
    %1429 = arith.addf %1411, %1428 : vector<16x34xf32>
    %c105_457 = arith.constant 105 : index
    %1430 = memref.load %arg5[%c105_457] : memref<144xf32, #tpu.memory_space<smem>>
    %1431 = vector.broadcast %1430 : f32 to vector<16x34xf32>
    %1432 = arith.mulf %1421, %1431 : vector<16x34xf32>
    %1433 = arith.addf %1415, %1432 : vector<16x34xf32>
    %c141_458 = arith.constant 141 : index
    %1434 = memref.load %arg5[%c141_458] : memref<144xf32, #tpu.memory_space<smem>>
    %1435 = vector.broadcast %1434 : f32 to vector<16x34xf32>
    %1436 = arith.mulf %1421, %1435 : vector<16x34xf32>
    %1437 = arith.addf %1419, %1436 : vector<16x34xf32>
    %c3_459 = arith.constant 3 : index
    %c2_460 = arith.constant 2 : index
    %c1_461 = arith.constant 1 : index
    %1438 = vector.load %arg10[%c3_459, %c2_460, %c1_461] : memref<4x18x36xf32, #tpu.memory_space<vmem>>, vector<1x16x34xf32>
    %1439 = vector.shape_cast %1438 : vector<1x16x34xf32> to vector<16x34xf32>
    %c34_462 = arith.constant 34 : index
    %1440 = memref.load %arg5[%c34_462] : memref<144xf32, #tpu.memory_space<smem>>
    %1441 = vector.broadcast %1440 : f32 to vector<16x34xf32>
    %1442 = arith.mulf %1439, %1441 : vector<16x34xf32>
    %1443 = arith.addf %1425, %1442 : vector<16x34xf32>
    %c70_463 = arith.constant 70 : index
    %1444 = memref.load %arg5[%c70_463] : memref<144xf32, #tpu.memory_space<smem>>
    %1445 = vector.broadcast %1444 : f32 to vector<16x34xf32>
    %1446 = arith.mulf %1439, %1445 : vector<16x34xf32>
    %1447 = arith.addf %1429, %1446 : vector<16x34xf32>
    %c106_464 = arith.constant 106 : index
    %1448 = memref.load %arg5[%c106_464] : memref<144xf32, #tpu.memory_space<smem>>
    %1449 = vector.broadcast %1448 : f32 to vector<16x34xf32>
    %1450 = arith.mulf %1439, %1449 : vector<16x34xf32>
    %1451 = arith.addf %1433, %1450 : vector<16x34xf32>
    %c142_465 = arith.constant 142 : index
    %1452 = memref.load %arg5[%c142_465] : memref<144xf32, #tpu.memory_space<smem>>
    %1453 = vector.broadcast %1452 : f32 to vector<16x34xf32>
    %1454 = arith.mulf %1439, %1453 : vector<16x34xf32>
    %1455 = arith.addf %1437, %1454 : vector<16x34xf32>
    %c3_466 = arith.constant 3 : index
    %c2_467 = arith.constant 2 : index
    %c2_468 = arith.constant 2 : index
    %1456 = vector.load %arg10[%c3_466, %c2_467, %c2_468] : memref<4x18x36xf32, #tpu.memory_space<vmem>>, vector<1x16x34xf32>
    %1457 = vector.shape_cast %1456 : vector<1x16x34xf32> to vector<16x34xf32>
    %c35_469 = arith.constant 35 : index
    %1458 = memref.load %arg5[%c35_469] : memref<144xf32, #tpu.memory_space<smem>>
    %1459 = vector.broadcast %1458 : f32 to vector<16x34xf32>
    %1460 = arith.mulf %1457, %1459 : vector<16x34xf32>
    %1461 = arith.addf %1443, %1460 : vector<16x34xf32>
    %c71_470 = arith.constant 71 : index
    %1462 = memref.load %arg5[%c71_470] : memref<144xf32, #tpu.memory_space<smem>>
    %1463 = vector.broadcast %1462 : f32 to vector<16x34xf32>
    %1464 = arith.mulf %1457, %1463 : vector<16x34xf32>
    %1465 = arith.addf %1447, %1464 : vector<16x34xf32>
    %c107_471 = arith.constant 107 : index
    %1466 = memref.load %arg5[%c107_471] : memref<144xf32, #tpu.memory_space<smem>>
    %1467 = vector.broadcast %1466 : f32 to vector<16x34xf32>
    %1468 = arith.mulf %1457, %1467 : vector<16x34xf32>
    %1469 = arith.addf %1451, %1468 : vector<16x34xf32>
    %c143_472 = arith.constant 143 : index
    %1470 = memref.load %arg5[%c143_472] : memref<144xf32, #tpu.memory_space<smem>>
    %1471 = vector.broadcast %1470 : f32 to vector<16x34xf32>
    %1472 = arith.mulf %1457, %1471 : vector<16x34xf32>
    %1473 = arith.addf %1455, %1472 : vector<16x34xf32>
    %c0_473 = arith.constant 0 : index
    %1474 = memref.load %arg6[%c0_473] : memref<4xf32, #tpu.memory_space<smem>>
    %1475 = vector.broadcast %1474 : f32 to vector<16x34xf32>
    %1476 = arith.addf %1461, %1475 : vector<16x34xf32>
    %1477 = vector.extract_strided_slice %1476 {offsets = [0, 0], sizes = [16, 16], strides = [1, 1]} : vector<16x34xf32> to vector<16x16xf32>
    %c0_474 = arith.constant 0 : index
    %c0_475 = arith.constant 0 : index
    %c0_476 = arith.constant 0 : index
    %c0_477 = arith.constant 0 : index
    %1478 = vector.load %arg8[%c0_474, %c0_475, %c0_476, %c0_477] : memref<2x4x16x16xf32, #tpu.memory_space<vmem>>, vector<1x1x16x16xf32>
    %1479 = vector.shape_cast %1478 : vector<1x1x16x16xf32> to vector<16x16xf32>
    %1480 = vector.shape_cast %1477 : vector<16x16xf32> to vector<1x1x16x16xf32>
    tpu.vector_store %arg8[%c0_474, %c0_475, %c0_476, %c0_477], %1480 {strides = array<i32>} : memref<2x4x16x16xf32, #tpu.memory_space<vmem>>, vector<1x1x16x16xf32>,
    %1481 = vector.extract_strided_slice %1476 {offsets = [0, 18], sizes = [16, 16], strides = [1, 1]} : vector<16x34xf32> to vector<16x16xf32>
    %c1_478 = arith.constant 1 : index
    %c0_479 = arith.constant 0 : index
    %c0_480 = arith.constant 0 : index
    %c0_481 = arith.constant 0 : index
    %1482 = vector.load %arg8[%c1_478, %c0_479, %c0_480, %c0_481] : memref<2x4x16x16xf32, #tpu.memory_space<vmem>>, vector<1x1x16x16xf32>
    %1483 = vector.shape_cast %1482 : vector<1x1x16x16xf32> to vector<16x16xf32>
    %1484 = vector.shape_cast %1481 : vector<16x16xf32> to vector<1x1x16x16xf32>
    tpu.vector_store %arg8[%c1_478, %c0_479, %c0_480, %c0_481], %1484 {strides = array<i32>} : memref<2x4x16x16xf32, #tpu.memory_space<vmem>>, vector<1x1x16x16xf32>,
    %c1_482 = arith.constant 1 : index
    %1485 = memref.load %arg6[%c1_482] : memref<4xf32, #tpu.memory_space<smem>>
    %1486 = vector.broadcast %1485 : f32 to vector<16x34xf32>
    %1487 = arith.addf %1465, %1486 : vector<16x34xf32>
    %1488 = vector.extract_strided_slice %1487 {offsets = [0, 0], sizes = [16, 16], strides = [1, 1]} : vector<16x34xf32> to vector<16x16xf32>
    %c0_483 = arith.constant 0 : index
    %c1_484 = arith.constant 1 : index
    %c0_485 = arith.constant 0 : index
    %c0_486 = arith.constant 0 : index
    %1489 = vector.load %arg8[%c0_483, %c1_484, %c0_485, %c0_486] : memref<2x4x16x16xf32, #tpu.memory_space<vmem>>, vector<1x1x16x16xf32>
    %1490 = vector.shape_cast %1489 : vector<1x1x16x16xf32> to vector<16x16xf32>
    %1491 = vector.shape_cast %1488 : vector<16x16xf32> to vector<1x1x16x16xf32>
    tpu.vector_store %arg8[%c0_483, %c1_484, %c0_485, %c0_486], %1491 {strides = array<i32>} : memref<2x4x16x16xf32, #tpu.memory_space<vmem>>, vector<1x1x16x16xf32>,
    %1492 = vector.extract_strided_slice %1487 {offsets = [0, 18], sizes = [16, 16], strides = [1, 1]} : vector<16x34xf32> to vector<16x16xf32>
    %c1_487 = arith.constant 1 : index
    %c1_488 = arith.constant 1 : index
    %c0_489 = arith.constant 0 : index
    %c0_490 = arith.constant 0 : index
    %1493 = vector.load %arg8[%c1_487, %c1_488, %c0_489, %c0_490] : memref<2x4x16x16xf32, #tpu.memory_space<vmem>>, vector<1x1x16x16xf32>
    %1494 = vector.shape_cast %1493 : vector<1x1x16x16xf32> to vector<16x16xf32>
    %1495 = vector.shape_cast %1492 : vector<16x16xf32> to vector<1x1x16x16xf32>
    tpu.vector_store %arg8[%c1_487, %c1_488, %c0_489, %c0_490], %1495 {strides = array<i32>} : memref<2x4x16x16xf32, #tpu.memory_space<vmem>>, vector<1x1x16x16xf32>,
    %c2_491 = arith.constant 2 : index
    %1496 = memref.load %arg6[%c2_491] : memref<4xf32, #tpu.memory_space<smem>>
    %1497 = vector.broadcast %1496 : f32 to vector<16x34xf32>
    %1498 = arith.addf %1469, %1497 : vector<16x34xf32>
    %1499 = vector.extract_strided_slice %1498 {offsets = [0, 0], sizes = [16, 16], strides = [1, 1]} : vector<16x34xf32> to vector<16x16xf32>
    %c0_492 = arith.constant 0 : index
    %c2_493 = arith.constant 2 : index
    %c0_494 = arith.constant 0 : index
    %c0_495 = arith.constant 0 : index
    %1500 = vector.load %arg8[%c0_492, %c2_493, %c0_494, %c0_495] : memref<2x4x16x16xf32, #tpu.memory_space<vmem>>, vector<1x1x16x16xf32>
    %1501 = vector.shape_cast %1500 : vector<1x1x16x16xf32> to vector<16x16xf32>
    %1502 = vector.shape_cast %1499 : vector<16x16xf32> to vector<1x1x16x16xf32>
    tpu.vector_store %arg8[%c0_492, %c2_493, %c0_494, %c0_495], %1502 {strides = array<i32>} : memref<2x4x16x16xf32, #tpu.memory_space<vmem>>, vector<1x1x16x16xf32>,
    %1503 = vector.extract_strided_slice %1498 {offsets = [0, 18], sizes = [16, 16], strides = [1, 1]} : vector<16x34xf32> to vector<16x16xf32>
    %c1_496 = arith.constant 1 : index
    %c2_497 = arith.constant 2 : index
    %c0_498 = arith.constant 0 : index
    %c0_499 = arith.constant 0 : index
    %1504 = vector.load %arg8[%c1_496, %c2_497, %c0_498, %c0_499] : memref<2x4x16x16xf32, #tpu.memory_space<vmem>>, vector<1x1x16x16xf32>
    %1505 = vector.shape_cast %1504 : vector<1x1x16x16xf32> to vector<16x16xf32>
    %1506 = vector.shape_cast %1503 : vector<16x16xf32> to vector<1x1x16x16xf32>
    tpu.vector_store %arg8[%c1_496, %c2_497, %c0_498, %c0_499], %1506 {strides = array<i32>} : memref<2x4x16x16xf32, #tpu.memory_space<vmem>>, vector<1x1x16x16xf32>,
    %c3_500 = arith.constant 3 : index
    %1507 = memref.load %arg6[%c3_500] : memref<4xf32, #tpu.memory_space<smem>>
    %1508 = vector.broadcast %1507 : f32 to vector<16x34xf32>
    %1509 = arith.addf %1473, %1508 : vector<16x34xf32>
    %1510 = vector.extract_strided_slice %1509 {offsets = [0, 0], sizes = [16, 16], strides = [1, 1]} : vector<16x34xf32> to vector<16x16xf32>
    %c0_501 = arith.constant 0 : index
    %c3_502 = arith.constant 3 : index
    %c0_503 = arith.constant 0 : index
    %c0_504 = arith.constant 0 : index
    %1511 = vector.load %arg8[%c0_501, %c3_502, %c0_503, %c0_504] : memref<2x4x16x16xf32, #tpu.memory_space<vmem>>, vector<1x1x16x16xf32>
    %1512 = vector.shape_cast %1511 : vector<1x1x16x16xf32> to vector<16x16xf32>
    %1513 = vector.shape_cast %1510 : vector<16x16xf32> to vector<1x1x16x16xf32>
    tpu.vector_store %arg8[%c0_501, %c3_502, %c0_503, %c0_504], %1513 {strides = array<i32>} : memref<2x4x16x16xf32, #tpu.memory_space<vmem>>, vector<1x1x16x16xf32>,
    %1514 = vector.extract_strided_slice %1509 {offsets = [0, 18], sizes = [16, 16], strides = [1, 1]} : vector<16x34xf32> to vector<16x16xf32>
    %c1_505 = arith.constant 1 : index
    %c3_506 = arith.constant 3 : index
    %c0_507 = arith.constant 0 : index
    %c0_508 = arith.constant 0 : index
    %1515 = vector.load %arg8[%c1_505, %c3_506, %c0_507, %c0_508] : memref<2x4x16x16xf32, #tpu.memory_space<vmem>>, vector<1x1x16x16xf32>
    %1516 = vector.shape_cast %1515 : vector<1x1x16x16xf32> to vector<16x16xf32>
    %1517 = vector.shape_cast %1514 : vector<16x16xf32> to vector<1x1x16x16xf32>
    tpu.vector_store %arg8[%c1_505, %c3_506, %c0_507, %c0_508], %1517 {strides = array<i32>} : memref<2x4x16x16xf32, #tpu.memory_space<vmem>>, vector<1x1x16x16xf32>,
    return
  }
  func.func @transform_0(%arg0: i32) -> i32 {
    %c0_i32 = arith.constant 0 : i32
    %c0_i32_0 = arith.constant 0 : i32
    return %c0_i32 : i32
  }
  func.func @transform_1(%arg0: i32) -> i32 {
    %c0_i32 = arith.constant 0 : i32
    %c0_i32_0 = arith.constant 0 : i32
    return %c0_i32 : i32
  }
  func.func @transform_2(%arg0: i32) -> i32 {
    %c0_i32 = arith.constant 0 : i32
    %c0_i32_0 = arith.constant 0 : i32
    return %c0_i32 : i32
  }
  func.func @transform_3(%arg0: i32) -> i32 {
    %c0_i32 = arith.constant 0 : i32
    %c0_i32_0 = arith.constant 0 : i32
    return %c0_i32 : i32
  }
  func.func @transform_4(%arg0: i32) -> i32 {
    %c0_i32 = arith.constant 0 : i32
    %c0_i32_0 = arith.constant 0 : i32
    return %c0_i32 : i32
  }
  func.func @transform_5(%arg0: i32) -> i32 {
    %c0_i32 = arith.constant 0 : i32
    %c0_i32_0 = arith.constant 0 : i32
    return %c0_i32 : i32
  }
  func.func @transform_6(%arg0: i32) -> (i32, i32, i32, i32) {
    %c0_i32 = arith.constant 0 : i32
    %c0_i32_0 = arith.constant 0 : i32
    %c0_i32_1 = arith.constant 0 : i32
    %c0_i32_2 = arith.constant 0 : i32
    return %arg0, %c0_i32, %c0_i32_0, %c0_i32_1 : i32, i32, i32, i32
  }
  func.func @transform_7(%arg0: i32) -> (i32, i32, i32, i32) {
    %c0_i32 = arith.constant 0 : i32
    %c0_i32_0 = arith.constant 0 : i32
    %c0_i32_1 = arith.constant 0 : i32
    %c0_i32_2 = arith.constant 0 : i32
    return %arg0, %c0_i32, %c0_i32_0, %c0_i32_1 : i32, i32, i32, i32
  }
}

</mosaic_0001>

<llo_original>
// kernel: tpu_custom_call.1
$region0: #{tpu_custom_call.1}
  #allocation0 [shape = 'u32[]', space=smem, size = 0x4, offset = 0x4, fixed_abs, tag = 'smem constant byte address 0x4 - core index']
  #allocation1 [shape = 'u32[144,128]{1,0:T(1,128)}', space=vmem, size = 0x12000, scoped, tag = 'internal scratch']
  #allocation2 [shape = 'f32[4,18,36]{2,1,0:T(8,128)}', space=vmem, size = 0xc000, scoped, tag = 'scratch operand']
  #allocation3 [shape = 'f32[4,18,36]{2,1,0:T(8,128)}', space=vmem, size = 0xc000, scoped, tag = 'scratch operand']
  %s0 = inlined_call_operand.hbm [shape: f32[16], index: 0, kind: input, shape index: {}]
  %s1 = inlined_call_operand.vmem [shape: f32[4], index: 1, kind: input, shape index: {}]
  %s2 = inlined_call_operand.vmem [shape: f32[144], index: 2, kind: input, shape index: {}]
  %s3 = inlined_call_operand.vmem [shape: f32[4], index: 3, kind: input, shape index: {}]
  %s4 = inlined_call_operand.vmem [shape: f32[144], index: 4, kind: input, shape index: {}]
  %s5 = inlined_call_operand.vmem [shape: f32[4], index: 5, kind: input, shape index: {}]
  %s6 = inlined_call_operand.hbm [shape: f32[2,4,16,16], index: 6, kind: input, shape index: {}]
  %s7 = inlined_call_operand.hbm [shape: f32[2,4,16,16], index: 7, kind: output, shape index: {}]
  %s8 = sld [smem:[#allocation0]]
  $region66: #{tpu_custom_call.1} parent=0
    _
  %s10 = ssub.s32 1, %s8
  %s11 = scalar_select 0, %s10, %s8
  $region1: #{tpu_custom_call.1} parent=0
    #allocation4 [shape = 'u8[512]{0}', space=smem, size = 0x200, scoped, tag = 'input window, operand 0, single buffered']
    #allocation5 [shape = 's32[1]{0}', space=sflag, size = 0x4, scoped, tag = 'scoped memory for tpu_custom_call.1']
    #allocation6 [shape = 's32[1]{0}', space=sflag, size = 0x4, scoped, tag = 'scoped memory for tpu_custom_call.1']
    #allocation7 [shape = 's32[1]{0}', space=sflag, size = 0x4, scoped, tag = 'scoped memory for tpu_custom_call.1']
    #allocation8 [shape = 's32[1]{0}', space=sflag, size = 0x4, scoped, tag = 'scoped memory for tpu_custom_call.1']
    #allocation9 [shape = 'u8[512]{0}', space=smem, size = 0x200, scoped, tag = 'input window, operand 1, single buffered']
    #allocation10 [shape = 'u8[1024]{0}', space=smem, size = 0x400, scoped, tag = 'input window, operand 2, single buffered']
    #allocation11 [shape = 's32[1]{0}', space=sflag, size = 0x4, scoped, tag = 'scoped memory for tpu_custom_call.1']
    #allocation12 [shape = 'u8[512]{0}', space=smem, size = 0x200, scoped, tag = 'input window, operand 3, single buffered']
    #allocation13 [shape = 'u8[1024]{0}', space=smem, size = 0x400, scoped, tag = 'input window, operand 4, single buffered']
    #allocation14 [shape = 's32[1]{0}', space=sflag, size = 0x4, scoped, tag = 'scoped memory for tpu_custom_call.1']
    #allocation15 [shape = 'u8[512]{0}', space=smem, size = 0x200, scoped, tag = 'input window, operand 5, single buffered']
    #allocation16 [shape = 'u8[65536]{0}', space=vmem, size = 0x10000, scoped, tag = 'input window, operand 6, single buffered']
    #allocation17 [shape = 'u8[65536]{0}', space=vmem, size = 0x10000, scoped, tag = 'output window, operand 0, single buffered']
    %12 = vsyncpa [#allocation7], 0
    %13 = vsyncpa [#allocation8], 0
    %14 = vsyncpa [#allocation11], 0
    %15 = vsyncpa [#allocation14], 0
    %16 = vsyncpa [#allocation5], 0
    %17 = vsyncpa [#allocation6], 0
    // Predicated region
    $region2: #{tpu_custom_call.1} parent=1 // pred_check
      _
    $region3: #{tpu_custom_call.1} parent=1 // pred_check_branch
      %19 = sbr.rel (0) target = $region5
    $region4: #{tpu_custom_call.1} parent=1 // pred_region
      %s21 = ssub.s32 16, 16
      %22 = vsyncadd [#allocation7], %s21
      %25 = dma.hbm_to_smem %s0, 16, [#allocation4], [#allocation7]
    $region5: #{tpu_custom_call.1} parent=1 // pred_fallthru
      _
    // Predicated region
    $region6: #{tpu_custom_call.1} parent=1 // pred_check
      _
    $region7: #{tpu_custom_call.1} parent=1 // pred_check_branch
      %27 = sbr.rel (0) target = $region9
    $region8: #{tpu_custom_call.1} parent=1 // pred_region
      %s29 = ssub.s32 16, 16
      %30 = vsyncadd [#allocation8], %s29
      %s32 = sshll.u32 %s1, 4
      %s33 = int_to_ptr.vmem [resolvable:$true] %s32
      %35 = dma.vmem_to_smem %s33, 16, [#allocation9], [#allocation8]
    $region9: #{tpu_custom_call.1} parent=1 // pred_fallthru
      _
    // Predicated region
    $region10: #{tpu_custom_call.1} parent=1 // pred_check
      _
    $region11: #{tpu_custom_call.1} parent=1 // pred_check_branch
      %37 = sbr.rel (0) target = $region13
    $region12: #{tpu_custom_call.1} parent=1 // pred_region
      %s39 = ssub.s32 32, 32
      %40 = vsyncadd [#allocation11], %s39
      %s42 = sshll.u32 %s2, 4
      %s43 = int_to_ptr.vmem [resolvable:$true] %s42
      %45 = dma.vmem_to_smem %s43, 32, [#allocation10], [#allocation11]
    $region13: #{tpu_custom_call.1} parent=1 // pred_fallthru
      _
    // Predicated region
    $region14: #{tpu_custom_call.1} parent=1 // pred_check
      _
    $region15: #{tpu_custom_call.1} parent=1 // pred_check_branch
      %47 = sbr.rel (0) target = $region17
    $region16: #{tpu_custom_call.1} parent=1 // pred_region
      %s49 = ssub.s32 16, 16
      %50 = vsyncadd [#allocation11], %s49
      %s52 = sshll.u32 %s3, 4
      %s53 = int_to_ptr.vmem [resolvable:$true] %s52
      %55 = dma.vmem_to_smem %s53, 16, [#allocation12], [#allocation11]
    $region17: #{tpu_custom_call.1} parent=1 // pred_fallthru
      _
    // Predicated region
    $region18: #{tpu_custom_call.1} parent=1 // pred_check
      _
    $region19: #{tpu_custom_call.1} parent=1 // pred_check_branch
      %57 = sbr.rel (0) target = $region21
    $region20: #{tpu_custom_call.1} parent=1 // pred_region
      %s59 = ssub.s32 32, 32
      %60 = vsyncadd [#allocation14], %s59
      %s62 = sshll.u32 %s4, 4
      %s63 = int_to_ptr.vmem [resolvable:$true] %s62
      %65 = dma.vmem_to_smem %s63, 32, [#allocation13], [#allocation14]
    $region21: #{tpu_custom_call.1} parent=1 // pred_fallthru
      _
    // Predicated region
    $region22: #{tpu_custom_call.1} parent=1 // pred_check
      _
    $region23: #{tpu_custom_call.1} parent=1 // pred_check_branch
      %67 = sbr.rel (0) target = $region25
    $region24: #{tpu_custom_call.1} parent=1 // pred_region
      %s69 = ssub.s32 16, 16
      %70 = vsyncadd [#allocation14], %s69
      %s72 = sshll.u32 %s5, 4
      %s73 = int_to_ptr.vmem [resolvable:$true] %s72
      %75 = dma.vmem_to_smem %s73, 16, [#allocation15], [#allocation14]
    $region25: #{tpu_custom_call.1} parent=1 // pred_fallthru
      _
    // Predicated region
    $region26: #{tpu_custom_call.1} parent=1 // pred_check
      _
    $region27: #{tpu_custom_call.1} parent=1 // pred_check_branch
      %77 = sbr.rel (0) target = $region29
    $region28: #{tpu_custom_call.1} parent=1 // pred_region
      %s79 = ssub.s32 2048, 2048
      %80 = vsyncadd [#allocation5], %s79
      %s81 = sshll.u32 [#allocation16], 4
      %s82 = int_to_ptr.vmem [resolvable:$true] %s81
      %87 = dma.hbm_to_vmem [thread:$0]  %s6, 2048, %s82, [#allocation5], 128, 128, 8
    $region29: #{tpu_custom_call.1} parent=1 // pred_fallthru
      _
    // Predicated region
    $region30: #{tpu_custom_call.1} parent=1 // pred_check
      _
    $region31: #{tpu_custom_call.1} parent=1 // pred_check_branch
      %89 = sbr.rel (0) target = $region33
    $region32: #{tpu_custom_call.1} parent=1 // pred_region
      %90 = dma.done [#allocation7], 16
    $region33: #{tpu_custom_call.1} parent=1 // pred_fallthru
      _
    // Predicated region
    $region34: #{tpu_custom_call.1} parent=1 // pred_check
      _
    $region35: #{tpu_custom_call.1} parent=1 // pred_check_branch
      %92 = sbr.rel (0) target = $region37
    $region36: #{tpu_custom_call.1} parent=1 // pred_region
      %93 = dma.done [#allocation8], 16
    $region37: #{tpu_custom_call.1} parent=1 // pred_fallthru
      _
    // Predicated region
    $region38: #{tpu_custom_call.1} parent=1 // pred_check
      _
    $region39: #{tpu_custom_call.1} parent=1 // pred_check_branch
      %95 = sbr.rel (0) target = $region41
    $region40: #{tpu_custom_call.1} parent=1 // pred_region
      %96 = dma.done [#allocation11], 32
    $region41: #{tpu_custom_call.1} parent=1 // pred_fallthru
      _
    // Predicated region
    $region42: #{tpu_custom_call.1} parent=1 // pred_check
      _
    $region43: #{tpu_custom_call.1} parent=1 // pred_check_branch
      %98 = sbr.rel (0) target = $region45
    $region44: #{tpu_custom_call.1} parent=1 // pred_region
      %99 = dma.done [#allocation11], 16
    $region45: #{tpu_custom_call.1} parent=1 // pred_fallthru
      _
    // Predicated region
    $region46: #{tpu_custom_call.1} parent=1 // pred_check
      _
    $region47: #{tpu_custom_call.1} parent=1 // pred_check_branch
      %101 = sbr.rel (0) target = $region49
    $region48: #{tpu_custom_call.1} parent=1 // pred_region
      %102 = dma.done [#allocation14], 32
    $region49: #{tpu_custom_call.1} parent=1 // pred_fallthru
      _
    // Predicated region
    $region50: #{tpu_custom_call.1} parent=1 // pred_check
      _
    $region51: #{tpu_custom_call.1} parent=1 // pred_check_branch
      %104 = sbr.rel (0) target = $region53
    $region52: #{tpu_custom_call.1} parent=1 // pred_region
      %105 = dma.done [#allocation14], 16
    $region53: #{tpu_custom_call.1} parent=1 // pred_fallthru
      _
    // Predicated region
    $region54: #{tpu_custom_call.1} parent=1 // pred_check
      _
    $region55: #{tpu_custom_call.1} parent=1 // pred_check_branch
      %107 = sbr.rel (0) target = $region57
    $region56: #{tpu_custom_call.1} parent=1 // pred_region
      %108 = dma.done [#allocation5], 2048
    $region57: #{tpu_custom_call.1} parent=1 // pred_fallthru
      _
    %109 = sfence
    %vm110 = vcmask 286720
    %111 = vst.msk [vmem:[#allocation2] sm:$0x1] %vm110, 0.0
    %112 = vst.msk [vmem:[#allocation2 + $0x18] sm:$0x1] %vm110, 0.0
    %113 = vst.msk [vmem:[#allocation2 + $0x30] sm:$0x1] %vm110, 0.0
    %114 = vst.msk [vmem:[#allocation2 + $0x48] sm:$0x1] %vm110, 0.0
    %115 = vst.msk [vmem:[#allocation2 + $0x11] sm:$0x1] %vm110, 0.0
    %116 = vst.msk [vmem:[#allocation2 + $0x29] sm:$0x1] %vm110, 0.0
    %117 = vst.msk [vmem:[#allocation2 + $0x41] sm:$0x1] %vm110, 0.0
    %118 = vst.msk [vmem:[#allocation2 + $0x59] sm:$0x1] %vm110, 0.0
    %vm119 = vcmask 7168
    %120 = vst.msk [vmem:[#allocation2] sm:$0xff] %vm119, 0.0
    %121 = vst.msk [vmem:[#allocation2 + $0x8] sm:$0xff] %vm119, 0.0
    %vm122 = vcmask 1024
    %123 = vst.msk [vmem:[#allocation2 + $0x10] sm:$0x3] %vm122, 0.0
    %124 = vst.msk [vmem:[#allocation2 + $0x18] sm:$0xff] %vm119, 0.0
    %125 = vst.msk [vmem:[#allocation2 + $0x20] sm:$0xff] %vm119, 0.0
    %126 = vst.msk [vmem:[#allocation2 + $0x28] sm:$0x3] %vm122, 0.0
    %127 = vst.msk [vmem:[#allocation2 + $0x30] sm:$0xff] %vm119, 0.0
    %128 = vst.msk [vmem:[#allocation2 + $0x38] sm:$0xff] %vm119, 0.0
    %129 = vst.msk [vmem:[#allocation2 + $0x40] sm:$0x3] %vm122, 0.0
    %130 = vst.msk [vmem:[#allocation2 + $0x48] sm:$0xff] %vm119, 0.0
    %131 = vst.msk [vmem:[#allocation2 + $0x50] sm:$0xff] %vm119, 0.0
    %132 = vst.msk [vmem:[#allocation2 + $0x58] sm:$0x3] %vm122, 0.0
    %vm133 = vcmask 146568
    %134 = vst.msk [vmem:[#allocation2] sm:$0xff] %vm133, 0.0
    %135 = vst.msk [vmem:[#allocation2 + $0x8] sm:$0xff] %vm133, 0.0
    %vm136 = vcmask 140424
    %137 = vst.msk [vmem:[#allocation2 + $0x10] sm:$0x3] %vm136, 0.0
    %138 = vst.msk [vmem:[#allocation2 + $0x18] sm:$0xff] %vm133, 0.0
    %139 = vst.msk [vmem:[#allocation2 + $0x20] sm:$0xff] %vm133, 0.0
    %140 = vst.msk [vmem:[#allocation2 + $0x28] sm:$0x3] %vm136, 0.0
    %141 = vst.msk [vmem:[#allocation2 + $0x30] sm:$0xff] %vm133, 0.0
    %142 = vst.msk [vmem:[#allocation2 + $0x38] sm:$0xff] %vm133, 0.0
    %143 = vst.msk [vmem:[#allocation2 + $0x40] sm:$0x3] %vm136, 0.0
    %144 = vst.msk [vmem:[#allocation2 + $0x48] sm:$0xff] %vm133, 0.0
    %145 = vst.msk [vmem:[#allocation2 + $0x50] sm:$0xff] %vm133, 0.0
    %146 = vst.msk [vmem:[#allocation2 + $0x58] sm:$0x3] %vm136, 0.0
    %vm147 = vcmask 154768
    %148 = vst.msk [vmem:[#allocation2] sm:$0xff] %vm147, 0.0
    %149 = vst.msk [vmem:[#allocation2 + $0x8] sm:$0xff] %vm147, 0.0
    %vm150 = vcmask 148624
    %151 = vst.msk [vmem:[#allocation2 + $0x10] sm:$0x3] %vm150, 0.0
    %152 = vst.msk [vmem:[#allocation2 + $0x18] sm:$0xff] %vm147, 0.0
    %153 = vst.msk [vmem:[#allocation2 + $0x20] sm:$0xff] %vm147, 0.0
    %154 = vst.msk [vmem:[#allocation2 + $0x28] sm:$0x3] %vm150, 0.0
    %155 = vst.msk [vmem:[#allocation2 + $0x30] sm:$0xff] %vm147, 0.0
    %156 = vst.msk [vmem:[#allocation2 + $0x38] sm:$0xff] %vm147, 0.0
    %157 = vst.msk [vmem:[#allocation2 + $0x40] sm:$0x3] %vm150, 0.0
    %158 = vst.msk [vmem:[#allocation2 + $0x48] sm:$0xff] %vm147, 0.0
    %159 = vst.msk [vmem:[#allocation2 + $0x50] sm:$0xff] %vm147, 0.0
    %160 = vst.msk [vmem:[#allocation2 + $0x58] sm:$0x3] %vm150, 0.0
    %vm161 = vcmask 294168
    %162 = vst.msk [vmem:[#allocation2] sm:$0xff] %vm161, 0.0
    %163 = vst.msk [vmem:[#allocation2 + $0x8] sm:$0xff] %vm161, 0.0
    %vm164 = vcmask 288024
    %165 = vst.msk [vmem:[#allocation2 + $0x10] sm:$0x3] %vm164, 0.0
    %166 = vst.msk [vmem:[#allocation2 + $0x18] sm:$0xff] %vm161, 0.0
    %167 = vst.msk [vmem:[#allocation2 + $0x20] sm:$0xff] %vm161, 0.0
    %168 = vst.msk [vmem:[#allocation2 + $0x28] sm:$0x3] %vm164, 0.0
    %169 = vst.msk [vmem:[#allocation2 + $0x30] sm:$0xff] %vm161, 0.0
    %170 = vst.msk [vmem:[#allocation2 + $0x38] sm:$0xff] %vm161, 0.0
    %171 = vst.msk [vmem:[#allocation2 + $0x40] sm:$0x3] %vm164, 0.0
    %172 = vst.msk [vmem:[#allocation2 + $0x48] sm:$0xff] %vm161, 0.0
    %173 = vst.msk [vmem:[#allocation2 + $0x50] sm:$0xff] %vm161, 0.0
    %174 = vst.msk [vmem:[#allocation2 + $0x58] sm:$0x3] %vm164, 0.0
    %v175 = vld [vmem:[#allocation16] sm:$0xff]
    %v176 = vld [vmem:[#allocation16 + $0x8] sm:$0xff]
    %v177 = vld [vmem:[#allocation16 + $0x10] sm:$0xff]
    %v178 = vld [vmem:[#allocation16 + $0x18] sm:$0xff]
    %v179 = vld [vmem:[#allocation16 + $0x20] sm:$0xff]
    %v180 = vld [vmem:[#allocation16 + $0x28] sm:$0xff]
    %v181 = vld [vmem:[#allocation16 + $0x30] sm:$0xff]
    %v182 = vld [vmem:[#allocation16 + $0x38] sm:$0xff]
    %191 = vrot.lane.b32.xlu0 %v175, 1
    %v192 = vpop.permute.xlu0 %191
    %193 = vrot.lane.b32.xlu0 %v176, 1
    %v194 = vpop.permute.xlu0 %193
    %195 = vrot.lane.b32.xlu0 %v177, 1
    %v196 = vpop.permute.xlu0 %195
    %197 = vrot.lane.b32.xlu0 %v178, 1
    %v198 = vpop.permute.xlu0 %197
    %199 = vrot.lane.b32.xlu0 %v179, 1
    %v200 = vpop.permute.xlu0 %199
    %201 = vrot.lane.b32.xlu0 %v180, 1
    %v202 = vpop.permute.xlu0 %201
    %203 = vrot.lane.b32.xlu0 %v181, 1
    %v204 = vpop.permute.xlu0 %203
    %205 = vrot.lane.b32.xlu0 %v182, 1
    %v206 = vpop.permute.xlu0 %205
    %vm215 = vcmask 138248
    %216 = vst.msk [vmem:[#allocation2 + $0x1] sm:$0xff] %vm215, %v192
    %217 = vst.msk [vmem:[#allocation2 + $0x9] sm:$0xff] %vm215, %v194
    %218 = vst.msk [vmem:[#allocation2 + $0x19] sm:$0xff] %vm215, %v196
    %219 = vst.msk [vmem:[#allocation2 + $0x21] sm:$0xff] %vm215, %v198
    %220 = vst.msk [vmem:[#allocation2 + $0x31] sm:$0xff] %vm215, %v200
    %221 = vst.msk [vmem:[#allocation2 + $0x39] sm:$0xff] %vm215, %v202
    %222 = vst.msk [vmem:[#allocation2 + $0x49] sm:$0xff] %vm215, %v204
    %223 = vst.msk [vmem:[#allocation2 + $0x51] sm:$0xff] %vm215, %v206
    %s224 = scalar_lea.vmem [#allocation16], 64
    %v225 = vld [vmem:[%s224] sm:$0xff]
    %v226 = vld [vmem:[%s224 + $0x8] sm:$0xff]
    %v227 = vld [vmem:[%s224 + $0x10] sm:$0xff]
    %v228 = vld [vmem:[%s224 + $0x18] sm:$0xff]
    %v229 = vld [vmem:[%s224 + $0x20] sm:$0xff]
    %v230 = vld [vmem:[%s224 + $0x28] sm:$0xff]
    %v231 = vld [vmem:[%s224 + $0x30] sm:$0xff]
    %v232 = vld [vmem:[%s224 + $0x38] sm:$0xff]
    %241 = vrot.lane.b32.xlu0 %v225, 19
    %v242 = vpop.permute.xlu0 %241
    %243 = vrot.lane.b32.xlu0 %v226, 19
    %v244 = vpop.permute.xlu0 %243
    %245 = vrot.lane.b32.xlu0 %v227, 19
    %v246 = vpop.permute.xlu0 %245
    %247 = vrot.lane.b32.xlu0 %v228, 19
    %v248 = vpop.permute.xlu0 %247
    %249 = vrot.lane.b32.xlu0 %v229, 19
    %v250 = vpop.permute.xlu0 %249
    %251 = vrot.lane.b32.xlu0 %v230, 19
    %v252 = vpop.permute.xlu0 %251
    %253 = vrot.lane.b32.xlu0 %v231, 19
    %v254 = vpop.permute.xlu0 %253
    %255 = vrot.lane.b32.xlu0 %v232, 19
    %v256 = vpop.permute.xlu0 %255
    %vm265 = vcmask 285848
    %266 = vst.msk [vmem:[#allocation2 + $0x1] sm:$0xff] %vm265, %v242
    %267 = vst.msk [vmem:[#allocation2 + $0x9] sm:$0xff] %vm265, %v244
    %268 = vst.msk [vmem:[#allocation2 + $0x19] sm:$0xff] %vm265, %v246
    %269 = vst.msk [vmem:[#allocation2 + $0x21] sm:$0xff] %vm265, %v248
    %270 = vst.msk [vmem:[#allocation2 + $0x31] sm:$0xff] %vm265, %v250
    %271 = vst.msk [vmem:[#allocation2 + $0x39] sm:$0xff] %vm265, %v252
    %272 = vst.msk [vmem:[#allocation2 + $0x49] sm:$0xff] %vm265, %v254
    %273 = vst.msk [vmem:[#allocation2 + $0x51] sm:$0xff] %vm265, %v256
    %v274 = vld [vmem:[#allocation2] sm:$0xff]
    %v275 = vld [vmem:[#allocation2 + $0x8] sm:$0xff]
    %s276 = sld [smem:[#allocation10]]
    %v277 = vstv %s276
    %v278 = vmul.f32 %v274, %v277
    %v279 = vmul.f32 %v275, %v277
    %v280 = vadd.f32 %v278, 0.0
    %v281 = vadd.f32 %v279, 0.0
    %s282 = sld [smem:[#allocation10 + $0x24]]
    %v283 = vstv %s282
    %v284 = vmul.f32 %v274, %v283
    %v285 = vmul.f32 %v275, %v283
    %v286 = vadd.f32 %v284, 0.0
    %v287 = vadd.f32 %v285, 0.0
    %s288 = sld [smem:[#allocation10 + $0x48]]
    %v289 = vstv %s288
    %v290 = vmul.f32 %v274, %v289
    %v291 = vmul.f32 %v275, %v289
    %v292 = vadd.f32 %v290, 0.0
    %v293 = vadd.f32 %v291, 0.0
    %s294 = sld [smem:[#allocation10 + $0x6c]]
    %v295 = vstv %s294
    %v296 = vmul.f32 %v274, %v295
    %v297 = vmul.f32 %v275, %v295
    %v298 = vadd.f32 %v296, 0.0
    %v299 = vadd.f32 %v297, 0.0
    %s300 = sld [smem:[#allocation10 + $0x1]]
    %v301 = vstv %s300
    %v302 = vmul.f32 %v274, %v301
    %v303 = vmul.f32 %v275, %v301
    %306 = vrot.lane.b32.xlu0 %v302, 127
    %v307 = vpop.permute.xlu0 %306
    %308 = vrot.lane.b32.xlu0 %v303, 127
    %v309 = vpop.permute.xlu0 %308
    %v312 = vadd.f32 %v280, %v307
    %v313 = vadd.f32 %v281, %v309
    %s314 = sld [smem:[#allocation10 + $0x25]]
    %v315 = vstv %s314
    %v316 = vmul.f32 %v274, %v315
    %v317 = vmul.f32 %v275, %v315
    %320 = vrot.lane.b32.xlu0 %v316, 127
    %v321 = vpop.permute.xlu0 %320
    %322 = vrot.lane.b32.xlu0 %v317, 127
    %v323 = vpop.permute.xlu0 %322
    %v326 = vadd.f32 %v286, %v321
    %v327 = vadd.f32 %v287, %v323
    %s328 = sld [smem:[#allocation10 + $0x49]]
    %v329 = vstv %s328
    %v330 = vmul.f32 %v274, %v329
    %v331 = vmul.f32 %v275, %v329
    %334 = vrot.lane.b32.xlu0 %v330, 127
    %v335 = vpop.permute.xlu0 %334
    %336 = vrot.lane.b32.xlu0 %v331, 127
    %v337 = vpop.permute.xlu0 %336
    %v340 = vadd.f32 %v292, %v335
    %v341 = vadd.f32 %v293, %v337
    %s342 = sld [smem:[#allocation10 + $0x6d]]
    %v343 = vstv %s342
    %v344 = vmul.f32 %v274, %v343
    %v345 = vmul.f32 %v275, %v343
    %348 = vrot.lane.b32.xlu0 %v344, 127
    %v349 = vpop.permute.xlu0 %348
    %350 = vrot.lane.b32.xlu0 %v345, 127
    %v351 = vpop.permute.xlu0 %350
    %v354 = vadd.f32 %v298, %v349
    %v355 = vadd.f32 %v299, %v351
    %s356 = sld [smem:[#allocation10 + $0x2]]
    %v357 = vstv %s356
    %v358 = vmul.f32 %v274, %v357
    %v359 = vmul.f32 %v275, %v357
    %362 = vrot.lane.b32.xlu0 %v358, 126
    %v363 = vpop.permute.xlu0 %362
    %364 = vrot.lane.b32.xlu0 %v359, 126
    %v365 = vpop.permute.xlu0 %364
    %v368 = vadd.f32 %v312, %v363
    %v369 = vadd.f32 %v313, %v365
    %s370 = sld [smem:[#allocation10 + $0x26]]
    %v371 = vstv %s370
    %v372 = vmul.f32 %v274, %v371
    %v373 = vmul.f32 %v275, %v371
    %376 = vrot.lane.b32.xlu0 %v372, 126
    %v377 = vpop.permute.xlu0 %376
    %378 = vrot.lane.b32.xlu0 %v373, 126
    %v379 = vpop.permute.xlu0 %378
    %v382 = vadd.f32 %v326, %v377
    %v383 = vadd.f32 %v327, %v379
    %s384 = sld [smem:[#allocation10 + $0x4a]]
    %v385 = vstv %s384
    %v386 = vmul.f32 %v274, %v385
    %v387 = vmul.f32 %v275, %v385
    %390 = vrot.lane.b32.xlu0 %v386, 126
    %v391 = vpop.permute.xlu0 %390
    %392 = vrot.lane.b32.xlu0 %v387, 126
    %v393 = vpop.permute.xlu0 %392
    %v396 = vadd.f32 %v340, %v391
    %v397 = vadd.f32 %v341, %v393
    %s398 = sld [smem:[#allocation10 + $0x6e]]
    %v399 = vstv %s398
    %v400 = vmul.f32 %v274, %v399
    %v401 = vmul.f32 %v275, %v399
    %404 = vrot.lane.b32.xlu0 %v400, 126
    %v405 = vpop.permute.xlu0 %404
    %406 = vrot.lane.b32.xlu0 %v401, 126
    %v407 = vpop.permute.xlu0 %406
    %v410 = vadd.f32 %v354, %v405
    %v411 = vadd.f32 %v355, %v407
    %v412 = vld [vmem:[#allocation2 + $0x1] sm:$0xff]
    %v413 = vld [vmem:[#allocation2 + $0x9] sm:$0xff]
    %s414 = sld [smem:[#allocation10 + $0x3]]
    %v415 = vstv %s414
    %v416 = vmul.f32 %v412, %v415
    %v417 = vmul.f32 %v413, %v415
    %v418 = vadd.f32 %v368, %v416
    %v419 = vadd.f32 %v369, %v417
    %s420 = sld [smem:[#allocation10 + $0x27]]
    %v421 = vstv %s420
    %v422 = vmul.f32 %v412, %v421
    %v423 = vmul.f32 %v413, %v421
    %v424 = vadd.f32 %v382, %v422
    %v425 = vadd.f32 %v383, %v423
    %s426 = sld [smem:[#allocation10 + $0x4b]]
    %v427 = vstv %s426
    %v428 = vmul.f32 %v412, %v427
    %v429 = vmul.f32 %v413, %v427
    %v430 = vadd.f32 %v396, %v428
    %v431 = vadd.f32 %v397, %v429
    %s432 = sld [smem:[#allocation10 + $0x6f]]
    %v433 = vstv %s432
    %v434 = vmul.f32 %v412, %v433
    %v435 = vmul.f32 %v413, %v433
    %v436 = vadd.f32 %v410, %v434
    %v437 = vadd.f32 %v411, %v435
    %s438 = sld [smem:[#allocation10 + $0x4]]
    %v439 = vstv %s438
    %v440 = vmul.f32 %v412, %v439
    %v441 = vmul.f32 %v413, %v439
    %444 = vrot.lane.b32.xlu0 %v440, 127
    %v445 = vpop.permute.xlu0 %444
    %446 = vrot.lane.b32.xlu0 %v441, 127
    %v447 = vpop.permute.xlu0 %446
    %v450 = vadd.f32 %v418, %v445
    %v451 = vadd.f32 %v419, %v447
    %s452 = sld [smem:[#allocation4]]
    %v453 = vstv %s452
    %v454 = vmul.f32 %v412, %v453
    %v455 = vmul.f32 %v413, %v453
    %v456 = vadd.f32 %v454, 0.0
    %v457 = vadd.f32 %v455, 0.0
    %s458 = sld [smem:[#allocation10 + $0x28]]
    %v459 = vstv %s458
    %v460 = vmul.f32 %v412, %v459
    %v461 = vmul.f32 %v413, %v459
    %464 = vrot.lane.b32.xlu0 %v460, 127
    %v465 = vpop.permute.xlu0 %464
    %466 = vrot.lane.b32.xlu0 %v461, 127
    %v467 = vpop.permute.xlu0 %466
    %v470 = vadd.f32 %v424, %v465
    %v471 = vadd.f32 %v425, %v467
    %s472 = sld [smem:[#allocation4 + $0x4]]
    %v473 = vstv %s472
    %v474 = vmul.f32 %v412, %v473
    %v475 = vmul.f32 %v413, %v473
    %v476 = vadd.f32 %v474, 0.0
    %v477 = vadd.f32 %v475, 0.0
    %s478 = sld [smem:[#allocation10 + $0x4c]]
    %v479 = vstv %s478
    %v480 = vmul.f32 %v412, %v479
    %v481 = vmul.f32 %v413, %v479
    %484 = vrot.lane.b32.xlu0 %v480, 127
    %v485 = vpop.permute.xlu0 %484
    %486 = vrot.lane.b32.xlu0 %v481, 127
    %v487 = vpop.permute.xlu0 %486
    %v490 = vadd.f32 %v430, %v485
    %v491 = vadd.f32 %v431, %v487
    %s492 = sld [smem:[#allocation4 + $0x8]]
    %v493 = vstv %s492
    %v494 = vmul.f32 %v412, %v493
    %v495 = vmul.f32 %v413, %v493
    %v496 = vadd.f32 %v494, 0.0
    %v497 = vadd.f32 %v495, 0.0
    %s498 = sld [smem:[#allocation10 + $0x70]]
    %v499 = vstv %s498
    %v500 = vmul.f32 %v412, %v499
    %v501 = vmul.f32 %v413, %v499
    %504 = vrot.lane.b32.xlu0 %v500, 127
    %v505 = vpop.permute.xlu0 %504
    %506 = vrot.lane.b32.xlu0 %v501, 127
    %v507 = vpop.permute.xlu0 %506
    %v510 = vadd.f32 %v436, %v505
    %v511 = vadd.f32 %v437, %v507
    %s512 = sld [smem:[#allocation4 + $0xc]]
    %v513 = vstv %s512
    %v514 = vmul.f32 %v412, %v513
    %v515 = vmul.f32 %v413, %v513
    %v516 = vadd.f32 %v514, 0.0
    %v517 = vadd.f32 %v515, 0.0
    %s518 = sld [smem:[#allocation10 + $0x5]]
    %v519 = vstv %s518
    %v520 = vmul.f32 %v412, %v519
    %v521 = vmul.f32 %v413, %v519
    %524 = vrot.lane.b32.xlu0 %v520, 126
    %v525 = vpop.permute.xlu0 %524
    %526 = vrot.lane.b32.xlu0 %v521, 126
    %v527 = vpop.permute.xlu0 %526
    %v530 = vadd.f32 %v450, %v525
    %v531 = vadd.f32 %v451, %v527
    %s532 = sld [smem:[#allocation10 + $0x29]]
    %v533 = vstv %s532
    %v534 = vmul.f32 %v412, %v533
    %v535 = vmul.f32 %v413, %v533
    %538 = vrot.lane.b32.xlu0 %v534, 126
    %v539 = vpop.permute.xlu0 %538
    %540 = vrot.lane.b32.xlu0 %v535, 126
    %v541 = vpop.permute.xlu0 %540
    %v544 = vadd.f32 %v470, %v539
    %v545 = vadd.f32 %v471, %v541
    %s546 = sld [smem:[#allocation10 + $0x4d]]
    %v547 = vstv %s546
    %v548 = vmul.f32 %v412, %v547
    %v549 = vmul.f32 %v413, %v547
    %552 = vrot.lane.b32.xlu0 %v548, 126
    %v553 = vpop.permute.xlu0 %552
    %554 = vrot.lane.b32.xlu0 %v549, 126
    %v555 = vpop.permute.xlu0 %554
    %v558 = vadd.f32 %v490, %v553
    %v559 = vadd.f32 %v491, %v555
    %s560 = sld [smem:[#allocation10 + $0x71]]
    %v561 = vstv %s560
    %v562 = vmul.f32 %v412, %v561
    %v563 = vmul.f32 %v413, %v561
    %566 = vrot.lane.b32.xlu0 %v562, 126
    %v567 = vpop.permute.xlu0 %566
    %568 = vrot.lane.b32.xlu0 %v563, 126
    %v569 = vpop.permute.xlu0 %568
    %v572 = vadd.f32 %v510, %v567
    %v573 = vadd.f32 %v511, %v569
    %v574 = vld [vmem:[#allocation2 + $0x2] sm:$0xff]
    %v575 = vld [vmem:[#allocation2 + $0xa] sm:$0xff]
    %s576 = sld [smem:[#allocation10 + $0x6]]
    %v577 = vstv %s576
    %v578 = vmul.f32 %v574, %v577
    %v579 = vmul.f32 %v575, %v577
    %v580 = vadd.f32 %v530, %v578
    %v581 = vadd.f32 %v531, %v579
    %s582 = sld [smem:[#allocation10 + $0x2a]]
    %v583 = vstv %s582
    %v584 = vmul.f32 %v574, %v583
    %v585 = vmul.f32 %v575, %v583
    %v586 = vadd.f32 %v544, %v584
    %v587 = vadd.f32 %v545, %v585
    %s588 = sld [smem:[#allocation10 + $0x4e]]
    %v589 = vstv %s588
    %v590 = vmul.f32 %v574, %v589
    %v591 = vmul.f32 %v575, %v589
    %v592 = vadd.f32 %v558, %v590
    %v593 = vadd.f32 %v559, %v591
    %s594 = sld [smem:[#allocation10 + $0x72]]
    %v595 = vstv %s594
    %v596 = vmul.f32 %v574, %v595
    %v597 = vmul.f32 %v575, %v595
    %v598 = vadd.f32 %v572, %v596
    %v599 = vadd.f32 %v573, %v597
    %s600 = sld [smem:[#allocation10 + $0x7]]
    %v601 = vstv %s600
    %v602 = vmul.f32 %v574, %v601
    %v603 = vmul.f32 %v575, %v601
    %606 = vrot.lane.b32.xlu0 %v602, 127
    %v607 = vpop.permute.xlu0 %606
    %608 = vrot.lane.b32.xlu0 %v603, 127
    %v609 = vpop.permute.xlu0 %608
    %v612 = vadd.f32 %v580, %v607
    %v613 = vadd.f32 %v581, %v609
    %s614 = sld [smem:[#allocation10 + $0x2b]]
    %v615 = vstv %s614
    %v616 = vmul.f32 %v574, %v615
    %v617 = vmul.f32 %v575, %v615
    %620 = vrot.lane.b32.xlu0 %v616, 127
    %v621 = vpop.permute.xlu0 %620
    %622 = vrot.lane.b32.xlu0 %v617, 127
    %v623 = vpop.permute.xlu0 %622
    %v626 = vadd.f32 %v586, %v621
    %v627 = vadd.f32 %v587, %v623
    %s628 = sld [smem:[#allocation10 + $0x4f]]
    %v629 = vstv %s628
    %v630 = vmul.f32 %v574, %v629
    %v631 = vmul.f32 %v575, %v629
    %634 = vrot.lane.b32.xlu0 %v630, 127
    %v635 = vpop.permute.xlu0 %634
    %636 = vrot.lane.b32.xlu0 %v631, 127
    %v637 = vpop.permute.xlu0 %636
    %v640 = vadd.f32 %v592, %v635
    %v641 = vadd.f32 %v593, %v637
    %s642 = sld [smem:[#allocation10 + $0x73]]
    %v643 = vstv %s642
    %v644 = vmul.f32 %v574, %v643
    %v645 = vmul.f32 %v575, %v643
    %648 = vrot.lane.b32.xlu0 %v644, 127
    %v649 = vpop.permute.xlu0 %648
    %650 = vrot.lane.b32.xlu0 %v645, 127
    %v651 = vpop.permute.xlu0 %650
    %v654 = vadd.f32 %v598, %v649
    %v655 = vadd.f32 %v599, %v651
    %s656 = sld [smem:[#allocation10 + $0x8]]
    %v657 = vstv %s656
    %v658 = vmul.f32 %v574, %v657
    %v659 = vmul.f32 %v575, %v657
    %662 = vrot.lane.b32.xlu0 %v658, 126
    %v663 = vpop.permute.xlu0 %662
    %664 = vrot.lane.b32.xlu0 %v659, 126
    %v665 = vpop.permute.xlu0 %664
    %v668 = vadd.f32 %v612, %v663
    %v669 = vadd.f32 %v613, %v665
    %s670 = sld [smem:[#allocation10 + $0x2c]]
    %v671 = vstv %s670
    %v672 = vmul.f32 %v574, %v671
    %v673 = vmul.f32 %v575, %v671
    %676 = vrot.lane.b32.xlu0 %v672, 126
    %v677 = vpop.permute.xlu0 %676
    %678 = vrot.lane.b32.xlu0 %v673, 126
    %v679 = vpop.permute.xlu0 %678
    %v682 = vadd.f32 %v626, %v677
    %v683 = vadd.f32 %v627, %v679
    %s684 = sld [smem:[#allocation10 + $0x50]]
    %v685 = vstv %s684
    %v686 = vmul.f32 %v574, %v685
    %v687 = vmul.f32 %v575, %v685
    %690 = vrot.lane.b32.xlu0 %v686, 126
    %v691 = vpop.permute.xlu0 %690
    %692 = vrot.lane.b32.xlu0 %v687, 126
    %v693 = vpop.permute.xlu0 %692
    %v696 = vadd.f32 %v640, %v691
    %v697 = vadd.f32 %v641, %v693
    %s698 = sld [smem:[#allocation10 + $0x74]]
    %v699 = vstv %s698
    %v700 = vmul.f32 %v574, %v699
    %v701 = vmul.f32 %v575, %v699
    %704 = vrot.lane.b32.xlu0 %v700, 126
    %v705 = vpop.permute.xlu0 %704
    %706 = vrot.lane.b32.xlu0 %v701, 126
    %v707 = vpop.permute.xlu0 %706
    %v710 = vadd.f32 %v654, %v705
    %v711 = vadd.f32 %v655, %v707
    %s712 = scalar_lea.vmem [#allocation2], 24
    %v713 = vld [vmem:[%s712] sm:$0xff]
    %v714 = vld [vmem:[%s712 + $0x8] sm:$0xff]
    %s715 = sld [smem:[#allocation10 + $0x9]]
    %v716 = vstv %s715
    %v717 = vmul.f32 %v713, %v716
    %v718 = vmul.f32 %v714, %v716
    %v719 = vadd.f32 %v668, %v717
    %v720 = vadd.f32 %v669, %v718
    %s721 = sld [smem:[#allocation10 + $0x2d]]
    %v722 = vstv %s721
    %v723 = vmul.f32 %v713, %v722
    %v724 = vmul.f32 %v714, %v722
    %v725 = vadd.f32 %v682, %v723
    %v726 = vadd.f32 %v683, %v724
    %s727 = sld [smem:[#allocation10 + $0x51]]
    %v728 = vstv %s727
    %v729 = vmul.f32 %v713, %v728
    %v730 = vmul.f32 %v714, %v728
    %v731 = vadd.f32 %v696, %v729
    %v732 = vadd.f32 %v697, %v730
    %s733 = sld [smem:[#allocation10 + $0x75]]
    %v734 = vstv %s733
    %v735 = vmul.f32 %v713, %v734
    %v736 = vmul.f32 %v714, %v734
    %v737 = vadd.f32 %v710, %v735
    %v738 = vadd.f32 %v711, %v736
    %s739 = sld [smem:[#allocation10 + $0xa]]
    %v740 = vstv %s739
    %v741 = vmul.f32 %v713, %v740
    %v742 = vmul.f32 %v714, %v740
    %745 = vrot.lane.b32.xlu0 %v741, 127
    %v746 = vpop.permute.xlu0 %745
    %747 = vrot.lane.b32.xlu0 %v742, 127
    %v748 = vpop.permute.xlu0 %747
    %v751 = vadd.f32 %v719, %v746
    %v752 = vadd.f32 %v720, %v748
    %s753 = sld [smem:[#allocation10 + $0x2e]]
    %v754 = vstv %s753
    %v755 = vmul.f32 %v713, %v754
    %v756 = vmul.f32 %v714, %v754
    %759 = vrot.lane.b32.xlu0 %v755, 127
    %v760 = vpop.permute.xlu0 %759
    %761 = vrot.lane.b32.xlu0 %v756, 127
    %v762 = vpop.permute.xlu0 %761
    %v765 = vadd.f32 %v725, %v760
    %v766 = vadd.f32 %v726, %v762
    %s767 = sld [smem:[#allocation10 + $0x52]]
    %v768 = vstv %s767
    %v769 = vmul.f32 %v713, %v768
    %v770 = vmul.f32 %v714, %v768
    %773 = vrot.lane.b32.xlu0 %v769, 127
    %v774 = vpop.permute.xlu0 %773
    %775 = vrot.lane.b32.xlu0 %v770, 127
    %v776 = vpop.permute.xlu0 %775
    %v779 = vadd.f32 %v731, %v774
    %v780 = vadd.f32 %v732, %v776
    %s781 = sld [smem:[#allocation10 + $0x76]]
    %v782 = vstv %s781
    %v783 = vmul.f32 %v713, %v782
    %v784 = vmul.f32 %v714, %v782
    %787 = vrot.lane.b32.xlu0 %v783, 127
    %v788 = vpop.permute.xlu0 %787
    %789 = vrot.lane.b32.xlu0 %v784, 127
    %v790 = vpop.permute.xlu0 %789
    %v793 = vadd.f32 %v737, %v788
    %v794 = vadd.f32 %v738, %v790
    %s795 = sld [smem:[#allocation10 + $0xb]]
    %v796 = vstv %s795
    %v797 = vmul.f32 %v713, %v796
    %v798 = vmul.f32 %v714, %v796
    %801 = vrot.lane.b32.xlu0 %v797, 126
    %v802 = vpop.permute.xlu0 %801
    %803 = vrot.lane.b32.xlu0 %v798, 126
    %v804 = vpop.permute.xlu0 %803
    %v807 = vadd.f32 %v751, %v802
    %v808 = vadd.f32 %v752, %v804
    %s809 = sld [smem:[#allocation10 + $0x2f]]
    %v810 = vstv %s809
    %v811 = vmul.f32 %v713, %v810
    %v812 = vmul.f32 %v714, %v810
    %815 = vrot.lane.b32.xlu0 %v811, 126
    %v816 = vpop.permute.xlu0 %815
    %817 = vrot.lane.b32.xlu0 %v812, 126
    %v818 = vpop.permute.xlu0 %817
    %v821 = vadd.f32 %v765, %v816
    %v822 = vadd.f32 %v766, %v818
    %s823 = sld [smem:[#allocation10 + $0x53]]
    %v824 = vstv %s823
    %v825 = vmul.f32 %v713, %v824
    %v826 = vmul.f32 %v714, %v824
    %829 = vrot.lane.b32.xlu0 %v825, 126
    %v830 = vpop.permute.xlu0 %829
    %831 = vrot.lane.b32.xlu0 %v826, 126
    %v832 = vpop.permute.xlu0 %831
    %v835 = vadd.f32 %v779, %v830
    %v836 = vadd.f32 %v780, %v832
    %s837 = sld [smem:[#allocation10 + $0x77]]
    %v838 = vstv %s837
    %v839 = vmul.f32 %v713, %v838
    %v840 = vmul.f32 %v714, %v838
    %843 = vrot.lane.b32.xlu0 %v839, 126
    %v844 = vpop.permute.xlu0 %843
    %845 = vrot.lane.b32.xlu0 %v840, 126
    %v846 = vpop.permute.xlu0 %845
    %v849 = vadd.f32 %v793, %v844
    %v850 = vadd.f32 %v794, %v846
    %v851 = vld [vmem:[%s712 + $0x1] sm:$0xff]
    %v852 = vld [vmem:[%s712 + $0x9] sm:$0xff]
    %s853 = sld [smem:[#allocation10 + $0xc]]
    %v854 = vstv %s853
    %v855 = vmul.f32 %v851, %v854
    %v856 = vmul.f32 %v852, %v854
    %v857 = vadd.f32 %v807, %v855
    %v858 = vadd.f32 %v808, %v856
    %s859 = sld [smem:[#allocation10 + $0x30]]
    %v860 = vstv %s859
    %v861 = vmul.f32 %v851, %v860
    %v862 = vmul.f32 %v852, %v860
    %v863 = vadd.f32 %v821, %v861
    %v864 = vadd.f32 %v822, %v862
    %s865 = sld [smem:[#allocation10 + $0x54]]
    %v866 = vstv %s865
    %v867 = vmul.f32 %v851, %v866
    %v868 = vmul.f32 %v852, %v866
    %v869 = vadd.f32 %v835, %v867
    %v870 = vadd.f32 %v836, %v868
    %s871 = sld [smem:[#allocation10 + $0x78]]
    %v872 = vstv %s871
    %v873 = vmul.f32 %v851, %v872
    %v874 = vmul.f32 %v852, %v872
    %v875 = vadd.f32 %v849, %v873
    %v876 = vadd.f32 %v850, %v874
    %s877 = sld [smem:[#allocation10 + $0xd]]
    %v878 = vstv %s877
    %v879 = vmul.f32 %v851, %v878
    %v880 = vmul.f32 %v852, %v878
    %883 = vrot.lane.b32.xlu0 %v879, 127
    %v884 = vpop.permute.xlu0 %883
    %885 = vrot.lane.b32.xlu0 %v880, 127
    %v886 = vpop.permute.xlu0 %885
    %v889 = vadd.f32 %v857, %v884
    %v890 = vadd.f32 %v858, %v886
    %s891 = sld [smem:[#allocation4 + $0x1]]
    %v892 = vstv %s891
    %v893 = vmul.f32 %v851, %v892
    %v894 = vmul.f32 %v852, %v892
    %v895 = vadd.f32 %v456, %v893
    %v896 = vadd.f32 %v457, %v894
    %s897 = sld [smem:[#allocation10 + $0x31]]
    %v898 = vstv %s897
    %v899 = vmul.f32 %v851, %v898
    %v900 = vmul.f32 %v852, %v898
    %903 = vrot.lane.b32.xlu0 %v899, 127
    %v904 = vpop.permute.xlu0 %903
    %905 = vrot.lane.b32.xlu0 %v900, 127
    %v906 = vpop.permute.xlu0 %905
    %v909 = vadd.f32 %v863, %v904
    %v910 = vadd.f32 %v864, %v906
    %s911 = sld [smem:[#allocation4 + $0x5]]
    %v912 = vstv %s911
    %v913 = vmul.f32 %v851, %v912
    %v914 = vmul.f32 %v852, %v912
    %v915 = vadd.f32 %v476, %v913
    %v916 = vadd.f32 %v477, %v914
    %s917 = sld [smem:[#allocation10 + $0x55]]
    %v918 = vstv %s917
    %v919 = vmul.f32 %v851, %v918
    %v920 = vmul.f32 %v852, %v918
    %923 = vrot.lane.b32.xlu0 %v919, 127
    %v924 = vpop.permute.xlu0 %923
    %925 = vrot.lane.b32.xlu0 %v920, 127
    %v926 = vpop.permute.xlu0 %925
    %v929 = vadd.f32 %v869, %v924
    %v930 = vadd.f32 %v870, %v926
    %s931 = sld [smem:[#allocation4 + $0x9]]
    %v932 = vstv %s931
    %v933 = vmul.f32 %v851, %v932
    %v934 = vmul.f32 %v852, %v932
    %v935 = vadd.f32 %v496, %v933
    %v936 = vadd.f32 %v497, %v934
    %s937 = sld [smem:[#allocation10 + $0x79]]
    %v938 = vstv %s937
    %v939 = vmul.f32 %v851, %v938
    %v940 = vmul.f32 %v852, %v938
    %943 = vrot.lane.b32.xlu0 %v939, 127
    %v944 = vpop.permute.xlu0 %943
    %945 = vrot.lane.b32.xlu0 %v940, 127
    %v946 = vpop.permute.xlu0 %945
    %v949 = vadd.f32 %v875, %v944
    %v950 = vadd.f32 %v876, %v946
    %s951 = sld [smem:[#allocation4 + $0xd]]
    %v952 = vstv %s951
    %v953 = vmul.f32 %v851, %v952
    %v954 = vmul.f32 %v852, %v952
    %v955 = vadd.f32 %v516, %v953
    %v956 = vadd.f32 %v517, %v954
    %s957 = sld [smem:[#allocation10 + $0xe]]
    %v958 = vstv %s957
    %v959 = vmul.f32 %v851, %v958
    %v960 = vmul.f32 %v852, %v958
    %963 = vrot.lane.b32.xlu0 %v959, 126
    %v964 = vpop.permute.xlu0 %963
    %965 = vrot.lane.b32.xlu0 %v960, 126
    %v966 = vpop.permute.xlu0 %965
    %v969 = vadd.f32 %v889, %v964
    %v970 = vadd.f32 %v890, %v966
    %s971 = sld [smem:[#allocation10 + $0x32]]
    %v972 = vstv %s971
    %v973 = vmul.f32 %v851, %v972
    %v974 = vmul.f32 %v852, %v972
    %977 = vrot.lane.b32.xlu0 %v973, 126
    %v978 = vpop.permute.xlu0 %977
    %979 = vrot.lane.b32.xlu0 %v974, 126
    %v980 = vpop.permute.xlu0 %979
    %v983 = vadd.f32 %v909, %v978
    %v984 = vadd.f32 %v910, %v980
    %s985 = sld [smem:[#allocation10 + $0x56]]
    %v986 = vstv %s985
    %v987 = vmul.f32 %v851, %v986
    %v988 = vmul.f32 %v852, %v986
    %991 = vrot.lane.b32.xlu0 %v987, 126
    %v992 = vpop.permute.xlu0 %991
    %993 = vrot.lane.b32.xlu0 %v988, 126
    %v994 = vpop.permute.xlu0 %993
    %v997 = vadd.f32 %v929, %v992
    %v998 = vadd.f32 %v930, %v994
    %s999 = sld [smem:[#allocation10 + $0x7a]]
    %v1000 = vstv %s999
    %v1001 = vmul.f32 %v851, %v1000
    %v1002 = vmul.f32 %v852, %v1000
    %1005 = vrot.lane.b32.xlu0 %v1001, 126
    %v1006 = vpop.permute.xlu0 %1005
    %1007 = vrot.lane.b32.xlu0 %v1002, 126
    %v1008 = vpop.permute.xlu0 %1007
    %v1011 = vadd.f32 %v949, %v1006
    %v1012 = vadd.f32 %v950, %v1008
    %v1013 = vld [vmem:[%s712 + $0x2] sm:$0xff]
    %v1014 = vld [vmem:[%s712 + $0xa] sm:$0xff]
    %s1015 = sld [smem:[#allocation10 + $0xf]]
    %v1016 = vstv %s1015
    %v1017 = vmul.f32 %v1013, %v1016
    %v1018 = vmul.f32 %v1014, %v1016
    %v1019 = vadd.f32 %v969, %v1017
    %v1020 = vadd.f32 %v970, %v1018
    %s1021 = sld [smem:[#allocation10 + $0x33]]
    %v1022 = vstv %s1021
    %v1023 = vmul.f32 %v1013, %v1022
    %v1024 = vmul.f32 %v1014, %v1022
    %v1025 = vadd.f32 %v983, %v1023
    %v1026 = vadd.f32 %v984, %v1024
    %s1027 = sld [smem:[#allocation10 + $0x57]]
    %v1028 = vstv %s1027
    %v1029 = vmul.f32 %v1013, %v1028
    %v1030 = vmul.f32 %v1014, %v1028
    %v1031 = vadd.f32 %v997, %v1029
    %v1032 = vadd.f32 %v998, %v1030
    %s1033 = sld [smem:[#allocation10 + $0x7b]]
    %v1034 = vstv %s1033
    %v1035 = vmul.f32 %v1013, %v1034
    %v1036 = vmul.f32 %v1014, %v1034
    %v1037 = vadd.f32 %v1011, %v1035
    %v1038 = vadd.f32 %v1012, %v1036
    %s1039 = sld [smem:[#allocation10 + $0x10]]
    %v1040 = vstv %s1039
    %v1041 = vmul.f32 %v1013, %v1040
    %v1042 = vmul.f32 %v1014, %v1040
    %1045 = vrot.lane.b32.xlu0 %v1041, 127
    %v1046 = vpop.permute.xlu0 %1045
    %1047 = vrot.lane.b32.xlu0 %v1042, 127
    %v1048 = vpop.permute.xlu0 %1047
    %v1051 = vadd.f32 %v1019, %v1046
    %v1052 = vadd.f32 %v1020, %v1048
    %s1053 = sld [smem:[#allocation10 + $0x34]]
    %v1054 = vstv %s1053
    %v1055 = vmul.f32 %v1013, %v1054
    %v1056 = vmul.f32 %v1014, %v1054
    %1059 = vrot.lane.b32.xlu0 %v1055, 127
    %v1060 = vpop.permute.xlu0 %1059
    %1061 = vrot.lane.b32.xlu0 %v1056, 127
    %v1062 = vpop.permute.xlu0 %1061
    %v1065 = vadd.f32 %v1025, %v1060
    %v1066 = vadd.f32 %v1026, %v1062
    %s1067 = sld [smem:[#allocation10 + $0x58]]
    %v1068 = vstv %s1067
    %v1069 = vmul.f32 %v1013, %v1068
    %v1070 = vmul.f32 %v1014, %v1068
    %1073 = vrot.lane.b32.xlu0 %v1069, 127
    %v1074 = vpop.permute.xlu0 %1073
    %1075 = vrot.lane.b32.xlu0 %v1070, 127
    %v1076 = vpop.permute.xlu0 %1075
    %v1079 = vadd.f32 %v1031, %v1074
    %v1080 = vadd.f32 %v1032, %v1076
    %s1081 = sld [smem:[#allocation10 + $0x7c]]
    %v1082 = vstv %s1081
    %v1083 = vmul.f32 %v1013, %v1082
    %v1084 = vmul.f32 %v1014, %v1082
    %1087 = vrot.lane.b32.xlu0 %v1083, 127
    %v1088 = vpop.permute.xlu0 %1087
    %1089 = vrot.lane.b32.xlu0 %v1084, 127
    %v1090 = vpop.permute.xlu0 %1089
    %v1093 = vadd.f32 %v1037, %v1088
    %v1094 = vadd.f32 %v1038, %v1090
    %s1095 = sld [smem:[#allocation10 + $0x11]]
    %v1096 = vstv %s1095
    %v1097 = vmul.f32 %v1013, %v1096
    %v1098 = vmul.f32 %v1014, %v1096
    %1101 = vrot.lane.b32.xlu0 %v1097, 126
    %v1102 = vpop.permute.xlu0 %1101
    %1103 = vrot.lane.b32.xlu0 %v1098, 126
    %v1104 = vpop.permute.xlu0 %1103
    %v1107 = vadd.f32 %v1051, %v1102
    %v1108 = vadd.f32 %v1052, %v1104
    %s1109 = sld [smem:[#allocation10 + $0x35]]
    %v1110 = vstv %s1109
    %v1111 = vmul.f32 %v1013, %v1110
    %v1112 = vmul.f32 %v1014, %v1110
    %1115 = vrot.lane.b32.xlu0 %v1111, 126
    %v1116 = vpop.permute.xlu0 %1115
    %1117 = vrot.lane.b32.xlu0 %v1112, 126
    %v1118 = vpop.permute.xlu0 %1117
    %v1121 = vadd.f32 %v1065, %v1116
    %v1122 = vadd.f32 %v1066, %v1118
    %s1123 = sld [smem:[#allocation10 + $0x59]]
    %v1124 = vstv %s1123
    %v1125 = vmul.f32 %v1013, %v1124
    %v1126 = vmul.f32 %v1014, %v1124
    %1129 = vrot.lane.b32.xlu0 %v1125, 126
    %v1130 = vpop.permute.xlu0 %1129
    %1131 = vrot.lane.b32.xlu0 %v1126, 126
    %v1132 = vpop.permute.xlu0 %1131
    %v1135 = vadd.f32 %v1079, %v1130
    %v1136 = vadd.f32 %v1080, %v1132
    %s1137 = sld [smem:[#allocation10 + $0x7d]]
    %v1138 = vstv %s1137
    %v1139 = vmul.f32 %v1013, %v1138
    %v1140 = vmul.f32 %v1014, %v1138
    %1143 = vrot.lane.b32.xlu0 %v1139, 126
    %v1144 = vpop.permute.xlu0 %1143
    %1145 = vrot.lane.b32.xlu0 %v1140, 126
    %v1146 = vpop.permute.xlu0 %1145
    %v1149 = vadd.f32 %v1093, %v1144
    %v1150 = vadd.f32 %v1094, %v1146
    %s1151 = scalar_lea.vmem [#allocation2], 48
    %v1152 = vld [vmem:[%s1151] sm:$0xff]
    %v1153 = vld [vmem:[%s1151 + $0x8] sm:$0xff]
    %s1154 = sld [smem:[#allocation10 + $0x12]]
    %v1155 = vstv %s1154
    %v1156 = vmul.f32 %v1152, %v1155
    %v1157 = vmul.f32 %v1153, %v1155
    %v1158 = vadd.f32 %v1107, %v1156
    %v1159 = vadd.f32 %v1108, %v1157
    %s1160 = sld [smem:[#allocation10 + $0x36]]
    %v1161 = vstv %s1160
    %v1162 = vmul.f32 %v1152, %v1161
    %v1163 = vmul.f32 %v1153, %v1161
    %v1164 = vadd.f32 %v1121, %v1162
    %v1165 = vadd.f32 %v1122, %v1163
    %s1166 = sld [smem:[#allocation10 + $0x5a]]
    %v1167 = vstv %s1166
    %v1168 = vmul.f32 %v1152, %v1167
    %v1169 = vmul.f32 %v1153, %v1167
    %v1170 = vadd.f32 %v1135, %v1168
    %v1171 = vadd.f32 %v1136, %v1169
    %s1172 = sld [smem:[#allocation10 + $0x7e]]
    %v1173 = vstv %s1172
    %v1174 = vmul.f32 %v1152, %v1173
    %v1175 = vmul.f32 %v1153, %v1173
    %v1176 = vadd.f32 %v1149, %v1174
    %v1177 = vadd.f32 %v1150, %v1175
    %s1178 = sld [smem:[#allocation10 + $0x13]]
    %v1179 = vstv %s1178
    %v1180 = vmul.f32 %v1152, %v1179
    %v1181 = vmul.f32 %v1153, %v1179
    %1184 = vrot.lane.b32.xlu0 %v1180, 127
    %v1185 = vpop.permute.xlu0 %1184
    %1186 = vrot.lane.b32.xlu0 %v1181, 127
    %v1187 = vpop.permute.xlu0 %1186
    %v1190 = vadd.f32 %v1158, %v1185
    %v1191 = vadd.f32 %v1159, %v1187
    %s1192 = sld [smem:[#allocation10 + $0x37]]
    %v1193 = vstv %s1192
    %v1194 = vmul.f32 %v1152, %v1193
    %v1195 = vmul.f32 %v1153, %v1193
    %1198 = vrot.lane.b32.xlu0 %v1194, 127
    %v1199 = vpop.permute.xlu0 %1198
    %1200 = vrot.lane.b32.xlu0 %v1195, 127
    %v1201 = vpop.permute.xlu0 %1200
    %v1204 = vadd.f32 %v1164, %v1199
    %v1205 = vadd.f32 %v1165, %v1201
    %s1206 = sld [smem:[#allocation10 + $0x5b]]
    %v1207 = vstv %s1206
    %v1208 = vmul.f32 %v1152, %v1207
    %v1209 = vmul.f32 %v1153, %v1207
    %1212 = vrot.lane.b32.xlu0 %v1208, 127
    %v1213 = vpop.permute.xlu0 %1212
    %1214 = vrot.lane.b32.xlu0 %v1209, 127
    %v1215 = vpop.permute.xlu0 %1214
    %v1218 = vadd.f32 %v1170, %v1213
    %v1219 = vadd.f32 %v1171, %v1215
    %s1220 = sld [smem:[#allocation10 + $0x7f]]
    %v1221 = vstv %s1220
    %v1222 = vmul.f32 %v1152, %v1221
    %v1223 = vmul.f32 %v1153, %v1221
    %1226 = vrot.lane.b32.xlu0 %v1222, 127
    %v1227 = vpop.permute.xlu0 %1226
    %1228 = vrot.lane.b32.xlu0 %v1223, 127
    %v1229 = vpop.permute.xlu0 %1228
    %v1232 = vadd.f32 %v1176, %v1227
    %v1233 = vadd.f32 %v1177, %v1229
    %s1234 = sld [smem:[#allocation10 + $0x14]]
    %v1235 = vstv %s1234
    %v1236 = vmul.f32 %v1152, %v1235
    %v1237 = vmul.f32 %v1153, %v1235
    %1240 = vrot.lane.b32.xlu0 %v1236, 126
    %v1241 = vpop.permute.xlu0 %1240
    %1242 = vrot.lane.b32.xlu0 %v1237, 126
    %v1243 = vpop.permute.xlu0 %1242
    %v1246 = vadd.f32 %v1190, %v1241
    %v1247 = vadd.f32 %v1191, %v1243
    %s1248 = sld [smem:[#allocation10 + $0x38]]
    %v1249 = vstv %s1248
    %v1250 = vmul.f32 %v1152, %v1249
    %v1251 = vmul.f32 %v1153, %v1249
    %1254 = vrot.lane.b32.xlu0 %v1250, 126
    %v1255 = vpop.permute.xlu0 %1254
    %1256 = vrot.lane.b32.xlu0 %v1251, 126
    %v1257 = vpop.permute.xlu0 %1256
    %v1260 = vadd.f32 %v1204, %v1255
    %v1261 = vadd.f32 %v1205, %v1257
    %s1262 = sld [smem:[#allocation10 + $0x5c]]
    %v1263 = vstv %s1262
    %v1264 = vmul.f32 %v1152, %v1263
    %v1265 = vmul.f32 %v1153, %v1263
    %1268 = vrot.lane.b32.xlu0 %v1264, 126
    %v1269 = vpop.permute.xlu0 %1268
    %1270 = vrot.lane.b32.xlu0 %v1265, 126
    %v1271 = vpop.permute.xlu0 %1270
    %v1274 = vadd.f32 %v1218, %v1269
    %v1275 = vadd.f32 %v1219, %v1271
    %s1276 = sld [smem:[#allocation10 + $0x80]]
    %v1277 = vstv %s1276
    %v1278 = vmul.f32 %v1152, %v1277
    %v1279 = vmul.f32 %v1153, %v1277
    %1282 = vrot.lane.b32.xlu0 %v1278, 126
    %v1283 = vpop.permute.xlu0 %1282
    %1284 = vrot.lane.b32.xlu0 %v1279, 126
    %v1285 = vpop.permute.xlu0 %1284
    %v1288 = vadd.f32 %v1232, %v1283
    %v1289 = vadd.f32 %v1233, %v1285
    %v1290 = vld [vmem:[%s1151 + $0x1] sm:$0xff]
    %v1291 = vld [vmem:[%s1151 + $0x9] sm:$0xff]
    %s1292 = sld [smem:[#allocation10 + $0x15]]
    %v1293 = vstv %s1292
    %v1294 = vmul.f32 %v1290, %v1293
    %v1295 = vmul.f32 %v1291, %v1293
    %v1296 = vadd.f32 %v1246, %v1294
    %v1297 = vadd.f32 %v1247, %v1295
    %s1298 = sld [smem:[#allocation10 + $0x39]]
    %v1299 = vstv %s1298
    %v1300 = vmul.f32 %v1290, %v1299
    %v1301 = vmul.f32 %v1291, %v1299
    %v1302 = vadd.f32 %v1260, %v1300
    %v1303 = vadd.f32 %v1261, %v1301
    %s1304 = sld [smem:[#allocation10 + $0x5d]]
    %v1305 = vstv %s1304
    %v1306 = vmul.f32 %v1290, %v1305
    %v1307 = vmul.f32 %v1291, %v1305
    %v1308 = vadd.f32 %v1274, %v1306
    %v1309 = vadd.f32 %v1275, %v1307
    %s1310 = sld [smem:[#allocation10 + $0x81]]
    %v1311 = vstv %s1310
    %v1312 = vmul.f32 %v1290, %v1311
    %v1313 = vmul.f32 %v1291, %v1311
    %v1314 = vadd.f32 %v1288, %v1312
    %v1315 = vadd.f32 %v1289, %v1313
    %s1316 = sld [smem:[#allocation10 + $0x16]]
    %v1317 = vstv %s1316
    %v1318 = vmul.f32 %v1290, %v1317
    %v1319 = vmul.f32 %v1291, %v1317
    %1322 = vrot.lane.b32.xlu0 %v1318, 127
    %v1323 = vpop.permute.xlu0 %1322
    %1324 = vrot.lane.b32.xlu0 %v1319, 127
    %v1325 = vpop.permute.xlu0 %1324
    %v1328 = vadd.f32 %v1296, %v1323
    %v1329 = vadd.f32 %v1297, %v1325
    %s1330 = sld [smem:[#allocation4 + $0x2]]
    %v1331 = vstv %s1330
    %v1332 = vmul.f32 %v1290, %v1331
    %v1333 = vmul.f32 %v1291, %v1331
    %v1334 = vadd.f32 %v895, %v1332
    %v1335 = vadd.f32 %v896, %v1333
    %s1336 = sld [smem:[#allocation10 + $0x3a]]
    %v1337 = vstv %s1336
    %v1338 = vmul.f32 %v1290, %v1337
    %v1339 = vmul.f32 %v1291, %v1337
    %1342 = vrot.lane.b32.xlu0 %v1338, 127
    %v1343 = vpop.permute.xlu0 %1342
    %1344 = vrot.lane.b32.xlu0 %v1339, 127
    %v1345 = vpop.permute.xlu0 %1344
    %v1348 = vadd.f32 %v1302, %v1343
    %v1349 = vadd.f32 %v1303, %v1345
    %s1350 = sld [smem:[#allocation4 + $0x6]]
    %v1351 = vstv %s1350
    %v1352 = vmul.f32 %v1290, %v1351
    %v1353 = vmul.f32 %v1291, %v1351
    %v1354 = vadd.f32 %v915, %v1352
    %v1355 = vadd.f32 %v916, %v1353
    %s1356 = sld [smem:[#allocation10 + $0x5e]]
    %v1357 = vstv %s1356
    %v1358 = vmul.f32 %v1290, %v1357
    %v1359 = vmul.f32 %v1291, %v1357
    %1362 = vrot.lane.b32.xlu0 %v1358, 127
    %v1363 = vpop.permute.xlu0 %1362
    %1364 = vrot.lane.b32.xlu0 %v1359, 127
    %v1365 = vpop.permute.xlu0 %1364
    %v1368 = vadd.f32 %v1308, %v1363
    %v1369 = vadd.f32 %v1309, %v1365
    %s1370 = sld [smem:[#allocation4 + $0xa]]
    %v1371 = vstv %s1370
    %v1372 = vmul.f32 %v1290, %v1371
    %v1373 = vmul.f32 %v1291, %v1371
    %v1374 = vadd.f32 %v935, %v1372
    %v1375 = vadd.f32 %v936, %v1373
    %s1376 = sld [smem:[#allocation10 + $0x82]]
    %v1377 = vstv %s1376
    %v1378 = vmul.f32 %v1290, %v1377
    %v1379 = vmul.f32 %v1291, %v1377
    %1382 = vrot.lane.b32.xlu0 %v1378, 127
    %v1383 = vpop.permute.xlu0 %1382
    %1384 = vrot.lane.b32.xlu0 %v1379, 127
    %v1385 = vpop.permute.xlu0 %1384
    %v1388 = vadd.f32 %v1314, %v1383
    %v1389 = vadd.f32 %v1315, %v1385
    %s1390 = sld [smem:[#allocation4 + $0xe]]
    %v1391 = vstv %s1390
    %v1392 = vmul.f32 %v1290, %v1391
    %v1393 = vmul.f32 %v1291, %v1391
    %v1394 = vadd.f32 %v955, %v1392
    %v1395 = vadd.f32 %v956, %v1393
    %s1396 = sld [smem:[#allocation10 + $0x17]]
    %v1397 = vstv %s1396
    %v1398 = vmul.f32 %v1290, %v1397
    %v1399 = vmul.f32 %v1291, %v1397
    %1402 = vrot.lane.b32.xlu0 %v1398, 126
    %v1403 = vpop.permute.xlu0 %1402
    %1404 = vrot.lane.b32.xlu0 %v1399, 126
    %v1405 = vpop.permute.xlu0 %1404
    %v1408 = vadd.f32 %v1328, %v1403
    %v1409 = vadd.f32 %v1329, %v1405
    %s1410 = sld [smem:[#allocation10 + $0x3b]]
    %v1411 = vstv %s1410
    %v1412 = vmul.f32 %v1290, %v1411
    %v1413 = vmul.f32 %v1291, %v1411
    %1416 = vrot.lane.b32.xlu0 %v1412, 126
    %v1417 = vpop.permute.xlu0 %1416
    %1418 = vrot.lane.b32.xlu0 %v1413, 126
    %v1419 = vpop.permute.xlu0 %1418
    %v1422 = vadd.f32 %v1348, %v1417
    %v1423 = vadd.f32 %v1349, %v1419
    %s1424 = sld [smem:[#allocation10 + $0x5f]]
    %v1425 = vstv %s1424
    %v1426 = vmul.f32 %v1290, %v1425
    %v1427 = vmul.f32 %v1291, %v1425
    %1430 = vrot.lane.b32.xlu0 %v1426, 126
    %v1431 = vpop.permute.xlu0 %1430
    %1432 = vrot.lane.b32.xlu0 %v1427, 126
    %v1433 = vpop.permute.xlu0 %1432
    %v1436 = vadd.f32 %v1368, %v1431
    %v1437 = vadd.f32 %v1369, %v1433
    %s1438 = sld [smem:[#allocation10 + $0x83]]
    %v1439 = vstv %s1438
    %v1440 = vmul.f32 %v1290, %v1439
    %v1441 = vmul.f32 %v1291, %v1439
    %1444 = vrot.lane.b32.xlu0 %v1440, 126
    %v1445 = vpop.permute.xlu0 %1444
    %1446 = vrot.lane.b32.xlu0 %v1441, 126
    %v1447 = vpop.permute.xlu0 %1446
    %v1450 = vadd.f32 %v1388, %v1445
    %v1451 = vadd.f32 %v1389, %v1447
    %v1452 = vld [vmem:[%s1151 + $0x2] sm:$0xff]
    %v1453 = vld [vmem:[%s1151 + $0xa] sm:$0xff]
    %s1454 = sld [smem:[#allocation10 + $0x18]]
    %v1455 = vstv %s1454
    %v1456 = vmul.f32 %v1452, %v1455
    %v1457 = vmul.f32 %v1453, %v1455
    %v1458 = vadd.f32 %v1408, %v1456
    %v1459 = vadd.f32 %v1409, %v1457
    %s1460 = sld [smem:[#allocation10 + $0x3c]]
    %v1461 = vstv %s1460
    %v1462 = vmul.f32 %v1452, %v1461
    %v1463 = vmul.f32 %v1453, %v1461
    %v1464 = vadd.f32 %v1422, %v1462
    %v1465 = vadd.f32 %v1423, %v1463
    %s1466 = sld [smem:[#allocation10 + $0x60]]
    %v1467 = vstv %s1466
    %v1468 = vmul.f32 %v1452, %v1467
    %v1469 = vmul.f32 %v1453, %v1467
    %v1470 = vadd.f32 %v1436, %v1468
    %v1471 = vadd.f32 %v1437, %v1469
    %s1472 = sld [smem:[#allocation10 + $0x84]]
    %v1473 = vstv %s1472
    %v1474 = vmul.f32 %v1452, %v1473
    %v1475 = vmul.f32 %v1453, %v1473
    %v1476 = vadd.f32 %v1450, %v1474
    %v1477 = vadd.f32 %v1451, %v1475
    %s1478 = sld [smem:[#allocation10 + $0x19]]
    %v1479 = vstv %s1478
    %v1480 = vmul.f32 %v1452, %v1479
    %v1481 = vmul.f32 %v1453, %v1479
    %1484 = vrot.lane.b32.xlu0 %v1480, 127
    %v1485 = vpop.permute.xlu0 %1484
    %1486 = vrot.lane.b32.xlu0 %v1481, 127
    %v1487 = vpop.permute.xlu0 %1486
    %v1490 = vadd.f32 %v1458, %v1485
    %v1491 = vadd.f32 %v1459, %v1487
    %s1492 = sld [smem:[#allocation10 + $0x3d]]
    %v1493 = vstv %s1492
    %v1494 = vmul.f32 %v1452, %v1493
    %v1495 = vmul.f32 %v1453, %v1493
    %1498 = vrot.lane.b32.xlu0 %v1494, 127
    %v1499 = vpop.permute.xlu0 %1498
    %1500 = vrot.lane.b32.xlu0 %v1495, 127
    %v1501 = vpop.permute.xlu0 %1500
    %v1504 = vadd.f32 %v1464, %v1499
    %v1505 = vadd.f32 %v1465, %v1501
    %s1506 = sld [smem:[#allocation10 + $0x61]]
    %v1507 = vstv %s1506
    %v1508 = vmul.f32 %v1452, %v1507
    %v1509 = vmul.f32 %v1453, %v1507
    %1512 = vrot.lane.b32.xlu0 %v1508, 127
    %v1513 = vpop.permute.xlu0 %1512
    %1514 = vrot.lane.b32.xlu0 %v1509, 127
    %v1515 = vpop.permute.xlu0 %1514
    %v1518 = vadd.f32 %v1470, %v1513
    %v1519 = vadd.f32 %v1471, %v1515
    %s1520 = sld [smem:[#allocation10 + $0x85]]
    %v1521 = vstv %s1520
    %v1522 = vmul.f32 %v1452, %v1521
    %v1523 = vmul.f32 %v1453, %v1521
    %1526 = vrot.lane.b32.xlu0 %v1522, 127
    %v1527 = vpop.permute.xlu0 %1526
    %1528 = vrot.lane.b32.xlu0 %v1523, 127
    %v1529 = vpop.permute.xlu0 %1528
    %v1532 = vadd.f32 %v1476, %v1527
    %v1533 = vadd.f32 %v1477, %v1529
    %s1534 = sld [smem:[#allocation10 + $0x1a]]
    %v1535 = vstv %s1534
    %v1536 = vmul.f32 %v1452, %v1535
    %v1537 = vmul.f32 %v1453, %v1535
    %1540 = vrot.lane.b32.xlu0 %v1536, 126
    %v1541 = vpop.permute.xlu0 %1540
    %1542 = vrot.lane.b32.xlu0 %v1537, 126
    %v1543 = vpop.permute.xlu0 %1542
    %v1546 = vadd.f32 %v1490, %v1541
    %v1547 = vadd.f32 %v1491, %v1543
    %s1548 = sld [smem:[#allocation10 + $0x3e]]
    %v1549 = vstv %s1548
    %v1550 = vmul.f32 %v1452, %v1549
    %v1551 = vmul.f32 %v1453, %v1549
    %1554 = vrot.lane.b32.xlu0 %v1550, 126
    %v1555 = vpop.permute.xlu0 %1554
    %1556 = vrot.lane.b32.xlu0 %v1551, 126
    %v1557 = vpop.permute.xlu0 %1556
    %v1560 = vadd.f32 %v1504, %v1555
    %v1561 = vadd.f32 %v1505, %v1557
    %s1562 = sld [smem:[#allocation10 + $0x62]]
    %v1563 = vstv %s1562
    %v1564 = vmul.f32 %v1452, %v1563
    %v1565 = vmul.f32 %v1453, %v1563
    %1568 = vrot.lane.b32.xlu0 %v1564, 126
    %v1569 = vpop.permute.xlu0 %1568
    %1570 = vrot.lane.b32.xlu0 %v1565, 126
    %v1571 = vpop.permute.xlu0 %1570
    %v1574 = vadd.f32 %v1518, %v1569
    %v1575 = vadd.f32 %v1519, %v1571
    %s1576 = sld [smem:[#allocation10 + $0x86]]
    %v1577 = vstv %s1576
    %v1578 = vmul.f32 %v1452, %v1577
    %v1579 = vmul.f32 %v1453, %v1577
    %1582 = vrot.lane.b32.xlu0 %v1578, 126
    %v1583 = vpop.permute.xlu0 %1582
    %1584 = vrot.lane.b32.xlu0 %v1579, 126
    %v1585 = vpop.permute.xlu0 %1584
    %v1588 = vadd.f32 %v1532, %v1583
    %v1589 = vadd.f32 %v1533, %v1585
    %s1590 = scalar_lea.vmem [#allocation2], 72
    %v1591 = vld [vmem:[%s1590] sm:$0xff]
    %v1592 = vld [vmem:[%s1590 + $0x8] sm:$0xff]
    %s1593 = sld [smem:[#allocation10 + $0x1b]]
    %v1594 = vstv %s1593
    %v1595 = vmul.f32 %v1591, %v1594
    %v1596 = vmul.f32 %v1592, %v1594
    %v1597 = vadd.f32 %v1546, %v1595
    %v1598 = vadd.f32 %v1547, %v1596
    %s1599 = sld [smem:[#allocation10 + $0x3f]]
    %v1600 = vstv %s1599
    %v1601 = vmul.f32 %v1591, %v1600
    %v1602 = vmul.f32 %v1592, %v1600
    %v1603 = vadd.f32 %v1560, %v1601
    %v1604 = vadd.f32 %v1561, %v1602
    %s1605 = sld [smem:[#allocation10 + $0x63]]
    %v1606 = vstv %s1605
    %v1607 = vmul.f32 %v1591, %v1606
    %v1608 = vmul.f32 %v1592, %v1606
    %v1609 = vadd.f32 %v1574, %v1607
    %v1610 = vadd.f32 %v1575, %v1608
    %s1611 = sld [smem:[#allocation10 + $0x87]]
    %v1612 = vstv %s1611
    %v1613 = vmul.f32 %v1591, %v1612
    %v1614 = vmul.f32 %v1592, %v1612
    %v1615 = vadd.f32 %v1588, %v1613
    %v1616 = vadd.f32 %v1589, %v1614
    %s1617 = sld [smem:[#allocation10 + $0x1c]]
    %v1618 = vstv %s1617
    %v1619 = vmul.f32 %v1591, %v1618
    %v1620 = vmul.f32 %v1592, %v1618
    %1623 = vrot.lane.b32.xlu0 %v1619, 127
    %v1624 = vpop.permute.xlu0 %1623
    %1625 = vrot.lane.b32.xlu0 %v1620, 127
    %v1626 = vpop.permute.xlu0 %1625
    %v1629 = vadd.f32 %v1597, %v1624
    %v1630 = vadd.f32 %v1598, %v1626
    %s1631 = sld [smem:[#allocation10 + $0x40]]
    %v1632 = vstv %s1631
    %v1633 = vmul.f32 %v1591, %v1632
    %v1634 = vmul.f32 %v1592, %v1632
    %1637 = vrot.lane.b32.xlu0 %v1633, 127
    %v1638 = vpop.permute.xlu0 %1637
    %1639 = vrot.lane.b32.xlu0 %v1634, 127
    %v1640 = vpop.permute.xlu0 %1639
    %v1643 = vadd.f32 %v1603, %v1638
    %v1644 = vadd.f32 %v1604, %v1640
    %s1645 = sld [smem:[#allocation10 + $0x64]]
    %v1646 = vstv %s1645
    %v1647 = vmul.f32 %v1591, %v1646
    %v1648 = vmul.f32 %v1592, %v1646
    %1651 = vrot.lane.b32.xlu0 %v1647, 127
    %v1652 = vpop.permute.xlu0 %1651
    %1653 = vrot.lane.b32.xlu0 %v1648, 127
    %v1654 = vpop.permute.xlu0 %1653
    %v1657 = vadd.f32 %v1609, %v1652
    %v1658 = vadd.f32 %v1610, %v1654
    %s1659 = sld [smem:[#allocation10 + $0x88]]
    %v1660 = vstv %s1659
    %v1661 = vmul.f32 %v1591, %v1660
    %v1662 = vmul.f32 %v1592, %v1660
    %1665 = vrot.lane.b32.xlu0 %v1661, 127
    %v1666 = vpop.permute.xlu0 %1665
    %1667 = vrot.lane.b32.xlu0 %v1662, 127
    %v1668 = vpop.permute.xlu0 %1667
    %v1671 = vadd.f32 %v1615, %v1666
    %v1672 = vadd.f32 %v1616, %v1668
    %s1673 = sld [smem:[#allocation10 + $0x1d]]
    %v1674 = vstv %s1673
    %v1675 = vmul.f32 %v1591, %v1674
    %v1676 = vmul.f32 %v1592, %v1674
    %1679 = vrot.lane.b32.xlu0 %v1675, 126
    %v1680 = vpop.permute.xlu0 %1679
    %1681 = vrot.lane.b32.xlu0 %v1676, 126
    %v1682 = vpop.permute.xlu0 %1681
    %v1685 = vadd.f32 %v1629, %v1680
    %v1686 = vadd.f32 %v1630, %v1682
    %s1687 = sld [smem:[#allocation10 + $0x41]]
    %v1688 = vstv %s1687
    %v1689 = vmul.f32 %v1591, %v1688
    %v1690 = vmul.f32 %v1592, %v1688
    %1693 = vrot.lane.b32.xlu0 %v1689, 126
    %v1694 = vpop.permute.xlu0 %1693
    %1695 = vrot.lane.b32.xlu0 %v1690, 126
    %v1696 = vpop.permute.xlu0 %1695
    %v1699 = vadd.f32 %v1643, %v1694
    %v1700 = vadd.f32 %v1644, %v1696
    %s1701 = sld [smem:[#allocation10 + $0x65]]
    %v1702 = vstv %s1701
    %v1703 = vmul.f32 %v1591, %v1702
    %v1704 = vmul.f32 %v1592, %v1702
    %1707 = vrot.lane.b32.xlu0 %v1703, 126
    %v1708 = vpop.permute.xlu0 %1707
    %1709 = vrot.lane.b32.xlu0 %v1704, 126
    %v1710 = vpop.permute.xlu0 %1709
    %v1713 = vadd.f32 %v1657, %v1708
    %v1714 = vadd.f32 %v1658, %v1710
    %s1715 = sld [smem:[#allocation10 + $0x89]]
    %v1716 = vstv %s1715
    %v1717 = vmul.f32 %v1591, %v1716
    %v1718 = vmul.f32 %v1592, %v1716
    %1721 = vrot.lane.b32.xlu0 %v1717, 126
    %v1722 = vpop.permute.xlu0 %1721
    %1723 = vrot.lane.b32.xlu0 %v1718, 126
    %v1724 = vpop.permute.xlu0 %1723
    %v1727 = vadd.f32 %v1671, %v1722
    %v1728 = vadd.f32 %v1672, %v1724
    %v1729 = vld [vmem:[%s1590 + $0x1] sm:$0xff]
    %v1730 = vld [vmem:[%s1590 + $0x9] sm:$0xff]
    %s1731 = sld [smem:[#allocation10 + $0x1e]]
    %v1732 = vstv %s1731
    %v1733 = vmul.f32 %v1729, %v1732
    %v1734 = vmul.f32 %v1730, %v1732
    %v1735 = vadd.f32 %v1685, %v1733
    %v1736 = vadd.f32 %v1686, %v1734
    %s1737 = sld [smem:[#allocation10 + $0x42]]
    %v1738 = vstv %s1737
    %v1739 = vmul.f32 %v1729, %v1738
    %v1740 = vmul.f32 %v1730, %v1738
    %v1741 = vadd.f32 %v1699, %v1739
    %v1742 = vadd.f32 %v1700, %v1740
    %s1743 = sld [smem:[#allocation10 + $0x66]]
    %v1744 = vstv %s1743
    %v1745 = vmul.f32 %v1729, %v1744
    %v1746 = vmul.f32 %v1730, %v1744
    %v1747 = vadd.f32 %v1713, %v1745
    %v1748 = vadd.f32 %v1714, %v1746
    %s1749 = sld [smem:[#allocation10 + $0x8a]]
    %v1750 = vstv %s1749
    %v1751 = vmul.f32 %v1729, %v1750
    %v1752 = vmul.f32 %v1730, %v1750
    %v1753 = vadd.f32 %v1727, %v1751
    %v1754 = vadd.f32 %v1728, %v1752
    %s1755 = sld [smem:[#allocation10 + $0x1f]]
    %v1756 = vstv %s1755
    %v1757 = vmul.f32 %v1729, %v1756
    %v1758 = vmul.f32 %v1730, %v1756
    %1761 = vrot.lane.b32.xlu0 %v1757, 127
    %v1762 = vpop.permute.xlu0 %1761
    %1763 = vrot.lane.b32.xlu0 %v1758, 127
    %v1764 = vpop.permute.xlu0 %1763
    %v1767 = vadd.f32 %v1735, %v1762
    %v1768 = vadd.f32 %v1736, %v1764
    %s1769 = sld [smem:[#allocation4 + $0x3]]
    %v1770 = vstv %s1769
    %v1771 = vmul.f32 %v1729, %v1770
    %v1772 = vmul.f32 %v1730, %v1770
    %v1773 = vadd.f32 %v1334, %v1771
    %v1774 = vadd.f32 %v1335, %v1772
    %s1775 = sld [smem:[#allocation10 + $0x43]]
    %v1776 = vstv %s1775
    %v1777 = vmul.f32 %v1729, %v1776
    %v1778 = vmul.f32 %v1730, %v1776
    %1781 = vrot.lane.b32.xlu0 %v1777, 127
    %v1782 = vpop.permute.xlu0 %1781
    %1783 = vrot.lane.b32.xlu0 %v1778, 127
    %v1784 = vpop.permute.xlu0 %1783
    %v1787 = vadd.f32 %v1741, %v1782
    %v1788 = vadd.f32 %v1742, %v1784
    %s1789 = sld [smem:[#allocation4 + $0x7]]
    %v1790 = vstv %s1789
    %v1791 = vmul.f32 %v1729, %v1790
    %v1792 = vmul.f32 %v1730, %v1790
    %v1793 = vadd.f32 %v1354, %v1791
    %v1794 = vadd.f32 %v1355, %v1792
    %s1795 = sld [smem:[#allocation10 + $0x67]]
    %v1796 = vstv %s1795
    %v1797 = vmul.f32 %v1729, %v1796
    %v1798 = vmul.f32 %v1730, %v1796
    %1801 = vrot.lane.b32.xlu0 %v1797, 127
    %v1802 = vpop.permute.xlu0 %1801
    %1803 = vrot.lane.b32.xlu0 %v1798, 127
    %v1804 = vpop.permute.xlu0 %1803
    %v1807 = vadd.f32 %v1747, %v1802
    %v1808 = vadd.f32 %v1748, %v1804
    %s1809 = sld [smem:[#allocation4 + $0xb]]
    %v1810 = vstv %s1809
    %v1811 = vmul.f32 %v1729, %v1810
    %v1812 = vmul.f32 %v1730, %v1810
    %v1813 = vadd.f32 %v1374, %v1811
    %v1814 = vadd.f32 %v1375, %v1812
    %s1815 = sld [smem:[#allocation10 + $0x8b]]
    %v1816 = vstv %s1815
    %v1817 = vmul.f32 %v1729, %v1816
    %v1818 = vmul.f32 %v1730, %v1816
    %1821 = vrot.lane.b32.xlu0 %v1817, 127
    %v1822 = vpop.permute.xlu0 %1821
    %1823 = vrot.lane.b32.xlu0 %v1818, 127
    %v1824 = vpop.permute.xlu0 %1823
    %v1827 = vadd.f32 %v1753, %v1822
    %v1828 = vadd.f32 %v1754, %v1824
    %s1829 = sld [smem:[#allocation4 + $0xf]]
    %v1830 = vstv %s1829
    %v1831 = vmul.f32 %v1729, %v1830
    %v1832 = vmul.f32 %v1730, %v1830
    %v1833 = vadd.f32 %v1394, %v1831
    %v1834 = vadd.f32 %v1395, %v1832
    %s1835 = sld [smem:[#allocation10 + $0x20]]
    %v1836 = vstv %s1835
    %v1837 = vmul.f32 %v1729, %v1836
    %v1838 = vmul.f32 %v1730, %v1836
    %1841 = vrot.lane.b32.xlu0 %v1837, 126
    %v1842 = vpop.permute.xlu0 %1841
    %1843 = vrot.lane.b32.xlu0 %v1838, 126
    %v1844 = vpop.permute.xlu0 %1843
    %v1847 = vadd.f32 %v1767, %v1842
    %v1848 = vadd.f32 %v1768, %v1844
    %s1849 = sld [smem:[#allocation10 + $0x44]]
    %v1850 = vstv %s1849
    %v1851 = vmul.f32 %v1729, %v1850
    %v1852 = vmul.f32 %v1730, %v1850
    %1855 = vrot.lane.b32.xlu0 %v1851, 126
    %v1856 = vpop.permute.xlu0 %1855
    %1857 = vrot.lane.b32.xlu0 %v1852, 126
    %v1858 = vpop.permute.xlu0 %1857
    %v1861 = vadd.f32 %v1787, %v1856
    %v1862 = vadd.f32 %v1788, %v1858
    %s1863 = sld [smem:[#allocation10 + $0x68]]
    %v1864 = vstv %s1863
    %v1865 = vmul.f32 %v1729, %v1864
    %v1866 = vmul.f32 %v1730, %v1864
    %1869 = vrot.lane.b32.xlu0 %v1865, 126
    %v1870 = vpop.permute.xlu0 %1869
    %1871 = vrot.lane.b32.xlu0 %v1866, 126
    %v1872 = vpop.permute.xlu0 %1871
    %v1875 = vadd.f32 %v1807, %v1870
    %v1876 = vadd.f32 %v1808, %v1872
    %s1877 = sld [smem:[#allocation10 + $0x8c]]
    %v1878 = vstv %s1877
    %v1879 = vmul.f32 %v1729, %v1878
    %v1880 = vmul.f32 %v1730, %v1878
    %1883 = vrot.lane.b32.xlu0 %v1879, 126
    %v1884 = vpop.permute.xlu0 %1883
    %1885 = vrot.lane.b32.xlu0 %v1880, 126
    %v1886 = vpop.permute.xlu0 %1885
    %v1889 = vadd.f32 %v1827, %v1884
    %v1890 = vadd.f32 %v1828, %v1886
    %v1891 = vld [vmem:[%s1590 + $0x2] sm:$0xff]
    %v1892 = vld [vmem:[%s1590 + $0xa] sm:$0xff]
    %s1893 = sld [smem:[#allocation10 + $0x21]]
    %v1894 = vstv %s1893
    %v1895 = vmul.f32 %v1891, %v1894
    %v1896 = vmul.f32 %v1892, %v1894
    %v1897 = vadd.f32 %v1847, %v1895
    %v1898 = vadd.f32 %v1848, %v1896
    %s1899 = sld [smem:[#allocation10 + $0x45]]
    %v1900 = vstv %s1899
    %v1901 = vmul.f32 %v1891, %v1900
    %v1902 = vmul.f32 %v1892, %v1900
    %v1903 = vadd.f32 %v1861, %v1901
    %v1904 = vadd.f32 %v1862, %v1902
    %s1905 = sld [smem:[#allocation10 + $0x69]]
    %v1906 = vstv %s1905
    %v1907 = vmul.f32 %v1891, %v1906
    %v1908 = vmul.f32 %v1892, %v1906
    %v1909 = vadd.f32 %v1875, %v1907
    %v1910 = vadd.f32 %v1876, %v1908
    %s1911 = sld [smem:[#allocation10 + $0x8d]]
    %v1912 = vstv %s1911
    %v1913 = vmul.f32 %v1891, %v1912
    %v1914 = vmul.f32 %v1892, %v1912
    %v1915 = vadd.f32 %v1889, %v1913
    %v1916 = vadd.f32 %v1890, %v1914
    %s1917 = sld [smem:[#allocation10 + $0x22]]
    %v1918 = vstv %s1917
    %v1919 = vmul.f32 %v1891, %v1918
    %v1920 = vmul.f32 %v1892, %v1918
    %1923 = vrot.lane.b32.xlu0 %v1919, 127
    %v1924 = vpop.permute.xlu0 %1923
    %1925 = vrot.lane.b32.xlu0 %v1920, 127
    %v1926 = vpop.permute.xlu0 %1925
    %v1929 = vadd.f32 %v1897, %v1924
    %v1930 = vadd.f32 %v1898, %v1926
    %s1931 = sld [smem:[#allocation10 + $0x46]]
    %v1932 = vstv %s1931
    %v1933 = vmul.f32 %v1891, %v1932
    %v1934 = vmul.f32 %v1892, %v1932
    %1937 = vrot.lane.b32.xlu0 %v1933, 127
    %v1938 = vpop.permute.xlu0 %1937
    %1939 = vrot.lane.b32.xlu0 %v1934, 127
    %v1940 = vpop.permute.xlu0 %1939
    %v1943 = vadd.f32 %v1903, %v1938
    %v1944 = vadd.f32 %v1904, %v1940
    %s1945 = sld [smem:[#allocation10 + $0x6a]]
    %v1946 = vstv %s1945
    %v1947 = vmul.f32 %v1891, %v1946
    %v1948 = vmul.f32 %v1892, %v1946
    %1951 = vrot.lane.b32.xlu0 %v1947, 127
    %v1952 = vpop.permute.xlu0 %1951
    %1953 = vrot.lane.b32.xlu0 %v1948, 127
    %v1954 = vpop.permute.xlu0 %1953
    %v1957 = vadd.f32 %v1909, %v1952
    %v1958 = vadd.f32 %v1910, %v1954
    %s1959 = sld [smem:[#allocation10 + $0x8e]]
    %v1960 = vstv %s1959
    %v1961 = vmul.f32 %v1891, %v1960
    %v1962 = vmul.f32 %v1892, %v1960
    %1965 = vrot.lane.b32.xlu0 %v1961, 127
    %v1966 = vpop.permute.xlu0 %1965
    %1967 = vrot.lane.b32.xlu0 %v1962, 127
    %v1968 = vpop.permute.xlu0 %1967
    %v1971 = vadd.f32 %v1915, %v1966
    %v1972 = vadd.f32 %v1916, %v1968
    %s1973 = sld [smem:[#allocation10 + $0x23]]
    %v1974 = vstv %s1973
    %v1975 = vmul.f32 %v1891, %v1974
    %v1976 = vmul.f32 %v1892, %v1974
    %1979 = vrot.lane.b32.xlu0 %v1975, 126
    %v1980 = vpop.permute.xlu0 %1979
    %1981 = vrot.lane.b32.xlu0 %v1976, 126
    %v1982 = vpop.permute.xlu0 %1981
    %v1985 = vadd.f32 %v1929, %v1980
    %v1986 = vadd.f32 %v1930, %v1982
    %s1987 = sld [smem:[#allocation10 + $0x47]]
    %v1988 = vstv %s1987
    %v1989 = vmul.f32 %v1891, %v1988
    %v1990 = vmul.f32 %v1892, %v1988
    %1993 = vrot.lane.b32.xlu0 %v1989, 126
    %v1994 = vpop.permute.xlu0 %1993
    %1995 = vrot.lane.b32.xlu0 %v1990, 126
    %v1996 = vpop.permute.xlu0 %1995
    %v1999 = vadd.f32 %v1943, %v1994
    %v2000 = vadd.f32 %v1944, %v1996
    %s2001 = sld [smem:[#allocation10 + $0x6b]]
    %v2002 = vstv %s2001
    %v2003 = vmul.f32 %v1891, %v2002
    %v2004 = vmul.f32 %v1892, %v2002
    %2007 = vrot.lane.b32.xlu0 %v2003, 126
    %v2008 = vpop.permute.xlu0 %2007
    %2009 = vrot.lane.b32.xlu0 %v2004, 126
    %v2010 = vpop.permute.xlu0 %2009
    %v2013 = vadd.f32 %v1957, %v2008
    %v2014 = vadd.f32 %v1958, %v2010
    %s2015 = sld [smem:[#allocation10 + $0x8f]]
    %v2016 = vstv %s2015
    %v2017 = vmul.f32 %v1891, %v2016
    %v2018 = vmul.f32 %v1892, %v2016
    %2021 = vrot.lane.b32.xlu0 %v2017, 126
    %v2022 = vpop.permute.xlu0 %2021
    %2023 = vrot.lane.b32.xlu0 %v2018, 126
    %v2024 = vpop.permute.xlu0 %2023
    %v2027 = vadd.f32 %v1971, %v2022
    %v2028 = vadd.f32 %v1972, %v2024
    %s2029 = sld [smem:[#allocation9]]
    %v2030 = vstv %s2029
    %v2031 = vadd.f32 %v1773, %v2030
    %v2032 = vadd.f32 %v1774, %v2030
    %v2033 = vsub.f32 0.0, %v2031
    %v2034 = vsub.f32 0.0, %v2032
    %v2035 = vmul.f32 %v2033, 1.442695
    %v2036 = vpow.pop %v2035
    %v2037 = vmul.f32 %v2034, 1.442695
    %v2038 = vpow.pop %v2037
    %v2039 = vadd.f32 %v2036, 1.0
    %v2040 = vadd.f32 %v2038, 1.0
    %v2041 = vrcp.pop %v2039
    %v2042 = vrcp.pop %v2040
    %v2043 = vmul.f32 %v2039, %v2041
    %v2044 = vmul.f32 %v2040, %v2042
    %v2045 = vsub.f32 2.0, %v2043
    %v2046 = vsub.f32 2.0, %v2044
    %v2047 = vmul.f32 %v2041, %v2045
    %v2048 = vmul.f32 %v2042, %v2046
    %s2049 = sld [smem:[#allocation12]]
    %v2050 = vstv %s2049
    %v2051 = vadd.f32 %v1985, %v2050
    %v2052 = vadd.f32 %v1986, %v2050
    %2055 = vrot.lane.b32.xlu0 %v2051, 1
    %v2056 = vpop.permute.xlu0 %2055
    %2057 = vrot.lane.b32.xlu0 %v2052, 1
    %v2058 = vpop.permute.xlu0 %2057
    %v2061 = vmul.f32 %v2047, %v2056
    %v2062 = vmul.f32 %v2048, %v2058
    %vm2063 = vcmask 285704
    %2064 = vst.msk [vmem:[#allocation3 + $0x1] sm:$0xff] %vm2063, %v2061
    %2065 = vst.msk [vmem:[#allocation3 + $0x9] sm:$0xff] %vm2063, %v2062
    %s2066 = sld [smem:[#allocation9 + $0x1]]
    %v2067 = vstv %s2066
    %v2068 = vadd.f32 %v1793, %v2067
    %v2069 = vadd.f32 %v1794, %v2067
    %v2070 = vsub.f32 0.0, %v2068
    %v2071 = vsub.f32 0.0, %v2069
    %v2072 = vmul.f32 %v2070, 1.442695
    %v2073 = vpow.pop %v2072
    %v2074 = vmul.f32 %v2071, 1.442695
    %v2075 = vpow.pop %v2074
    %v2076 = vadd.f32 %v2073, 1.0
    %v2077 = vadd.f32 %v2075, 1.0
    %v2078 = vrcp.pop %v2076
    %v2079 = vrcp.pop %v2077
    %v2080 = vmul.f32 %v2076, %v2078
    %v2081 = vmul.f32 %v2077, %v2079
    %v2082 = vsub.f32 2.0, %v2080
    %v2083 = vsub.f32 2.0, %v2081
    %v2084 = vmul.f32 %v2078, %v2082
    %v2085 = vmul.f32 %v2079, %v2083
    %s2086 = sld [smem:[#allocation12 + $0x1]]
    %v2087 = vstv %s2086
    %v2088 = vadd.f32 %v1999, %v2087
    %v2089 = vadd.f32 %v2000, %v2087
    %2092 = vrot.lane.b32.xlu0 %v2088, 1
    %v2093 = vpop.permute.xlu0 %2092
    %2094 = vrot.lane.b32.xlu0 %v2089, 1
    %v2095 = vpop.permute.xlu0 %2094
    %v2098 = vmul.f32 %v2084, %v2093
    %v2099 = vmul.f32 %v2085, %v2095
    %s2100 = scalar_lea.vmem [#allocation3], 24
    %2101 = vst.msk [vmem:[%s2100 + $0x1] sm:$0xff] %vm2063, %v2098
    %2102 = vst.msk [vmem:[%s2100 + $0x9] sm:$0xff] %vm2063, %v2099
    %s2103 = sld [smem:[#allocation9 + $0x2]]
    %v2104 = vstv %s2103
    %v2105 = vadd.f32 %v1813, %v2104
    %v2106 = vadd.f32 %v1814, %v2104
    %v2107 = vsub.f32 0.0, %v2105
    %v2108 = vsub.f32 0.0, %v2106
    %v2109 = vmul.f32 %v2107, 1.442695
    %v2110 = vpow.pop %v2109
    %v2111 = vmul.f32 %v2108, 1.442695
    %v2112 = vpow.pop %v2111
    %v2113 = vadd.f32 %v2110, 1.0
    %v2114 = vadd.f32 %v2112, 1.0
    %v2115 = vrcp.pop %v2113
    %v2116 = vrcp.pop %v2114
    %v2117 = vmul.f32 %v2113, %v2115
    %v2118 = vmul.f32 %v2114, %v2116
    %v2119 = vsub.f32 2.0, %v2117
    %v2120 = vsub.f32 2.0, %v2118
    %v2121 = vmul.f32 %v2115, %v2119
    %v2122 = vmul.f32 %v2116, %v2120
    %s2123 = sld [smem:[#allocation12 + $0x2]]
    %v2124 = vstv %s2123
    %v2125 = vadd.f32 %v2013, %v2124
    %v2126 = vadd.f32 %v2014, %v2124
    %2129 = vrot.lane.b32.xlu0 %v2125, 1
    %v2130 = vpop.permute.xlu0 %2129
    %2131 = vrot.lane.b32.xlu0 %v2126, 1
    %v2132 = vpop.permute.xlu0 %2131
    %v2135 = vmul.f32 %v2121, %v2130
    %v2136 = vmul.f32 %v2122, %v2132
    %s2137 = scalar_lea.vmem [#allocation3], 48
    %2138 = vst.msk [vmem:[%s2137 + $0x1] sm:$0xff] %vm2063, %v2135
    %2139 = vst.msk [vmem:[%s2137 + $0x9] sm:$0xff] %vm2063, %v2136
    %s2140 = sld [smem:[#allocation9 + $0x3]]
    %v2141 = vstv %s2140
    %v2142 = vadd.f32 %v1833, %v2141
    %v2143 = vadd.f32 %v1834, %v2141
    %v2144 = vsub.f32 0.0, %v2142
    %v2145 = vsub.f32 0.0, %v2143
    %v2146 = vmul.f32 %v2144, 1.442695
    %v2147 = vpow.pop %v2146
    %v2148 = vmul.f32 %v2145, 1.442695
    %v2149 = vpow.pop %v2148
    %v2150 = vadd.f32 %v2147, 1.0
    %v2151 = vadd.f32 %v2149, 1.0
    %v2152 = vrcp.pop %v2150
    %v2153 = vrcp.pop %v2151
    %v2154 = vmul.f32 %v2150, %v2152
    %v2155 = vmul.f32 %v2151, %v2153
    %v2156 = vsub.f32 2.0, %v2154
    %v2157 = vsub.f32 2.0, %v2155
    %v2158 = vmul.f32 %v2152, %v2156
    %v2159 = vmul.f32 %v2153, %v2157
    %s2160 = sld [smem:[#allocation12 + $0x3]]
    %v2161 = vstv %s2160
    %v2162 = vadd.f32 %v2027, %v2161
    %v2163 = vadd.f32 %v2028, %v2161
    %2166 = vrot.lane.b32.xlu0 %v2162, 1
    %v2167 = vpop.permute.xlu0 %2166
    %2168 = vrot.lane.b32.xlu0 %v2163, 1
    %v2169 = vpop.permute.xlu0 %2168
    %v2172 = vmul.f32 %v2158, %v2167
    %v2173 = vmul.f32 %v2159, %v2169
    %s2174 = scalar_lea.vmem [#allocation3], 72
    %2175 = vst.msk [vmem:[%s2174 + $0x1] sm:$0xff] %vm2063, %v2172
    %2176 = vst.msk [vmem:[%s2174 + $0x9] sm:$0xff] %vm2063, %v2173
    %2177 = vst.msk [vmem:[#allocation3] sm:$0x1] %vm110, 0.0
    %2178 = vst.msk [vmem:[#allocation3 + $0x18] sm:$0x1] %vm110, 0.0
    %2179 = vst.msk [vmem:[#allocation3 + $0x30] sm:$0x1] %vm110, 0.0
    %2180 = vst.msk [vmem:[#allocation3 + $0x48] sm:$0x1] %vm110, 0.0
    %2181 = vst.msk [vmem:[#allocation3 + $0x11] sm:$0x1] %vm110, 0.0
    %2182 = vst.msk [vmem:[#allocation3 + $0x29] sm:$0x1] %vm110, 0.0
    %2183 = vst.msk [vmem:[#allocation3 + $0x41] sm:$0x1] %vm110, 0.0
    %2184 = vst.msk [vmem:[#allocation3 + $0x59] sm:$0x1] %vm110, 0.0
    %2185 = vst.msk [vmem:[#allocation3] sm:$0xff] %vm119, 0.0
    %2186 = vst.msk [vmem:[#allocation3 + $0x8] sm:$0xff] %vm119, 0.0
    %2187 = vst.msk [vmem:[#allocation3 + $0x10] sm:$0x3] %vm122, 0.0
    %2188 = vst.msk [vmem:[#allocation3 + $0x18] sm:$0xff] %vm119, 0.0
    %2189 = vst.msk [vmem:[#allocation3 + $0x20] sm:$0xff] %vm119, 0.0
    %2190 = vst.msk [vmem:[#allocation3 + $0x28] sm:$0x3] %vm122, 0.0
    %2191 = vst.msk [vmem:[#allocation3 + $0x30] sm:$0xff] %vm119, 0.0
    %2192 = vst.msk [vmem:[#allocation3 + $0x38] sm:$0xff] %vm119, 0.0
    %2193 = vst.msk [vmem:[#allocation3 + $0x40] sm:$0x3] %vm122, 0.0
    %2194 = vst.msk [vmem:[#allocation3 + $0x48] sm:$0xff] %vm119, 0.0
    %2195 = vst.msk [vmem:[#allocation3 + $0x50] sm:$0xff] %vm119, 0.0
    %2196 = vst.msk [vmem:[#allocation3 + $0x58] sm:$0x3] %vm122, 0.0
    %2197 = vst.msk [vmem:[#allocation3] sm:$0xff] %vm133, 0.0
    %2198 = vst.msk [vmem:[#allocation3 + $0x8] sm:$0xff] %vm133, 0.0
    %2199 = vst.msk [vmem:[#allocation3 + $0x10] sm:$0x3] %vm136, 0.0
    %2200 = vst.msk [vmem:[#allocation3 + $0x18] sm:$0xff] %vm133, 0.0
    %2201 = vst.msk [vmem:[#allocation3 + $0x20] sm:$0xff] %vm133, 0.0
    %2202 = vst.msk [vmem:[#allocation3 + $0x28] sm:$0x3] %vm136, 0.0
    %2203 = vst.msk [vmem:[#allocation3 + $0x30] sm:$0xff] %vm133, 0.0
    %2204 = vst.msk [vmem:[#allocation3 + $0x38] sm:$0xff] %vm133, 0.0
    %2205 = vst.msk [vmem:[#allocation3 + $0x40] sm:$0x3] %vm136, 0.0
    %2206 = vst.msk [vmem:[#allocation3 + $0x48] sm:$0xff] %vm133, 0.0
    %2207 = vst.msk [vmem:[#allocation3 + $0x50] sm:$0xff] %vm133, 0.0
    %2208 = vst.msk [vmem:[#allocation3 + $0x58] sm:$0x3] %vm136, 0.0
    %2209 = vst.msk [vmem:[#allocation3] sm:$0xff] %vm147, 0.0
    %2210 = vst.msk [vmem:[#allocation3 + $0x8] sm:$0xff] %vm147, 0.0
    %2211 = vst.msk [vmem:[#allocation3 + $0x10] sm:$0x3] %vm150, 0.0
    %2212 = vst.msk [vmem:[#allocation3 + $0x18] sm:$0xff] %vm147, 0.0
    %2213 = vst.msk [vmem:[#allocation3 + $0x20] sm:$0xff] %vm147, 0.0
    %2214 = vst.msk [vmem:[#allocation3 + $0x28] sm:$0x3] %vm150, 0.0
    %2215 = vst.msk [vmem:[#allocation3 + $0x30] sm:$0xff] %vm147, 0.0
    %2216 = vst.msk [vmem:[#allocation3 + $0x38] sm:$0xff] %vm147, 0.0
    %2217 = vst.msk [vmem:[#allocation3 + $0x40] sm:$0x3] %vm150, 0.0
    %2218 = vst.msk [vmem:[#allocation3 + $0x48] sm:$0xff] %vm147, 0.0
    %2219 = vst.msk [vmem:[#allocation3 + $0x50] sm:$0xff] %vm147, 0.0
    %2220 = vst.msk [vmem:[#allocation3 + $0x58] sm:$0x3] %vm150, 0.0
    %2221 = vst.msk [vmem:[#allocation3] sm:$0xff] %vm161, 0.0
    %2222 = vst.msk [vmem:[#allocation3 + $0x8] sm:$0xff] %vm161, 0.0
    %2223 = vst.msk [vmem:[#allocation3 + $0x10] sm:$0x3] %vm164, 0.0
    %2224 = vst.msk [vmem:[#allocation3 + $0x18] sm:$0xff] %vm161, 0.0
    %2225 = vst.msk [vmem:[#allocation3 + $0x20] sm:$0xff] %vm161, 0.0
    %2226 = vst.msk [vmem:[#allocation3 + $0x28] sm:$0x3] %vm164, 0.0
    %2227 = vst.msk [vmem:[#allocation3 + $0x30] sm:$0xff] %vm161, 0.0
    %2228 = vst.msk [vmem:[#allocation3 + $0x38] sm:$0xff] %vm161, 0.0
    %2229 = vst.msk [vmem:[#allocation3 + $0x40] sm:$0x3] %vm164, 0.0
    %2230 = vst.msk [vmem:[#allocation3 + $0x48] sm:$0xff] %vm161, 0.0
    %2231 = vst.msk [vmem:[#allocation3 + $0x50] sm:$0xff] %vm161, 0.0
    %2232 = vst.msk [vmem:[#allocation3 + $0x58] sm:$0x3] %vm164, 0.0
    %v2233 = vld [vmem:[#allocation3] sm:$0xff]
    %v2234 = vld [vmem:[#allocation3 + $0x8] sm:$0xff]
    %s2235 = sld [smem:[#allocation13]]
    %v2236 = vstv %s2235
    %v2237 = vmul.f32 %v2233, %v2236
    %v2238 = vmul.f32 %v2234, %v2236
    %v2239 = vadd.f32 %v2237, 0.0
    %v2240 = vadd.f32 %v2238, 0.0
    %s2241 = sld [smem:[#allocation13 + $0x24]]
    %v2242 = vstv %s2241
    %v2243 = vmul.f32 %v2233, %v2242
    %v2244 = vmul.f32 %v2234, %v2242
    %v2245 = vadd.f32 %v2243, 0.0
    %v2246 = vadd.f32 %v2244, 0.0
    %s2247 = sld [smem:[#allocation13 + $0x48]]
    %v2248 = vstv %s2247
    %v2249 = vmul.f32 %v2233, %v2248
    %v2250 = vmul.f32 %v2234, %v2248
    %v2251 = vadd.f32 %v2249, 0.0
    %v2252 = vadd.f32 %v2250, 0.0
    %s2253 = sld [smem:[#allocation13 + $0x6c]]
    %v2254 = vstv %s2253
    %v2255 = vmul.f32 %v2233, %v2254
    %v2256 = vmul.f32 %v2234, %v2254
    %v2257 = vadd.f32 %v2255, 0.0
    %v2258 = vadd.f32 %v2256, 0.0
    %s2259 = sld [smem:[#allocation13 + $0x1]]
    %v2260 = vstv %s2259
    %v2261 = vmul.f32 %v2233, %v2260
    %v2262 = vmul.f32 %v2234, %v2260
    %2265 = vrot.lane.b32.xlu0 %v2261, 127
    %v2266 = vpop.permute.xlu0 %2265
    %2267 = vrot.lane.b32.xlu0 %v2262, 127
    %v2268 = vpop.permute.xlu0 %2267
    %v2271 = vadd.f32 %v2239, %v2266
    %v2272 = vadd.f32 %v2240, %v2268
    %s2273 = sld [smem:[#allocation13 + $0x25]]
    %v2274 = vstv %s2273
    %v2275 = vmul.f32 %v2233, %v2274
    %v2276 = vmul.f32 %v2234, %v2274
    %2279 = vrot.lane.b32.xlu0 %v2275, 127
    %v2280 = vpop.permute.xlu0 %2279
    %2281 = vrot.lane.b32.xlu0 %v2276, 127
    %v2282 = vpop.permute.xlu0 %2281
    %v2285 = vadd.f32 %v2245, %v2280
    %v2286 = vadd.f32 %v2246, %v2282
    %s2287 = sld [smem:[#allocation13 + $0x49]]
    %v2288 = vstv %s2287
    %v2289 = vmul.f32 %v2233, %v2288
    %v2290 = vmul.f32 %v2234, %v2288
    %2293 = vrot.lane.b32.xlu0 %v2289, 127
    %v2294 = vpop.permute.xlu0 %2293
    %2295 = vrot.lane.b32.xlu0 %v2290, 127
    %v2296 = vpop.permute.xlu0 %2295
    %v2299 = vadd.f32 %v2251, %v2294
    %v2300 = vadd.f32 %v2252, %v2296
    %s2301 = sld [smem:[#allocation13 + $0x6d]]
    %v2302 = vstv %s2301
    %v2303 = vmul.f32 %v2233, %v2302
    %v2304 = vmul.f32 %v2234, %v2302
    %2307 = vrot.lane.b32.xlu0 %v2303, 127
    %v2308 = vpop.permute.xlu0 %2307
    %2309 = vrot.lane.b32.xlu0 %v2304, 127
    %v2310 = vpop.permute.xlu0 %2309
    %v2313 = vadd.f32 %v2257, %v2308
    %v2314 = vadd.f32 %v2258, %v2310
    %s2315 = sld [smem:[#allocation13 + $0x2]]
    %v2316 = vstv %s2315
    %v2317 = vmul.f32 %v2233, %v2316
    %v2318 = vmul.f32 %v2234, %v2316
    %2321 = vrot.lane.b32.xlu0 %v2317, 126
    %v2322 = vpop.permute.xlu0 %2321
    %2323 = vrot.lane.b32.xlu0 %v2318, 126
    %v2324 = vpop.permute.xlu0 %2323
    %v2327 = vadd.f32 %v2271, %v2322
    %v2328 = vadd.f32 %v2272, %v2324
    %s2329 = sld [smem:[#allocation13 + $0x26]]
    %v2330 = vstv %s2329
    %v2331 = vmul.f32 %v2233, %v2330
    %v2332 = vmul.f32 %v2234, %v2330
    %2335 = vrot.lane.b32.xlu0 %v2331, 126
    %v2336 = vpop.permute.xlu0 %2335
    %2337 = vrot.lane.b32.xlu0 %v2332, 126
    %v2338 = vpop.permute.xlu0 %2337
    %v2341 = vadd.f32 %v2285, %v2336
    %v2342 = vadd.f32 %v2286, %v2338
    %s2343 = sld [smem:[#allocation13 + $0x4a]]
    %v2344 = vstv %s2343
    %v2345 = vmul.f32 %v2233, %v2344
    %v2346 = vmul.f32 %v2234, %v2344
    %2349 = vrot.lane.b32.xlu0 %v2345, 126
    %v2350 = vpop.permute.xlu0 %2349
    %2351 = vrot.lane.b32.xlu0 %v2346, 126
    %v2352 = vpop.permute.xlu0 %2351
    %v2355 = vadd.f32 %v2299, %v2350
    %v2356 = vadd.f32 %v2300, %v2352
    %s2357 = sld [smem:[#allocation13 + $0x6e]]
    %v2358 = vstv %s2357
    %v2359 = vmul.f32 %v2233, %v2358
    %v2360 = vmul.f32 %v2234, %v2358
    %2363 = vrot.lane.b32.xlu0 %v2359, 126
    %v2364 = vpop.permute.xlu0 %2363
    %2365 = vrot.lane.b32.xlu0 %v2360, 126
    %v2366 = vpop.permute.xlu0 %2365
    %v2369 = vadd.f32 %v2313, %v2364
    %v2370 = vadd.f32 %v2314, %v2366
    %v2371 = vld [vmem:[#allocation3 + $0x1] sm:$0xff]
    %v2372 = vld [vmem:[#allocation3 + $0x9] sm:$0xff]
    %s2373 = sld [smem:[#allocation13 + $0x3]]
    %v2374 = vstv %s2373
    %v2375 = vmul.f32 %v2371, %v2374
    %v2376 = vmul.f32 %v2372, %v2374
    %v2377 = vadd.f32 %v2327, %v2375
    %v2378 = vadd.f32 %v2328, %v2376
    %s2379 = sld [smem:[#allocation13 + $0x27]]
    %v2380 = vstv %s2379
    %v2381 = vmul.f32 %v2371, %v2380
    %v2382 = vmul.f32 %v2372, %v2380
    %v2383 = vadd.f32 %v2341, %v2381
    %v2384 = vadd.f32 %v2342, %v2382
    %s2385 = sld [smem:[#allocation13 + $0x4b]]
    %v2386 = vstv %s2385
    %v2387 = vmul.f32 %v2371, %v2386
    %v2388 = vmul.f32 %v2372, %v2386
    %v2389 = vadd.f32 %v2355, %v2387
    %v2390 = vadd.f32 %v2356, %v2388
    %s2391 = sld [smem:[#allocation13 + $0x6f]]
    %v2392 = vstv %s2391
    %v2393 = vmul.f32 %v2371, %v2392
    %v2394 = vmul.f32 %v2372, %v2392
    %v2395 = vadd.f32 %v2369, %v2393
    %v2396 = vadd.f32 %v2370, %v2394
    %s2397 = sld [smem:[#allocation13 + $0x4]]
    %v2398 = vstv %s2397
    %v2399 = vmul.f32 %v2371, %v2398
    %v2400 = vmul.f32 %v2372, %v2398
    %2403 = vrot.lane.b32.xlu0 %v2399, 127
    %v2404 = vpop.permute.xlu0 %2403
    %2405 = vrot.lane.b32.xlu0 %v2400, 127
    %v2406 = vpop.permute.xlu0 %2405
    %v2409 = vadd.f32 %v2377, %v2404
    %v2410 = vadd.f32 %v2378, %v2406
    %s2411 = sld [smem:[#allocation13 + $0x28]]
    %v2412 = vstv %s2411
    %v2413 = vmul.f32 %v2371, %v2412
    %v2414 = vmul.f32 %v2372, %v2412
    %2417 = vrot.lane.b32.xlu0 %v2413, 127
    %v2418 = vpop.permute.xlu0 %2417
    %2419 = vrot.lane.b32.xlu0 %v2414, 127
    %v2420 = vpop.permute.xlu0 %2419
    %v2423 = vadd.f32 %v2383, %v2418
    %v2424 = vadd.f32 %v2384, %v2420
    %s2425 = sld [smem:[#allocation13 + $0x4c]]
    %v2426 = vstv %s2425
    %v2427 = vmul.f32 %v2371, %v2426
    %v2428 = vmul.f32 %v2372, %v2426
    %2431 = vrot.lane.b32.xlu0 %v2427, 127
    %v2432 = vpop.permute.xlu0 %2431
    %2433 = vrot.lane.b32.xlu0 %v2428, 127
    %v2434 = vpop.permute.xlu0 %2433
    %v2437 = vadd.f32 %v2389, %v2432
    %v2438 = vadd.f32 %v2390, %v2434
    %s2439 = sld [smem:[#allocation13 + $0x70]]
    %v2440 = vstv %s2439
    %v2441 = vmul.f32 %v2371, %v2440
    %v2442 = vmul.f32 %v2372, %v2440
    %2445 = vrot.lane.b32.xlu0 %v2441, 127
    %v2446 = vpop.permute.xlu0 %2445
    %2447 = vrot.lane.b32.xlu0 %v2442, 127
    %v2448 = vpop.permute.xlu0 %2447
    %v2451 = vadd.f32 %v2395, %v2446
    %v2452 = vadd.f32 %v2396, %v2448
    %s2453 = sld [smem:[#allocation13 + $0x5]]
    %v2454 = vstv %s2453
    %v2455 = vmul.f32 %v2371, %v2454
    %v2456 = vmul.f32 %v2372, %v2454
    %2459 = vrot.lane.b32.xlu0 %v2455, 126
    %v2460 = vpop.permute.xlu0 %2459
    %2461 = vrot.lane.b32.xlu0 %v2456, 126
    %v2462 = vpop.permute.xlu0 %2461
    %v2465 = vadd.f32 %v2409, %v2460
    %v2466 = vadd.f32 %v2410, %v2462
    %s2467 = sld [smem:[#allocation13 + $0x29]]
    %v2468 = vstv %s2467
    %v2469 = vmul.f32 %v2371, %v2468
    %v2470 = vmul.f32 %v2372, %v2468
    %2473 = vrot.lane.b32.xlu0 %v2469, 126
    %v2474 = vpop.permute.xlu0 %2473
    %2475 = vrot.lane.b32.xlu0 %v2470, 126
    %v2476 = vpop.permute.xlu0 %2475
    %v2479 = vadd.f32 %v2423, %v2474
    %v2480 = vadd.f32 %v2424, %v2476
    %s2481 = sld [smem:[#allocation13 + $0x4d]]
    %v2482 = vstv %s2481
    %v2483 = vmul.f32 %v2371, %v2482
    %v2484 = vmul.f32 %v2372, %v2482
    %2487 = vrot.lane.b32.xlu0 %v2483, 126
    %v2488 = vpop.permute.xlu0 %2487
    %2489 = vrot.lane.b32.xlu0 %v2484, 126
    %v2490 = vpop.permute.xlu0 %2489
    %v2493 = vadd.f32 %v2437, %v2488
    %v2494 = vadd.f32 %v2438, %v2490
    %s2495 = sld [smem:[#allocation13 + $0x71]]
    %v2496 = vstv %s2495
    %v2497 = vmul.f32 %v2371, %v2496
    %v2498 = vmul.f32 %v2372, %v2496
    %2501 = vrot.lane.b32.xlu0 %v2497, 126
    %v2502 = vpop.permute.xlu0 %2501
    %2503 = vrot.lane.b32.xlu0 %v2498, 126
    %v2504 = vpop.permute.xlu0 %2503
    %v2507 = vadd.f32 %v2451, %v2502
    %v2508 = vadd.f32 %v2452, %v2504
    %v2509 = vld [vmem:[#allocation3 + $0x2] sm:$0xff]
    %v2510 = vld [vmem:[#allocation3 + $0xa] sm:$0xff]
    %s2511 = sld [smem:[#allocation13 + $0x6]]
    %v2512 = vstv %s2511
    %v2513 = vmul.f32 %v2509, %v2512
    %v2514 = vmul.f32 %v2510, %v2512
    %v2515 = vadd.f32 %v2465, %v2513
    %v2516 = vadd.f32 %v2466, %v2514
    %s2517 = sld [smem:[#allocation13 + $0x2a]]
    %v2518 = vstv %s2517
    %v2519 = vmul.f32 %v2509, %v2518
    %v2520 = vmul.f32 %v2510, %v2518
    %v2521 = vadd.f32 %v2479, %v2519
    %v2522 = vadd.f32 %v2480, %v2520
    %s2523 = sld [smem:[#allocation13 + $0x4e]]
    %v2524 = vstv %s2523
    %v2525 = vmul.f32 %v2509, %v2524
    %v2526 = vmul.f32 %v2510, %v2524
    %v2527 = vadd.f32 %v2493, %v2525
    %v2528 = vadd.f32 %v2494, %v2526
    %s2529 = sld [smem:[#allocation13 + $0x72]]
    %v2530 = vstv %s2529
    %v2531 = vmul.f32 %v2509, %v2530
    %v2532 = vmul.f32 %v2510, %v2530
    %v2533 = vadd.f32 %v2507, %v2531
    %v2534 = vadd.f32 %v2508, %v2532
    %s2535 = sld [smem:[#allocation13 + $0x7]]
    %v2536 = vstv %s2535
    %v2537 = vmul.f32 %v2509, %v2536
    %v2538 = vmul.f32 %v2510, %v2536
    %2541 = vrot.lane.b32.xlu0 %v2537, 127
    %v2542 = vpop.permute.xlu0 %2541
    %2543 = vrot.lane.b32.xlu0 %v2538, 127
    %v2544 = vpop.permute.xlu0 %2543
    %v2547 = vadd.f32 %v2515, %v2542
    %v2548 = vadd.f32 %v2516, %v2544
    %s2549 = sld [smem:[#allocation13 + $0x2b]]
    %v2550 = vstv %s2549
    %v2551 = vmul.f32 %v2509, %v2550
    %v2552 = vmul.f32 %v2510, %v2550
    %2555 = vrot.lane.b32.xlu0 %v2551, 127
    %v2556 = vpop.permute.xlu0 %2555
    %2557 = vrot.lane.b32.xlu0 %v2552, 127
    %v2558 = vpop.permute.xlu0 %2557
    %v2561 = vadd.f32 %v2521, %v2556
    %v2562 = vadd.f32 %v2522, %v2558
    %s2563 = sld [smem:[#allocation13 + $0x4f]]
    %v2564 = vstv %s2563
    %v2565 = vmul.f32 %v2509, %v2564
    %v2566 = vmul.f32 %v2510, %v2564
    %2569 = vrot.lane.b32.xlu0 %v2565, 127
    %v2570 = vpop.permute.xlu0 %2569
    %2571 = vrot.lane.b32.xlu0 %v2566, 127
    %v2572 = vpop.permute.xlu0 %2571
    %v2575 = vadd.f32 %v2527, %v2570
    %v2576 = vadd.f32 %v2528, %v2572
    %s2577 = sld [smem:[#allocation13 + $0x73]]
    %v2578 = vstv %s2577
    %v2579 = vmul.f32 %v2509, %v2578
    %v2580 = vmul.f32 %v2510, %v2578
    %2583 = vrot.lane.b32.xlu0 %v2579, 127
    %v2584 = vpop.permute.xlu0 %2583
    %2585 = vrot.lane.b32.xlu0 %v2580, 127
    %v2586 = vpop.permute.xlu0 %2585
    %v2589 = vadd.f32 %v2533, %v2584
    %v2590 = vadd.f32 %v2534, %v2586
    %s2591 = sld [smem:[#allocation13 + $0x8]]
    %v2592 = vstv %s2591
    %v2593 = vmul.f32 %v2509, %v2592
    %v2594 = vmul.f32 %v2510, %v2592
    %2597 = vrot.lane.b32.xlu0 %v2593, 126
    %v2598 = vpop.permute.xlu0 %2597
    %2599 = vrot.lane.b32.xlu0 %v2594, 126
    %v2600 = vpop.permute.xlu0 %2599
    %v2603 = vadd.f32 %v2547, %v2598
    %v2604 = vadd.f32 %v2548, %v2600
    %s2605 = sld [smem:[#allocation13 + $0x2c]]
    %v2606 = vstv %s2605
    %v2607 = vmul.f32 %v2509, %v2606
    %v2608 = vmul.f32 %v2510, %v2606
    %2611 = vrot.lane.b32.xlu0 %v2607, 126
    %v2612 = vpop.permute.xlu0 %2611
    %2613 = vrot.lane.b32.xlu0 %v2608, 126
    %v2614 = vpop.permute.xlu0 %2613
    %v2617 = vadd.f32 %v2561, %v2612
    %v2618 = vadd.f32 %v2562, %v2614
    %s2619 = sld [smem:[#allocation13 + $0x50]]
    %v2620 = vstv %s2619
    %v2621 = vmul.f32 %v2509, %v2620
    %v2622 = vmul.f32 %v2510, %v2620
    %2625 = vrot.lane.b32.xlu0 %v2621, 126
    %v2626 = vpop.permute.xlu0 %2625
    %2627 = vrot.lane.b32.xlu0 %v2622, 126
    %v2628 = vpop.permute.xlu0 %2627
    %v2631 = vadd.f32 %v2575, %v2626
    %v2632 = vadd.f32 %v2576, %v2628
    %s2633 = sld [smem:[#allocation13 + $0x74]]
    %v2634 = vstv %s2633
    %v2635 = vmul.f32 %v2509, %v2634
    %v2636 = vmul.f32 %v2510, %v2634
    %2639 = vrot.lane.b32.xlu0 %v2635, 126
    %v2640 = vpop.permute.xlu0 %2639
    %2641 = vrot.lane.b32.xlu0 %v2636, 126
    %v2642 = vpop.permute.xlu0 %2641
    %v2645 = vadd.f32 %v2589, %v2640
    %v2646 = vadd.f32 %v2590, %v2642
    %v2647 = vld [vmem:[%s2100] sm:$0xff]
    %v2648 = vld [vmem:[%s2100 + $0x8] sm:$0xff]
    %s2649 = sld [smem:[#allocation13 + $0x9]]
    %v2650 = vstv %s2649
    %v2651 = vmul.f32 %v2647, %v2650
    %v2652 = vmul.f32 %v2648, %v2650
    %v2653 = vadd.f32 %v2603, %v2651
    %v2654 = vadd.f32 %v2604, %v2652
    %s2655 = sld [smem:[#allocation13 + $0x2d]]
    %v2656 = vstv %s2655
    %v2657 = vmul.f32 %v2647, %v2656
    %v2658 = vmul.f32 %v2648, %v2656
    %v2659 = vadd.f32 %v2617, %v2657
    %v2660 = vadd.f32 %v2618, %v2658
    %s2661 = sld [smem:[#allocation13 + $0x51]]
    %v2662 = vstv %s2661
    %v2663 = vmul.f32 %v2647, %v2662
    %v2664 = vmul.f32 %v2648, %v2662
    %v2665 = vadd.f32 %v2631, %v2663
    %v2666 = vadd.f32 %v2632, %v2664
    %s2667 = sld [smem:[#allocation13 + $0x75]]
    %v2668 = vstv %s2667
    %v2669 = vmul.f32 %v2647, %v2668
    %v2670 = vmul.f32 %v2648, %v2668
    %v2671 = vadd.f32 %v2645, %v2669
    %v2672 = vadd.f32 %v2646, %v2670
    %s2673 = sld [smem:[#allocation13 + $0xa]]
    %v2674 = vstv %s2673
    %v2675 = vmul.f32 %v2647, %v2674
    %v2676 = vmul.f32 %v2648, %v2674
    %2679 = vrot.lane.b32.xlu0 %v2675, 127
    %v2680 = vpop.permute.xlu0 %2679
    %2681 = vrot.lane.b32.xlu0 %v2676, 127
    %v2682 = vpop.permute.xlu0 %2681
    %v2685 = vadd.f32 %v2653, %v2680
    %v2686 = vadd.f32 %v2654, %v2682
    %s2687 = sld [smem:[#allocation13 + $0x2e]]
    %v2688 = vstv %s2687
    %v2689 = vmul.f32 %v2647, %v2688
    %v2690 = vmul.f32 %v2648, %v2688
    %2693 = vrot.lane.b32.xlu0 %v2689, 127
    %v2694 = vpop.permute.xlu0 %2693
    %2695 = vrot.lane.b32.xlu0 %v2690, 127
    %v2696 = vpop.permute.xlu0 %2695
    %v2699 = vadd.f32 %v2659, %v2694
    %v2700 = vadd.f32 %v2660, %v2696
    %s2701 = sld [smem:[#allocation13 + $0x52]]
    %v2702 = vstv %s2701
    %v2703 = vmul.f32 %v2647, %v2702
    %v2704 = vmul.f32 %v2648, %v2702
    %2707 = vrot.lane.b32.xlu0 %v2703, 127
    %v2708 = vpop.permute.xlu0 %2707
    %2709 = vrot.lane.b32.xlu0 %v2704, 127
    %v2710 = vpop.permute.xlu0 %2709
    %v2713 = vadd.f32 %v2665, %v2708
    %v2714 = vadd.f32 %v2666, %v2710
    %s2715 = sld [smem:[#allocation13 + $0x76]]
    %v2716 = vstv %s2715
    %v2717 = vmul.f32 %v2647, %v2716
    %v2718 = vmul.f32 %v2648, %v2716
    %2721 = vrot.lane.b32.xlu0 %v2717, 127
    %v2722 = vpop.permute.xlu0 %2721
    %2723 = vrot.lane.b32.xlu0 %v2718, 127
    %v2724 = vpop.permute.xlu0 %2723
    %v2727 = vadd.f32 %v2671, %v2722
    %v2728 = vadd.f32 %v2672, %v2724
    %s2729 = sld [smem:[#allocation13 + $0xb]]
    %v2730 = vstv %s2729
    %v2731 = vmul.f32 %v2647, %v2730
    %v2732 = vmul.f32 %v2648, %v2730
    %2735 = vrot.lane.b32.xlu0 %v2731, 126
    %v2736 = vpop.permute.xlu0 %2735
    %2737 = vrot.lane.b32.xlu0 %v2732, 126
    %v2738 = vpop.permute.xlu0 %2737
    %v2741 = vadd.f32 %v2685, %v2736
    %v2742 = vadd.f32 %v2686, %v2738
    %s2743 = sld [smem:[#allocation13 + $0x2f]]
    %v2744 = vstv %s2743
    %v2745 = vmul.f32 %v2647, %v2744
    %v2746 = vmul.f32 %v2648, %v2744
    %2749 = vrot.lane.b32.xlu0 %v2745, 126
    %v2750 = vpop.permute.xlu0 %2749
    %2751 = vrot.lane.b32.xlu0 %v2746, 126
    %v2752 = vpop.permute.xlu0 %2751
    %v2755 = vadd.f32 %v2699, %v2750
    %v2756 = vadd.f32 %v2700, %v2752
    %s2757 = sld [smem:[#allocation13 + $0x53]]
    %v2758 = vstv %s2757
    %v2759 = vmul.f32 %v2647, %v2758
    %v2760 = vmul.f32 %v2648, %v2758
    %2763 = vrot.lane.b32.xlu0 %v2759, 126
    %v2764 = vpop.permute.xlu0 %2763
    %2765 = vrot.lane.b32.xlu0 %v2760, 126
    %v2766 = vpop.permute.xlu0 %2765
    %v2769 = vadd.f32 %v2713, %v2764
    %v2770 = vadd.f32 %v2714, %v2766
    %s2771 = sld [smem:[#allocation13 + $0x77]]
    %v2772 = vstv %s2771
    %v2773 = vmul.f32 %v2647, %v2772
    %v2774 = vmul.f32 %v2648, %v2772
    %2777 = vrot.lane.b32.xlu0 %v2773, 126
    %v2778 = vpop.permute.xlu0 %2777
    %2779 = vrot.lane.b32.xlu0 %v2774, 126
    %v2780 = vpop.permute.xlu0 %2779
    %v2783 = vadd.f32 %v2727, %v2778
    %v2784 = vadd.f32 %v2728, %v2780
    %v2785 = vld [vmem:[%s2100 + $0x1] sm:$0xff]
    %v2786 = vld [vmem:[%s2100 + $0x9] sm:$0xff]
    %s2787 = sld [smem:[#allocation13 + $0xc]]
    %v2788 = vstv %s2787
    %v2789 = vmul.f32 %v2785, %v2788
    %v2790 = vmul.f32 %v2786, %v2788
    %v2791 = vadd.f32 %v2741, %v2789
    %v2792 = vadd.f32 %v2742, %v2790
    %s2793 = sld [smem:[#allocation13 + $0x30]]
    %v2794 = vstv %s2793
    %v2795 = vmul.f32 %v2785, %v2794
    %v2796 = vmul.f32 %v2786, %v2794
    %v2797 = vadd.f32 %v2755, %v2795
    %v2798 = vadd.f32 %v2756, %v2796
    %s2799 = sld [smem:[#allocation13 + $0x54]]
    %v2800 = vstv %s2799
    %v2801 = vmul.f32 %v2785, %v2800
    %v2802 = vmul.f32 %v2786, %v2800
    %v2803 = vadd.f32 %v2769, %v2801
    %v2804 = vadd.f32 %v2770, %v2802
    %s2805 = sld [smem:[#allocation13 + $0x78]]
    %v2806 = vstv %s2805
    %v2807 = vmul.f32 %v2785, %v2806
    %v2808 = vmul.f32 %v2786, %v2806
    %v2809 = vadd.f32 %v2783, %v2807
    %v2810 = vadd.f32 %v2784, %v2808
    %s2811 = sld [smem:[#allocation13 + $0xd]]
    %v2812 = vstv %s2811
    %v2813 = vmul.f32 %v2785, %v2812
    %v2814 = vmul.f32 %v2786, %v2812
    %2817 = vrot.lane.b32.xlu0 %v2813, 127
    %v2818 = vpop.permute.xlu0 %2817
    %2819 = vrot.lane.b32.xlu0 %v2814, 127
    %v2820 = vpop.permute.xlu0 %2819
    %v2823 = vadd.f32 %v2791, %v2818
    %v2824 = vadd.f32 %v2792, %v2820
    %s2825 = sld [smem:[#allocation13 + $0x31]]
    %v2826 = vstv %s2825
    %v2827 = vmul.f32 %v2785, %v2826
    %v2828 = vmul.f32 %v2786, %v2826
    %2831 = vrot.lane.b32.xlu0 %v2827, 127
    %v2832 = vpop.permute.xlu0 %2831
    %2833 = vrot.lane.b32.xlu0 %v2828, 127
    %v2834 = vpop.permute.xlu0 %2833
    %v2837 = vadd.f32 %v2797, %v2832
    %v2838 = vadd.f32 %v2798, %v2834
    %s2839 = sld [smem:[#allocation13 + $0x55]]
    %v2840 = vstv %s2839
    %v2841 = vmul.f32 %v2785, %v2840
    %v2842 = vmul.f32 %v2786, %v2840
    %2845 = vrot.lane.b32.xlu0 %v2841, 127
    %v2846 = vpop.permute.xlu0 %2845
    %2847 = vrot.lane.b32.xlu0 %v2842, 127
    %v2848 = vpop.permute.xlu0 %2847
    %v2851 = vadd.f32 %v2803, %v2846
    %v2852 = vadd.f32 %v2804, %v2848
    %s2853 = sld [smem:[#allocation13 + $0x79]]
    %v2854 = vstv %s2853
    %v2855 = vmul.f32 %v2785, %v2854
    %v2856 = vmul.f32 %v2786, %v2854
    %2859 = vrot.lane.b32.xlu0 %v2855, 127
    %v2860 = vpop.permute.xlu0 %2859
    %2861 = vrot.lane.b32.xlu0 %v2856, 127
    %v2862 = vpop.permute.xlu0 %2861
    %v2865 = vadd.f32 %v2809, %v2860
    %v2866 = vadd.f32 %v2810, %v2862
    %s2867 = sld [smem:[#allocation13 + $0xe]]
    %v2868 = vstv %s2867
    %v2869 = vmul.f32 %v2785, %v2868
    %v2870 = vmul.f32 %v2786, %v2868
    %2873 = vrot.lane.b32.xlu0 %v2869, 126
    %v2874 = vpop.permute.xlu0 %2873
    %2875 = vrot.lane.b32.xlu0 %v2870, 126
    %v2876 = vpop.permute.xlu0 %2875
    %v2879 = vadd.f32 %v2823, %v2874
    %v2880 = vadd.f32 %v2824, %v2876
    %s2881 = sld [smem:[#allocation13 + $0x32]]
    %v2882 = vstv %s2881
    %v2883 = vmul.f32 %v2785, %v2882
    %v2884 = vmul.f32 %v2786, %v2882
    %2887 = vrot.lane.b32.xlu0 %v2883, 126
    %v2888 = vpop.permute.xlu0 %2887
    %2889 = vrot.lane.b32.xlu0 %v2884, 126
    %v2890 = vpop.permute.xlu0 %2889
    %v2893 = vadd.f32 %v2837, %v2888
    %v2894 = vadd.f32 %v2838, %v2890
    %s2895 = sld [smem:[#allocation13 + $0x56]]
    %v2896 = vstv %s2895
    %v2897 = vmul.f32 %v2785, %v2896
    %v2898 = vmul.f32 %v2786, %v2896
    %2901 = vrot.lane.b32.xlu0 %v2897, 126
    %v2902 = vpop.permute.xlu0 %2901
    %2903 = vrot.lane.b32.xlu0 %v2898, 126
    %v2904 = vpop.permute.xlu0 %2903
    %v2907 = vadd.f32 %v2851, %v2902
    %v2908 = vadd.f32 %v2852, %v2904
    %s2909 = sld [smem:[#allocation13 + $0x7a]]
    %v2910 = vstv %s2909
    %v2911 = vmul.f32 %v2785, %v2910
    %v2912 = vmul.f32 %v2786, %v2910
    %2915 = vrot.lane.b32.xlu0 %v2911, 126
    %v2916 = vpop.permute.xlu0 %2915
    %2917 = vrot.lane.b32.xlu0 %v2912, 126
    %v2918 = vpop.permute.xlu0 %2917
    %v2921 = vadd.f32 %v2865, %v2916
    %v2922 = vadd.f32 %v2866, %v2918
    %v2923 = vld [vmem:[%s2100 + $0x2] sm:$0xff]
    %v2924 = vld [vmem:[%s2100 + $0xa] sm:$0xff]
    %s2925 = sld [smem:[#allocation13 + $0xf]]
    %v2926 = vstv %s2925
    %v2927 = vmul.f32 %v2923, %v2926
    %v2928 = vmul.f32 %v2924, %v2926
    %v2929 = vadd.f32 %v2879, %v2927
    %v2930 = vadd.f32 %v2880, %v2928
    %s2931 = sld [smem:[#allocation13 + $0x33]]
    %v2932 = vstv %s2931
    %v2933 = vmul.f32 %v2923, %v2932
    %v2934 = vmul.f32 %v2924, %v2932
    %v2935 = vadd.f32 %v2893, %v2933
    %v2936 = vadd.f32 %v2894, %v2934
    %s2937 = sld [smem:[#allocation13 + $0x57]]
    %v2938 = vstv %s2937
    %v2939 = vmul.f32 %v2923, %v2938
    %v2940 = vmul.f32 %v2924, %v2938
    %v2941 = vadd.f32 %v2907, %v2939
    %v2942 = vadd.f32 %v2908, %v2940
    %s2943 = sld [smem:[#allocation13 + $0x7b]]
    %v2944 = vstv %s2943
    %v2945 = vmul.f32 %v2923, %v2944
    %v2946 = vmul.f32 %v2924, %v2944
    %v2947 = vadd.f32 %v2921, %v2945
    %v2948 = vadd.f32 %v2922, %v2946
    %s2949 = sld [smem:[#allocation13 + $0x10]]
    %v2950 = vstv %s2949
    %v2951 = vmul.f32 %v2923, %v2950
    %v2952 = vmul.f32 %v2924, %v2950
    %2955 = vrot.lane.b32.xlu0 %v2951, 127
    %v2956 = vpop.permute.xlu0 %2955
    %2957 = vrot.lane.b32.xlu0 %v2952, 127
    %v2958 = vpop.permute.xlu0 %2957
    %v2961 = vadd.f32 %v2929, %v2956
    %v2962 = vadd.f32 %v2930, %v2958
    %s2963 = sld [smem:[#allocation13 + $0x34]]
    %v2964 = vstv %s2963
    %v2965 = vmul.f32 %v2923, %v2964
    %v2966 = vmul.f32 %v2924, %v2964
    %2969 = vrot.lane.b32.xlu0 %v2965, 127
    %v2970 = vpop.permute.xlu0 %2969
    %2971 = vrot.lane.b32.xlu0 %v2966, 127
    %v2972 = vpop.permute.xlu0 %2971
    %v2975 = vadd.f32 %v2935, %v2970
    %v2976 = vadd.f32 %v2936, %v2972
    %s2977 = sld [smem:[#allocation13 + $0x58]]
    %v2978 = vstv %s2977
    %v2979 = vmul.f32 %v2923, %v2978
    %v2980 = vmul.f32 %v2924, %v2978
    %2983 = vrot.lane.b32.xlu0 %v2979, 127
    %v2984 = vpop.permute.xlu0 %2983
    %2985 = vrot.lane.b32.xlu0 %v2980, 127
    %v2986 = vpop.permute.xlu0 %2985
    %v2989 = vadd.f32 %v2941, %v2984
    %v2990 = vadd.f32 %v2942, %v2986
    %s2991 = sld [smem:[#allocation13 + $0x7c]]
    %v2992 = vstv %s2991
    %v2993 = vmul.f32 %v2923, %v2992
    %v2994 = vmul.f32 %v2924, %v2992
    %2997 = vrot.lane.b32.xlu0 %v2993, 127
    %v2998 = vpop.permute.xlu0 %2997
    %2999 = vrot.lane.b32.xlu0 %v2994, 127
    %v3000 = vpop.permute.xlu0 %2999
    %v3003 = vadd.f32 %v2947, %v2998
    %v3004 = vadd.f32 %v2948, %v3000
    %s3005 = sld [smem:[#allocation13 + $0x11]]
    %v3006 = vstv %s3005
    %v3007 = vmul.f32 %v2923, %v3006
    %v3008 = vmul.f32 %v2924, %v3006
    %3011 = vrot.lane.b32.xlu0 %v3007, 126
    %v3012 = vpop.permute.xlu0 %3011
    %3013 = vrot.lane.b32.xlu0 %v3008, 126
    %v3014 = vpop.permute.xlu0 %3013
    %v3017 = vadd.f32 %v2961, %v3012
    %v3018 = vadd.f32 %v2962, %v3014
    %s3019 = sld [smem:[#allocation13 + $0x35]]
    %v3020 = vstv %s3019
    %v3021 = vmul.f32 %v2923, %v3020
    %v3022 = vmul.f32 %v2924, %v3020
    %3025 = vrot.lane.b32.xlu0 %v3021, 126
    %v3026 = vpop.permute.xlu0 %3025
    %3027 = vrot.lane.b32.xlu0 %v3022, 126
    %v3028 = vpop.permute.xlu0 %3027
    %v3031 = vadd.f32 %v2975, %v3026
    %v3032 = vadd.f32 %v2976, %v3028
    %s3033 = sld [smem:[#allocation13 + $0x59]]
    %v3034 = vstv %s3033
    %v3035 = vmul.f32 %v2923, %v3034
    %v3036 = vmul.f32 %v2924, %v3034
    %3039 = vrot.lane.b32.xlu0 %v3035, 126
    %v3040 = vpop.permute.xlu0 %3039
    %3041 = vrot.lane.b32.xlu0 %v3036, 126
    %v3042 = vpop.permute.xlu0 %3041
    %v3045 = vadd.f32 %v2989, %v3040
    %v3046 = vadd.f32 %v2990, %v3042
    %s3047 = sld [smem:[#allocation13 + $0x7d]]
    %v3048 = vstv %s3047
    %v3049 = vmul.f32 %v2923, %v3048
    %v3050 = vmul.f32 %v2924, %v3048
    %3053 = vrot.lane.b32.xlu0 %v3049, 126
    %v3054 = vpop.permute.xlu0 %3053
    %3055 = vrot.lane.b32.xlu0 %v3050, 126
    %v3056 = vpop.permute.xlu0 %3055
    %v3059 = vadd.f32 %v3003, %v3054
    %v3060 = vadd.f32 %v3004, %v3056
    %v3061 = vld [vmem:[%s2137] sm:$0xff]
    %v3062 = vld [vmem:[%s2137 + $0x8] sm:$0xff]
    %s3063 = sld [smem:[#allocation13 + $0x12]]
    %v3064 = vstv %s3063
    %v3065 = vmul.f32 %v3061, %v3064
    %v3066 = vmul.f32 %v3062, %v3064
    %v3067 = vadd.f32 %v3017, %v3065
    %v3068 = vadd.f32 %v3018, %v3066
    %s3069 = sld [smem:[#allocation13 + $0x36]]
    %v3070 = vstv %s3069
    %v3071 = vmul.f32 %v3061, %v3070
    %v3072 = vmul.f32 %v3062, %v3070
    %v3073 = vadd.f32 %v3031, %v3071
    %v3074 = vadd.f32 %v3032, %v3072
    %s3075 = sld [smem:[#allocation13 + $0x5a]]
    %v3076 = vstv %s3075
    %v3077 = vmul.f32 %v3061, %v3076
    %v3078 = vmul.f32 %v3062, %v3076
    %v3079 = vadd.f32 %v3045, %v3077
    %v3080 = vadd.f32 %v3046, %v3078
    %s3081 = sld [smem:[#allocation13 + $0x7e]]
    %v3082 = vstv %s3081
    %v3083 = vmul.f32 %v3061, %v3082
    %v3084 = vmul.f32 %v3062, %v3082
    %v3085 = vadd.f32 %v3059, %v3083
    %v3086 = vadd.f32 %v3060, %v3084
    %s3087 = sld [smem:[#allocation13 + $0x13]]
    %v3088 = vstv %s3087
    %v3089 = vmul.f32 %v3061, %v3088
    %v3090 = vmul.f32 %v3062, %v3088
    %3093 = vrot.lane.b32.xlu0 %v3089, 127
    %v3094 = vpop.permute.xlu0 %3093
    %3095 = vrot.lane.b32.xlu0 %v3090, 127
    %v3096 = vpop.permute.xlu0 %3095
    %v3099 = vadd.f32 %v3067, %v3094
    %v3100 = vadd.f32 %v3068, %v3096
    %s3101 = sld [smem:[#allocation13 + $0x37]]
    %v3102 = vstv %s3101
    %v3103 = vmul.f32 %v3061, %v3102
    %v3104 = vmul.f32 %v3062, %v3102
    %3107 = vrot.lane.b32.xlu0 %v3103, 127
    %v3108 = vpop.permute.xlu0 %3107
    %3109 = vrot.lane.b32.xlu0 %v3104, 127
    %v3110 = vpop.permute.xlu0 %3109
    %v3113 = vadd.f32 %v3073, %v3108
    %v3114 = vadd.f32 %v3074, %v3110
    %s3115 = sld [smem:[#allocation13 + $0x5b]]
    %v3116 = vstv %s3115
    %v3117 = vmul.f32 %v3061, %v3116
    %v3118 = vmul.f32 %v3062, %v3116
    %3121 = vrot.lane.b32.xlu0 %v3117, 127
    %v3122 = vpop.permute.xlu0 %3121
    %3123 = vrot.lane.b32.xlu0 %v3118, 127
    %v3124 = vpop.permute.xlu0 %3123
    %v3127 = vadd.f32 %v3079, %v3122
    %v3128 = vadd.f32 %v3080, %v3124
    %s3129 = sld [smem:[#allocation13 + $0x7f]]
    %v3130 = vstv %s3129
    %v3131 = vmul.f32 %v3061, %v3130
    %v3132 = vmul.f32 %v3062, %v3130
    %3135 = vrot.lane.b32.xlu0 %v3131, 127
    %v3136 = vpop.permute.xlu0 %3135
    %3137 = vrot.lane.b32.xlu0 %v3132, 127
    %v3138 = vpop.permute.xlu0 %3137
    %v3141 = vadd.f32 %v3085, %v3136
    %v3142 = vadd.f32 %v3086, %v3138
    %s3143 = sld [smem:[#allocation13 + $0x14]]
    %v3144 = vstv %s3143
    %v3145 = vmul.f32 %v3061, %v3144
    %v3146 = vmul.f32 %v3062, %v3144
    %3149 = vrot.lane.b32.xlu0 %v3145, 126
    %v3150 = vpop.permute.xlu0 %3149
    %3151 = vrot.lane.b32.xlu0 %v3146, 126
    %v3152 = vpop.permute.xlu0 %3151
    %v3155 = vadd.f32 %v3099, %v3150
    %v3156 = vadd.f32 %v3100, %v3152
    %s3157 = sld [smem:[#allocation13 + $0x38]]
    %v3158 = vstv %s3157
    %v3159 = vmul.f32 %v3061, %v3158
    %v3160 = vmul.f32 %v3062, %v3158
    %3163 = vrot.lane.b32.xlu0 %v3159, 126
    %v3164 = vpop.permute.xlu0 %3163
    %3165 = vrot.lane.b32.xlu0 %v3160, 126
    %v3166 = vpop.permute.xlu0 %3165
    %v3169 = vadd.f32 %v3113, %v3164
    %v3170 = vadd.f32 %v3114, %v3166
    %s3171 = sld [smem:[#allocation13 + $0x5c]]
    %v3172 = vstv %s3171
    %v3173 = vmul.f32 %v3061, %v3172
    %v3174 = vmul.f32 %v3062, %v3172
    %3177 = vrot.lane.b32.xlu0 %v3173, 126
    %v3178 = vpop.permute.xlu0 %3177
    %3179 = vrot.lane.b32.xlu0 %v3174, 126
    %v3180 = vpop.permute.xlu0 %3179
    %v3183 = vadd.f32 %v3127, %v3178
    %v3184 = vadd.f32 %v3128, %v3180
    %s3185 = sld [smem:[#allocation13 + $0x80]]
    %v3186 = vstv %s3185
    %v3187 = vmul.f32 %v3061, %v3186
    %v3188 = vmul.f32 %v3062, %v3186
    %3191 = vrot.lane.b32.xlu0 %v3187, 126
    %v3192 = vpop.permute.xlu0 %3191
    %3193 = vrot.lane.b32.xlu0 %v3188, 126
    %v3194 = vpop.permute.xlu0 %3193
    %v3197 = vadd.f32 %v3141, %v3192
    %v3198 = vadd.f32 %v3142, %v3194
    %v3199 = vld [vmem:[%s2137 + $0x1] sm:$0xff]
    %v3200 = vld [vmem:[%s2137 + $0x9] sm:$0xff]
    %s3201 = sld [smem:[#allocation13 + $0x15]]
    %v3202 = vstv %s3201
    %v3203 = vmul.f32 %v3199, %v3202
    %v3204 = vmul.f32 %v3200, %v3202
    %v3205 = vadd.f32 %v3155, %v3203
    %v3206 = vadd.f32 %v3156, %v3204
    %s3207 = sld [smem:[#allocation13 + $0x39]]
    %v3208 = vstv %s3207
    %v3209 = vmul.f32 %v3199, %v3208
    %v3210 = vmul.f32 %v3200, %v3208
    %v3211 = vadd.f32 %v3169, %v3209
    %v3212 = vadd.f32 %v3170, %v3210
    %s3213 = sld [smem:[#allocation13 + $0x5d]]
    %v3214 = vstv %s3213
    %v3215 = vmul.f32 %v3199, %v3214
    %v3216 = vmul.f32 %v3200, %v3214
    %v3217 = vadd.f32 %v3183, %v3215
    %v3218 = vadd.f32 %v3184, %v3216
    %s3219 = sld [smem:[#allocation13 + $0x81]]
    %v3220 = vstv %s3219
    %v3221 = vmul.f32 %v3199, %v3220
    %v3222 = vmul.f32 %v3200, %v3220
    %v3223 = vadd.f32 %v3197, %v3221
    %v3224 = vadd.f32 %v3198, %v3222
    %s3225 = sld [smem:[#allocation13 + $0x16]]
    %v3226 = vstv %s3225
    %v3227 = vmul.f32 %v3199, %v3226
    %v3228 = vmul.f32 %v3200, %v3226
    %3231 = vrot.lane.b32.xlu0 %v3227, 127
    %v3232 = vpop.permute.xlu0 %3231
    %3233 = vrot.lane.b32.xlu0 %v3228, 127
    %v3234 = vpop.permute.xlu0 %3233
    %v3237 = vadd.f32 %v3205, %v3232
    %v3238 = vadd.f32 %v3206, %v3234
    %s3239 = sld [smem:[#allocation13 + $0x3a]]
    %v3240 = vstv %s3239
    %v3241 = vmul.f32 %v3199, %v3240
    %v3242 = vmul.f32 %v3200, %v3240
    %3245 = vrot.lane.b32.xlu0 %v3241, 127
    %v3246 = vpop.permute.xlu0 %3245
    %3247 = vrot.lane.b32.xlu0 %v3242, 127
    %v3248 = vpop.permute.xlu0 %3247
    %v3251 = vadd.f32 %v3211, %v3246
    %v3252 = vadd.f32 %v3212, %v3248
    %s3253 = sld [smem:[#allocation13 + $0x5e]]
    %v3254 = vstv %s3253
    %v3255 = vmul.f32 %v3199, %v3254
    %v3256 = vmul.f32 %v3200, %v3254
    %3259 = vrot.lane.b32.xlu0 %v3255, 127
    %v3260 = vpop.permute.xlu0 %3259
    %3261 = vrot.lane.b32.xlu0 %v3256, 127
    %v3262 = vpop.permute.xlu0 %3261
    %v3265 = vadd.f32 %v3217, %v3260
    %v3266 = vadd.f32 %v3218, %v3262
    %s3267 = sld [smem:[#allocation13 + $0x82]]
    %v3268 = vstv %s3267
    %v3269 = vmul.f32 %v3199, %v3268
    %v3270 = vmul.f32 %v3200, %v3268
    %3273 = vrot.lane.b32.xlu0 %v3269, 127
    %v3274 = vpop.permute.xlu0 %3273
    %3275 = vrot.lane.b32.xlu0 %v3270, 127
    %v3276 = vpop.permute.xlu0 %3275
    %v3279 = vadd.f32 %v3223, %v3274
    %v3280 = vadd.f32 %v3224, %v3276
    %s3281 = sld [smem:[#allocation13 + $0x17]]
    %v3282 = vstv %s3281
    %v3283 = vmul.f32 %v3199, %v3282
    %v3284 = vmul.f32 %v3200, %v3282
    %3287 = vrot.lane.b32.xlu0 %v3283, 126
    %v3288 = vpop.permute.xlu0 %3287
    %3289 = vrot.lane.b32.xlu0 %v3284, 126
    %v3290 = vpop.permute.xlu0 %3289
    %v3293 = vadd.f32 %v3237, %v3288
    %v3294 = vadd.f32 %v3238, %v3290
    %s3295 = sld [smem:[#allocation13 + $0x3b]]
    %v3296 = vstv %s3295
    %v3297 = vmul.f32 %v3199, %v3296
    %v3298 = vmul.f32 %v3200, %v3296
    %3301 = vrot.lane.b32.xlu0 %v3297, 126
    %v3302 = vpop.permute.xlu0 %3301
    %3303 = vrot.lane.b32.xlu0 %v3298, 126
    %v3304 = vpop.permute.xlu0 %3303
    %v3307 = vadd.f32 %v3251, %v3302
    %v3308 = vadd.f32 %v3252, %v3304
    %s3309 = sld [smem:[#allocation13 + $0x5f]]
    %v3310 = vstv %s3309
    %v3311 = vmul.f32 %v3199, %v3310
    %v3312 = vmul.f32 %v3200, %v3310
    %3315 = vrot.lane.b32.xlu0 %v3311, 126
    %v3316 = vpop.permute.xlu0 %3315
    %3317 = vrot.lane.b32.xlu0 %v3312, 126
    %v3318 = vpop.permute.xlu0 %3317
    %v3321 = vadd.f32 %v3265, %v3316
    %v3322 = vadd.f32 %v3266, %v3318
    %s3323 = sld [smem:[#allocation13 + $0x83]]
    %v3324 = vstv %s3323
    %v3325 = vmul.f32 %v3199, %v3324
    %v3326 = vmul.f32 %v3200, %v3324
    %3329 = vrot.lane.b32.xlu0 %v3325, 126
    %v3330 = vpop.permute.xlu0 %3329
    %3331 = vrot.lane.b32.xlu0 %v3326, 126
    %v3332 = vpop.permute.xlu0 %3331
    %v3335 = vadd.f32 %v3279, %v3330
    %v3336 = vadd.f32 %v3280, %v3332
    %v3337 = vld [vmem:[%s2137 + $0x2] sm:$0xff]
    %v3338 = vld [vmem:[%s2137 + $0xa] sm:$0xff]
    %s3339 = sld [smem:[#allocation13 + $0x18]]
    %v3340 = vstv %s3339
    %v3341 = vmul.f32 %v3337, %v3340
    %v3342 = vmul.f32 %v3338, %v3340
    %v3343 = vadd.f32 %v3293, %v3341
    %v3344 = vadd.f32 %v3294, %v3342
    %s3345 = sld [smem:[#allocation13 + $0x3c]]
    %v3346 = vstv %s3345
    %v3347 = vmul.f32 %v3337, %v3346
    %v3348 = vmul.f32 %v3338, %v3346
    %v3349 = vadd.f32 %v3307, %v3347
    %v3350 = vadd.f32 %v3308, %v3348
    %s3351 = sld [smem:[#allocation13 + $0x60]]
    %v3352 = vstv %s3351
    %v3353 = vmul.f32 %v3337, %v3352
    %v3354 = vmul.f32 %v3338, %v3352
    %v3355 = vadd.f32 %v3321, %v3353
    %v3356 = vadd.f32 %v3322, %v3354
    %s3357 = sld [smem:[#allocation13 + $0x84]]
    %v3358 = vstv %s3357
    %v3359 = vmul.f32 %v3337, %v3358
    %v3360 = vmul.f32 %v3338, %v3358
    %v3361 = vadd.f32 %v3335, %v3359
    %v3362 = vadd.f32 %v3336, %v3360
    %s3363 = sld [smem:[#allocation13 + $0x19]]
    %v3364 = vstv %s3363
    %v3365 = vmul.f32 %v3337, %v3364
    %v3366 = vmul.f32 %v3338, %v3364
    %3369 = vrot.lane.b32.xlu0 %v3365, 127
    %v3370 = vpop.permute.xlu0 %3369
    %3371 = vrot.lane.b32.xlu0 %v3366, 127
    %v3372 = vpop.permute.xlu0 %3371
    %v3375 = vadd.f32 %v3343, %v3370
    %v3376 = vadd.f32 %v3344, %v3372
    %s3377 = sld [smem:[#allocation13 + $0x3d]]
    %v3378 = vstv %s3377
    %v3379 = vmul.f32 %v3337, %v3378
    %v3380 = vmul.f32 %v3338, %v3378
    %3383 = vrot.lane.b32.xlu0 %v3379, 127
    %v3384 = vpop.permute.xlu0 %3383
    %3385 = vrot.lane.b32.xlu0 %v3380, 127
    %v3386 = vpop.permute.xlu0 %3385
    %v3389 = vadd.f32 %v3349, %v3384
    %v3390 = vadd.f32 %v3350, %v3386
    %s3391 = sld [smem:[#allocation13 + $0x61]]
    %v3392 = vstv %s3391
    %v3393 = vmul.f32 %v3337, %v3392
    %v3394 = vmul.f32 %v3338, %v3392
    %3397 = vrot.lane.b32.xlu0 %v3393, 127
    %v3398 = vpop.permute.xlu0 %3397
    %3399 = vrot.lane.b32.xlu0 %v3394, 127
    %v3400 = vpop.permute.xlu0 %3399
    %v3403 = vadd.f32 %v3355, %v3398
    %v3404 = vadd.f32 %v3356, %v3400
    %s3405 = sld [smem:[#allocation13 + $0x85]]
    %v3406 = vstv %s3405
    %v3407 = vmul.f32 %v3337, %v3406
    %v3408 = vmul.f32 %v3338, %v3406
    %3411 = vrot.lane.b32.xlu0 %v3407, 127
    %v3412 = vpop.permute.xlu0 %3411
    %3413 = vrot.lane.b32.xlu0 %v3408, 127
    %v3414 = vpop.permute.xlu0 %3413
    %v3417 = vadd.f32 %v3361, %v3412
    %v3418 = vadd.f32 %v3362, %v3414
    %s3419 = sld [smem:[#allocation13 + $0x1a]]
    %v3420 = vstv %s3419
    %v3421 = vmul.f32 %v3337, %v3420
    %v3422 = vmul.f32 %v3338, %v3420
    %3425 = vrot.lane.b32.xlu0 %v3421, 126
    %v3426 = vpop.permute.xlu0 %3425
    %3427 = vrot.lane.b32.xlu0 %v3422, 126
    %v3428 = vpop.permute.xlu0 %3427
    %v3431 = vadd.f32 %v3375, %v3426
    %v3432 = vadd.f32 %v3376, %v3428
    %s3433 = sld [smem:[#allocation13 + $0x3e]]
    %v3434 = vstv %s3433
    %v3435 = vmul.f32 %v3337, %v3434
    %v3436 = vmul.f32 %v3338, %v3434
    %3439 = vrot.lane.b32.xlu0 %v3435, 126
    %v3440 = vpop.permute.xlu0 %3439
    %3441 = vrot.lane.b32.xlu0 %v3436, 126
    %v3442 = vpop.permute.xlu0 %3441
    %v3445 = vadd.f32 %v3389, %v3440
    %v3446 = vadd.f32 %v3390, %v3442
    %s3447 = sld [smem:[#allocation13 + $0x62]]
    %v3448 = vstv %s3447
    %v3449 = vmul.f32 %v3337, %v3448
    %v3450 = vmul.f32 %v3338, %v3448
    %3453 = vrot.lane.b32.xlu0 %v3449, 126
    %v3454 = vpop.permute.xlu0 %3453
    %3455 = vrot.lane.b32.xlu0 %v3450, 126
    %v3456 = vpop.permute.xlu0 %3455
    %v3459 = vadd.f32 %v3403, %v3454
    %v3460 = vadd.f32 %v3404, %v3456
    %s3461 = sld [smem:[#allocation13 + $0x86]]
    %v3462 = vstv %s3461
    %v3463 = vmul.f32 %v3337, %v3462
    %v3464 = vmul.f32 %v3338, %v3462
    %3467 = vrot.lane.b32.xlu0 %v3463, 126
    %v3468 = vpop.permute.xlu0 %3467
    %3469 = vrot.lane.b32.xlu0 %v3464, 126
    %v3470 = vpop.permute.xlu0 %3469
    %v3473 = vadd.f32 %v3417, %v3468
    %v3474 = vadd.f32 %v3418, %v3470
    %v3475 = vld [vmem:[%s2174] sm:$0xff]
    %v3476 = vld [vmem:[%s2174 + $0x8] sm:$0xff]
    %s3477 = sld [smem:[#allocation13 + $0x1b]]
    %v3478 = vstv %s3477
    %v3479 = vmul.f32 %v3475, %v3478
    %v3480 = vmul.f32 %v3476, %v3478
    %v3481 = vadd.f32 %v3431, %v3479
    %v3482 = vadd.f32 %v3432, %v3480
    %s3483 = sld [smem:[#allocation13 + $0x3f]]
    %v3484 = vstv %s3483
    %v3485 = vmul.f32 %v3475, %v3484
    %v3486 = vmul.f32 %v3476, %v3484
    %v3487 = vadd.f32 %v3445, %v3485
    %v3488 = vadd.f32 %v3446, %v3486
    %s3489 = sld [smem:[#allocation13 + $0x63]]
    %v3490 = vstv %s3489
    %v3491 = vmul.f32 %v3475, %v3490
    %v3492 = vmul.f32 %v3476, %v3490
    %v3493 = vadd.f32 %v3459, %v3491
    %v3494 = vadd.f32 %v3460, %v3492
    %s3495 = sld [smem:[#allocation13 + $0x87]]
    %v3496 = vstv %s3495
    %v3497 = vmul.f32 %v3475, %v3496
    %v3498 = vmul.f32 %v3476, %v3496
    %v3499 = vadd.f32 %v3473, %v3497
    %v3500 = vadd.f32 %v3474, %v3498
    %s3501 = sld [smem:[#allocation13 + $0x1c]]
    %v3502 = vstv %s3501
    %v3503 = vmul.f32 %v3475, %v3502
    %v3504 = vmul.f32 %v3476, %v3502
    %3507 = vrot.lane.b32.xlu0 %v3503, 127
    %v3508 = vpop.permute.xlu0 %3507
    %3509 = vrot.lane.b32.xlu0 %v3504, 127
    %v3510 = vpop.permute.xlu0 %3509
    %v3513 = vadd.f32 %v3481, %v3508
    %v3514 = vadd.f32 %v3482, %v3510
    %s3515 = sld [smem:[#allocation13 + $0x40]]
    %v3516 = vstv %s3515
    %v3517 = vmul.f32 %v3475, %v3516
    %v3518 = vmul.f32 %v3476, %v3516
    %3521 = vrot.lane.b32.xlu0 %v3517, 127
    %v3522 = vpop.permute.xlu0 %3521
    %3523 = vrot.lane.b32.xlu0 %v3518, 127
    %v3524 = vpop.permute.xlu0 %3523
    %v3527 = vadd.f32 %v3487, %v3522
    %v3528 = vadd.f32 %v3488, %v3524
    %s3529 = sld [smem:[#allocation13 + $0x64]]
    %v3530 = vstv %s3529
    %v3531 = vmul.f32 %v3475, %v3530
    %v3532 = vmul.f32 %v3476, %v3530
    %3535 = vrot.lane.b32.xlu0 %v3531, 127
    %v3536 = vpop.permute.xlu0 %3535
    %3537 = vrot.lane.b32.xlu0 %v3532, 127
    %v3538 = vpop.permute.xlu0 %3537
    %v3541 = vadd.f32 %v3493, %v3536
    %v3542 = vadd.f32 %v3494, %v3538
    %s3543 = sld [smem:[#allocation13 + $0x88]]
    %v3544 = vstv %s3543
    %v3545 = vmul.f32 %v3475, %v3544
    %v3546 = vmul.f32 %v3476, %v3544
    %3549 = vrot.lane.b32.xlu0 %v3545, 127
    %v3550 = vpop.permute.xlu0 %3549
    %3551 = vrot.lane.b32.xlu0 %v3546, 127
    %v3552 = vpop.permute.xlu0 %3551
    %v3555 = vadd.f32 %v3499, %v3550
    %v3556 = vadd.f32 %v3500, %v3552
    %s3557 = sld [smem:[#allocation13 + $0x1d]]
    %v3558 = vstv %s3557
    %v3559 = vmul.f32 %v3475, %v3558
    %v3560 = vmul.f32 %v3476, %v3558
    %3563 = vrot.lane.b32.xlu0 %v3559, 126
    %v3564 = vpop.permute.xlu0 %3563
    %3565 = vrot.lane.b32.xlu0 %v3560, 126
    %v3566 = vpop.permute.xlu0 %3565
    %v3569 = vadd.f32 %v3513, %v3564
    %v3570 = vadd.f32 %v3514, %v3566
    %s3571 = sld [smem:[#allocation13 + $0x41]]
    %v3572 = vstv %s3571
    %v3573 = vmul.f32 %v3475, %v3572
    %v3574 = vmul.f32 %v3476, %v3572
    %3577 = vrot.lane.b32.xlu0 %v3573, 126
    %v3578 = vpop.permute.xlu0 %3577
    %3579 = vrot.lane.b32.xlu0 %v3574, 126
    %v3580 = vpop.permute.xlu0 %3579
    %v3583 = vadd.f32 %v3527, %v3578
    %v3584 = vadd.f32 %v3528, %v3580
    %s3585 = sld [smem:[#allocation13 + $0x65]]
    %v3586 = vstv %s3585
    %v3587 = vmul.f32 %v3475, %v3586
    %v3588 = vmul.f32 %v3476, %v3586
    %3591 = vrot.lane.b32.xlu0 %v3587, 126
    %v3592 = vpop.permute.xlu0 %3591
    %3593 = vrot.lane.b32.xlu0 %v3588, 126
    %v3594 = vpop.permute.xlu0 %3593
    %v3597 = vadd.f32 %v3541, %v3592
    %v3598 = vadd.f32 %v3542, %v3594
    %s3599 = sld [smem:[#allocation13 + $0x89]]
    %v3600 = vstv %s3599
    %v3601 = vmul.f32 %v3475, %v3600
    %v3602 = vmul.f32 %v3476, %v3600
    %3605 = vrot.lane.b32.xlu0 %v3601, 126
    %v3606 = vpop.permute.xlu0 %3605
    %3607 = vrot.lane.b32.xlu0 %v3602, 126
    %v3608 = vpop.permute.xlu0 %3607
    %v3611 = vadd.f32 %v3555, %v3606
    %v3612 = vadd.f32 %v3556, %v3608
    %v3613 = vld [vmem:[%s2174 + $0x1] sm:$0xff]
    %v3614 = vld [vmem:[%s2174 + $0x9] sm:$0xff]
    %s3615 = sld [smem:[#allocation13 + $0x1e]]
    %v3616 = vstv %s3615
    %v3617 = vmul.f32 %v3613, %v3616
    %v3618 = vmul.f32 %v3614, %v3616
    %v3619 = vadd.f32 %v3569, %v3617
    %v3620 = vadd.f32 %v3570, %v3618
    %s3621 = sld [smem:[#allocation13 + $0x42]]
    %v3622 = vstv %s3621
    %v3623 = vmul.f32 %v3613, %v3622
    %v3624 = vmul.f32 %v3614, %v3622
    %v3625 = vadd.f32 %v3583, %v3623
    %v3626 = vadd.f32 %v3584, %v3624
    %s3627 = sld [smem:[#allocation13 + $0x66]]
    %v3628 = vstv %s3627
    %v3629 = vmul.f32 %v3613, %v3628
    %v3630 = vmul.f32 %v3614, %v3628
    %v3631 = vadd.f32 %v3597, %v3629
    %v3632 = vadd.f32 %v3598, %v3630
    %s3633 = sld [smem:[#allocation13 + $0x8a]]
    %v3634 = vstv %s3633
    %v3635 = vmul.f32 %v3613, %v3634
    %v3636 = vmul.f32 %v3614, %v3634
    %v3637 = vadd.f32 %v3611, %v3635
    %v3638 = vadd.f32 %v3612, %v3636
    %s3639 = sld [smem:[#allocation13 + $0x1f]]
    %v3640 = vstv %s3639
    %v3641 = vmul.f32 %v3613, %v3640
    %v3642 = vmul.f32 %v3614, %v3640
    %3645 = vrot.lane.b32.xlu0 %v3641, 127
    %v3646 = vpop.permute.xlu0 %3645
    %3647 = vrot.lane.b32.xlu0 %v3642, 127
    %v3648 = vpop.permute.xlu0 %3647
    %v3651 = vadd.f32 %v3619, %v3646
    %v3652 = vadd.f32 %v3620, %v3648
    %s3653 = sld [smem:[#allocation13 + $0x43]]
    %v3654 = vstv %s3653
    %v3655 = vmul.f32 %v3613, %v3654
    %v3656 = vmul.f32 %v3614, %v3654
    %3659 = vrot.lane.b32.xlu0 %v3655, 127
    %v3660 = vpop.permute.xlu0 %3659
    %3661 = vrot.lane.b32.xlu0 %v3656, 127
    %v3662 = vpop.permute.xlu0 %3661
    %v3665 = vadd.f32 %v3625, %v3660
    %v3666 = vadd.f32 %v3626, %v3662
    %s3667 = sld [smem:[#allocation13 + $0x67]]
    %v3668 = vstv %s3667
    %v3669 = vmul.f32 %v3613, %v3668
    %v3670 = vmul.f32 %v3614, %v3668
    %3673 = vrot.lane.b32.xlu0 %v3669, 127
    %v3674 = vpop.permute.xlu0 %3673
    %3675 = vrot.lane.b32.xlu0 %v3670, 127
    %v3676 = vpop.permute.xlu0 %3675
    %v3679 = vadd.f32 %v3631, %v3674
    %v3680 = vadd.f32 %v3632, %v3676
    %s3681 = sld [smem:[#allocation13 + $0x8b]]
    %v3682 = vstv %s3681
    %v3683 = vmul.f32 %v3613, %v3682
    %v3684 = vmul.f32 %v3614, %v3682
    %3687 = vrot.lane.b32.xlu0 %v3683, 127
    %v3688 = vpop.permute.xlu0 %3687
    %3689 = vrot.lane.b32.xlu0 %v3684, 127
    %v3690 = vpop.permute.xlu0 %3689
    %v3693 = vadd.f32 %v3637, %v3688
    %v3694 = vadd.f32 %v3638, %v3690
    %s3695 = sld [smem:[#allocation13 + $0x20]]
    %v3696 = vstv %s3695
    %v3697 = vmul.f32 %v3613, %v3696
    %v3698 = vmul.f32 %v3614, %v3696
    %3701 = vrot.lane.b32.xlu0 %v3697, 126
    %v3702 = vpop.permute.xlu0 %3701
    %3703 = vrot.lane.b32.xlu0 %v3698, 126
    %v3704 = vpop.permute.xlu0 %3703
    %v3707 = vadd.f32 %v3651, %v3702
    %v3708 = vadd.f32 %v3652, %v3704
    %s3709 = sld [smem:[#allocation13 + $0x44]]
    %v3710 = vstv %s3709
    %v3711 = vmul.f32 %v3613, %v3710
    %v3712 = vmul.f32 %v3614, %v3710
    %3715 = vrot.lane.b32.xlu0 %v3711, 126
    %v3716 = vpop.permute.xlu0 %3715
    %3717 = vrot.lane.b32.xlu0 %v3712, 126
    %v3718 = vpop.permute.xlu0 %3717
    %v3721 = vadd.f32 %v3665, %v3716
    %v3722 = vadd.f32 %v3666, %v3718
    %s3723 = sld [smem:[#allocation13 + $0x68]]
    %v3724 = vstv %s3723
    %v3725 = vmul.f32 %v3613, %v3724
    %v3726 = vmul.f32 %v3614, %v3724
    %3729 = vrot.lane.b32.xlu0 %v3725, 126
    %v3730 = vpop.permute.xlu0 %3729
    %3731 = vrot.lane.b32.xlu0 %v3726, 126
    %v3732 = vpop.permute.xlu0 %3731
    %v3735 = vadd.f32 %v3679, %v3730
    %v3736 = vadd.f32 %v3680, %v3732
    %s3737 = sld [smem:[#allocation13 + $0x8c]]
    %v3738 = vstv %s3737
    %v3739 = vmul.f32 %v3613, %v3738
    %v3740 = vmul.f32 %v3614, %v3738
    %3743 = vrot.lane.b32.xlu0 %v3739, 126
    %v3744 = vpop.permute.xlu0 %3743
    %3745 = vrot.lane.b32.xlu0 %v3740, 126
    %v3746 = vpop.permute.xlu0 %3745
    %v3749 = vadd.f32 %v3693, %v3744
    %v3750 = vadd.f32 %v3694, %v3746
    %v3751 = vld [vmem:[%s2174 + $0x2] sm:$0xff]
    %v3752 = vld [vmem:[%s2174 + $0xa] sm:$0xff]
    %s3753 = sld [smem:[#allocation13 + $0x21]]
    %v3754 = vstv %s3753
    %v3755 = vmul.f32 %v3751, %v3754
    %v3756 = vmul.f32 %v3752, %v3754
    %v3757 = vadd.f32 %v3707, %v3755
    %v3758 = vadd.f32 %v3708, %v3756
    %s3759 = sld [smem:[#allocation13 + $0x45]]
    %v3760 = vstv %s3759
    %v3761 = vmul.f32 %v3751, %v3760
    %v3762 = vmul.f32 %v3752, %v3760
    %v3763 = vadd.f32 %v3721, %v3761
    %v3764 = vadd.f32 %v3722, %v3762
    %s3765 = sld [smem:[#allocation13 + $0x69]]
    %v3766 = vstv %s3765
    %v3767 = vmul.f32 %v3751, %v3766
    %v3768 = vmul.f32 %v3752, %v3766
    %v3769 = vadd.f32 %v3735, %v3767
    %v3770 = vadd.f32 %v3736, %v3768
    %s3771 = sld [smem:[#allocation13 + $0x8d]]
    %v3772 = vstv %s3771
    %v3773 = vmul.f32 %v3751, %v3772
    %v3774 = vmul.f32 %v3752, %v3772
    %v3775 = vadd.f32 %v3749, %v3773
    %v3776 = vadd.f32 %v3750, %v3774
    %s3777 = sld [smem:[#allocation13 + $0x22]]
    %v3778 = vstv %s3777
    %v3779 = vmul.f32 %v3751, %v3778
    %v3780 = vmul.f32 %v3752, %v3778
    %3783 = vrot.lane.b32.xlu0 %v3779, 127
    %v3784 = vpop.permute.xlu0 %3783
    %3785 = vrot.lane.b32.xlu0 %v3780, 127
    %v3786 = vpop.permute.xlu0 %3785
    %v3789 = vadd.f32 %v3757, %v3784
    %v3790 = vadd.f32 %v3758, %v3786
    %s3791 = sld [smem:[#allocation13 + $0x46]]
    %v3792 = vstv %s3791
    %v3793 = vmul.f32 %v3751, %v3792
    %v3794 = vmul.f32 %v3752, %v3792
    %3797 = vrot.lane.b32.xlu0 %v3793, 127
    %v3798 = vpop.permute.xlu0 %3797
    %3799 = vrot.lane.b32.xlu0 %v3794, 127
    %v3800 = vpop.permute.xlu0 %3799
    %v3803 = vadd.f32 %v3763, %v3798
    %v3804 = vadd.f32 %v3764, %v3800
    %s3805 = sld [smem:[#allocation13 + $0x6a]]
    %v3806 = vstv %s3805
    %v3807 = vmul.f32 %v3751, %v3806
    %v3808 = vmul.f32 %v3752, %v3806
    %3811 = vrot.lane.b32.xlu0 %v3807, 127
    %v3812 = vpop.permute.xlu0 %3811
    %3813 = vrot.lane.b32.xlu0 %v3808, 127
    %v3814 = vpop.permute.xlu0 %3813
    %v3817 = vadd.f32 %v3769, %v3812
    %v3818 = vadd.f32 %v3770, %v3814
    %s3819 = sld [smem:[#allocation13 + $0x8e]]
    %v3820 = vstv %s3819
    %v3821 = vmul.f32 %v3751, %v3820
    %v3822 = vmul.f32 %v3752, %v3820
    %3825 = vrot.lane.b32.xlu0 %v3821, 127
    %v3826 = vpop.permute.xlu0 %3825
    %3827 = vrot.lane.b32.xlu0 %v3822, 127
    %v3828 = vpop.permute.xlu0 %3827
    %v3831 = vadd.f32 %v3775, %v3826
    %v3832 = vadd.f32 %v3776, %v3828
    %s3833 = sld [smem:[#allocation13 + $0x23]]
    %v3834 = vstv %s3833
    %v3835 = vmul.f32 %v3751, %v3834
    %v3836 = vmul.f32 %v3752, %v3834
    %3839 = vrot.lane.b32.xlu0 %v3835, 126
    %v3840 = vpop.permute.xlu0 %3839
    %3841 = vrot.lane.b32.xlu0 %v3836, 126
    %v3842 = vpop.permute.xlu0 %3841
    %v3845 = vadd.f32 %v3789, %v3840
    %v3846 = vadd.f32 %v3790, %v3842
    %s3847 = sld [smem:[#allocation13 + $0x47]]
    %v3848 = vstv %s3847
    %v3849 = vmul.f32 %v3751, %v3848
    %v3850 = vmul.f32 %v3752, %v3848
    %3853 = vrot.lane.b32.xlu0 %v3849, 126
    %v3854 = vpop.permute.xlu0 %3853
    %3855 = vrot.lane.b32.xlu0 %v3850, 126
    %v3856 = vpop.permute.xlu0 %3855
    %v3859 = vadd.f32 %v3803, %v3854
    %v3860 = vadd.f32 %v3804, %v3856
    %s3861 = sld [smem:[#allocation13 + $0x6b]]
    %v3862 = vstv %s3861
    %v3863 = vmul.f32 %v3751, %v3862
    %v3864 = vmul.f32 %v3752, %v3862
    %3867 = vrot.lane.b32.xlu0 %v3863, 126
    %v3868 = vpop.permute.xlu0 %3867
    %3869 = vrot.lane.b32.xlu0 %v3864, 126
    %v3870 = vpop.permute.xlu0 %3869
    %v3873 = vadd.f32 %v3817, %v3868
    %v3874 = vadd.f32 %v3818, %v3870
    %s3875 = sld [smem:[#allocation13 + $0x8f]]
    %v3876 = vstv %s3875
    %v3877 = vmul.f32 %v3751, %v3876
    %v3878 = vmul.f32 %v3752, %v3876
    %3881 = vrot.lane.b32.xlu0 %v3877, 126
    %v3882 = vpop.permute.xlu0 %3881
    %3883 = vrot.lane.b32.xlu0 %v3878, 126
    %v3884 = vpop.permute.xlu0 %3883
    %v3887 = vadd.f32 %v3831, %v3882
    %v3888 = vadd.f32 %v3832, %v3884
    %s3889 = sld [smem:[#allocation15]]
    %v3890 = vstv %s3889
    %v3891 = vadd.f32 %v3845, %v3890
    %v3892 = vadd.f32 %v3846, %v3890
    %vm3893 = vcmask 130048
    %3894 = vst.msk [vmem:[#allocation17] sm:$0xff] %vm3893, %v3891
    %3895 = vst.msk [vmem:[#allocation17 + $0x8] sm:$0xff] %vm3893, %v3892
    %3898 = vrot.lane.b32.xlu0 %v3891, 110
    %v3899 = vpop.permute.xlu0 %3898
    %3900 = vrot.lane.b32.xlu0 %v3892, 110
    %v3901 = vpop.permute.xlu0 %3900
    %s3904 = scalar_lea.vmem [#allocation17], 64
    %3905 = vst.msk [vmem:[%s3904] sm:$0xff] %vm3893, %v3899
    %3906 = vst.msk [vmem:[%s3904 + $0x8] sm:$0xff] %vm3893, %v3901
    %s3907 = sld [smem:[#allocation15 + $0x1]]
    %v3908 = vstv %s3907
    %v3909 = vadd.f32 %v3859, %v3908
    %v3910 = vadd.f32 %v3860, %v3908
    %s3911 = scalar_lea.vmem [#allocation17], 16
    %3912 = vst.msk [vmem:[%s3911] sm:$0xff] %vm3893, %v3909
    %3913 = vst.msk [vmem:[%s3911 + $0x8] sm:$0xff] %vm3893, %v3910
    %3916 = vrot.lane.b32.xlu0 %v3909, 110
    %v3917 = vpop.permute.xlu0 %3916
    %3918 = vrot.lane.b32.xlu0 %v3910, 110
    %v3919 = vpop.permute.xlu0 %3918
    %s3922 = scalar_lea.vmem [#allocation17], 80
    %3923 = vst.msk [vmem:[%s3922] sm:$0xff] %vm3893, %v3917
    %3924 = vst.msk [vmem:[%s3922 + $0x8] sm:$0xff] %vm3893, %v3919
    %s3925 = sld [smem:[#allocation15 + $0x2]]
    %v3926 = vstv %s3925
    %v3927 = vadd.f32 %v3873, %v3926
    %v3928 = vadd.f32 %v3874, %v3926
    %s3929 = scalar_lea.vmem [#allocation17], 32
    %3930 = vst.msk [vmem:[%s3929] sm:$0xff] %vm3893, %v3927
    %3931 = vst.msk [vmem:[%s3929 + $0x8] sm:$0xff] %vm3893, %v3928
    %3934 = vrot.lane.b32.xlu0 %v3927, 110
    %v3935 = vpop.permute.xlu0 %3934
    %3936 = vrot.lane.b32.xlu0 %v3928, 110
    %v3937 = vpop.permute.xlu0 %3936
    %s3940 = scalar_lea.vmem [#allocation17], 96
    %3941 = vst.msk [vmem:[%s3940] sm:$0xff] %vm3893, %v3935
    %3942 = vst.msk [vmem:[%s3940 + $0x8] sm:$0xff] %vm3893, %v3937
    %s3943 = sld [smem:[#allocation15 + $0x3]]
    %v3944 = vstv %s3943
    %v3945 = vadd.f32 %v3887, %v3944
    %v3946 = vadd.f32 %v3888, %v3944
    %s3947 = scalar_lea.vmem [#allocation17], 48
    %3948 = vst.msk [vmem:[%s3947] sm:$0xff] %vm3893, %v3945
    %3949 = vst.msk [vmem:[%s3947 + $0x8] sm:$0xff] %vm3893, %v3946
    %3952 = vrot.lane.b32.xlu0 %v3945, 110
    %v3953 = vpop.permute.xlu0 %3952
    %3954 = vrot.lane.b32.xlu0 %v3946, 110
    %v3955 = vpop.permute.xlu0 %3954
    %s3958 = scalar_lea.vmem [#allocation17], 112
    %3959 = vst.msk [vmem:[%s3958] sm:$0xff] %vm3893, %v3953
    %3960 = vst.msk [vmem:[%s3958 + $0x8] sm:$0xff] %vm3893, %v3955
    // Predicated region
    $region58: #{tpu_custom_call.1} parent=1 // pred_check
      _
    $region59: #{tpu_custom_call.1} parent=1 // pred_check_branch
      %3962 = sbr.rel (0) target = $region61
    $region60: #{tpu_custom_call.1} parent=1 // pred_region
      %s3964 = ssub.s32 2048, 2048
      %3965 = vsyncadd [#allocation6], %s3964
      %s3966 = sshll.u32 [#allocation17], 4
      %s3967 = int_to_ptr.vmem [resolvable:$true] %s3966
      %3972 = dma.vmem_to_hbm [thread:$0]  %s3967, 2048, %s7, [#allocation6], 128, 128, 8
    $region61: #{tpu_custom_call.1} parent=1 // pred_fallthru
      _
    // Predicated region
    $region62: #{tpu_custom_call.1} parent=1 // pred_check
      _
    $region63: #{tpu_custom_call.1} parent=1 // pred_check_branch
      %3974 = sbr.rel (0) target = $region65
    $region64: #{tpu_custom_call.1} parent=1 // pred_region
      %3975 = dma.done [#allocation6], 2048
    $region65: #{tpu_custom_call.1} parent=1 // pred_fallthru
      _
    %3976 = vsyncpa [#allocation5], 1
    %3977 = vsyncpa [#allocation6], 1
    %3978 = vsyncpa [#allocation7], 1
    %3979 = vsyncpa [#allocation8], 1
    %3980 = vsyncpa [#allocation11], 1
    %3981 = vsyncpa [#allocation14], 1

</llo_original>
